<compile_context>
chip_gen: v7x
topology: tpu7x:2x2x1
jax: 0.10.0
libtpu: 0.0.40
codegen_flags: <defaults>
</compile_context>

<pallas_src>
import functools

import jax
import jax.numpy as jnp
from jax import lax
from jax.experimental import pallas as pl
from jax.experimental.pallas import tpu as pltpu

_LANE = 128
_SUBLANE = 8


def _round_up(n, m):
    return ((n + m - 1) // m) * m


def _pick_slab(T, Bp, max_rows=1024):
    """Largest Ts dividing T with Ts*Bp <= max_rows (bounds matmul transients)."""
    ts = T
    while ts > 1 and (ts * Bp > max_rows or T % ts != 0):
        ts -= 1
    return ts


def _sigmoid(x):
    # sigmoid via tanh: transcendental work goes to the EUP slot instead of a
    # VALU exp + divide on the serial recurrent chain.
    return 0.5 * (jnp.tanh(0.5 * x) + 1.0)


def _vmem_limit_bytes():
    # Chip-aware VMEM budget: ~75% of physical (128 MiB v5e/v6e, 64 MiB v7x).
    try:
        cap = int(pltpu.get_tpu_info().vmem_capacity_bytes)
        return (cap * 3) // 4
    except Exception:
        return None  # fall back to the Mosaic default


# ----------------------------------------------------------------------------
# Fused kernel: all LSTM layers + FC + ReLU in one pallas_call.
# ----------------------------------------------------------------------------
def _make_fused_kernel(num_layers, T, Bp, Hp, Ts, unroll):
    G = 4 * Hp
    n_slabs = T // Ts

    def kernel(*refs):
        x_ref = refs[0]                                   # (T, Bp, Dp) bf16
        layer_refs = [refs[1 + 3 * l:4 + 3 * l] for l in range(num_layers)]
        fcw_ref = refs[1 + 3 * num_layers]                # (Hp, Cp) bf16
        fcb_ref = refs[2 + 3 * num_layers]                # (1, Cp)  f32
        out_ref = refs[3 + 3 * num_layers]                # (Bp, Cp) f32
        scratch = refs[4 + 3 * num_layers:]
        gx_scr = scratch[0]                               # (T, Bp, 4Hp) bf16
        hseq_scr = scratch[1] if num_layers > 1 else None  # (T, Bp, Hp) bf16

        h_last = None
        for l in range(num_layers):
            w_ih_ref, w_hh_ref, b_ref = layer_refs[l]
            is_last = l == num_layers - 1

            if l == 0:
                src_ref = x_ref
                din = x_ref.shape[-1]
            else:
                src_ref = hseq_scr
                din = Hp

            # ---- hoisted input projection for the whole sequence, emitted
            #      slab-by-slab so the matmul transients stay bounded.  Bias is
            #      folded in here (off the recurrent critical path); result is
            #      quantized to bf16 on store.
            def emit_slab(t0, src_ref=src_ref, din=din,
                          w_ih_ref=w_ih_ref, b_ref=b_ref):
                xf = src_ref[pl.ds(t0, Ts)].reshape(Ts * Bp, din)      # bf16
                gx = jnp.dot(xf, w_ih_ref[...],
                             preferred_element_type=jnp.float32) + b_ref[...]
                gx_scr[pl.ds(t0, Ts)] = (
                    gx.reshape(Ts, Bp, G).astype(gx_scr.dtype))

            if n_slabs <= 4:
                for s in range(n_slabs):
                    emit_slab(s * Ts)
            else:
                def slab_body(s, carry):
                    emit_slab(pl.multiple_of(s * Ts, Ts))
                    return carry
                lax.fori_loop(0, n_slabs, slab_body, 0)

            # ---- serial recurrence: (h, c) live in vregs as loop carries.
            #      Only non-last layers write the per-step hidden sequence.
            def step(t, carry, is_last=is_last, w_hh_ref=w_hh_ref):
                h_prev, c_prev = carry
                # W_hh stays a VMEM ref read inside the dot (not hoisted into
                # vregs for the whole loop) to avoid register pressure.
                gates = gx_scr[t].astype(jnp.float32) + jnp.dot(
                    h_prev.astype(jnp.bfloat16), w_hh_ref[...],
                    preferred_element_type=jnp.float32)    # (Bp, 4Hp) f32
                # Gate order i, f, g, o; slices lane-aligned (Hp % 128 == 0).
                i_g = _sigmoid(gates[:, 0 * Hp:1 * Hp])
                f_g = _sigmoid(gates[:, 1 * Hp:2 * Hp])
                g_g = jnp.tanh(gates[:, 2 * Hp:3 * Hp])
                o_g = _sigmoid(gates[:, 3 * Hp:4 * Hp])
                c_new = f_g * c_prev + i_g * g_g
                h_new = o_g * jnp.tanh(c_new)
                if not is_last:
                    hseq_scr[t] = h_new.astype(hseq_scr.dtype)
                return (h_new, c_new)

            h0 = jnp.zeros((Bp, Hp), jnp.float32)
            c0 = jnp.zeros((Bp, Hp), jnp.float32)
            h_last, _ = lax.fori_loop(0, T, step, (h0, c0), unroll=unroll)

        # ---- fused FC + ReLU head on the vreg-resident final hidden state --
        logits = jnp.dot(h_last.astype(jnp.bfloat16), fcw_ref[...],
                         preferred_element_type=jnp.float32) + fcb_ref[...]
        out_ref[...] = jnp.maximum(logits, 0.0)

    return kernel


# ----------------------------------------------------------------------------
# Wrapper: one pallas_call for the whole forward pass.
# ----------------------------------------------------------------------------
def _fused_forward(x_p, layer_params, fc_w_t, fc_b):
    """x_p: (T, Bp, Dp) bf16 (zero-padded).  Returns (Bp, Cp) f32."""
    T, Bp, _ = x_p.shape
    num_layers = len(layer_params)
    Hp = layer_params[0][1].shape[0]
    G = 4 * Hp
    Cp = fc_w_t.shape[1]

    operands = [x_p]
    for (w_ih_t, w_hh_t, b) in layer_params:
        operands += [w_ih_t, w_hh_t, b]
    operands += [fc_w_t, fc_b]

    Ts = _pick_slab(T, Bp)
    unroll = True if T <= 32 else 8
    kernel = _make_fused_kernel(num_layers, T, Bp, Hp, Ts, unroll)
    vmem = pl.BlockSpec(memory_space=pltpu.MemorySpace.VMEM)

    scratch_shapes = [pltpu.VMEM((T, Bp, G), jnp.bfloat16)]       # gate inputs
    if num_layers > 1:
        scratch_shapes.append(pltpu.VMEM((T, Bp, Hp), jnp.bfloat16))  # hseq

    return pl.pallas_call(
        kernel,
        out_shape=jax.ShapeDtypeStruct((Bp, Cp), jnp.float32),
        in_specs=[vmem] * len(operands),
        out_specs=vmem,
        scratch_shapes=scratch_shapes,
        compiler_params=pltpu.CompilerParams(
            vmem_limit_bytes=_vmem_limit_bytes()),
    )(*operands)


@functools.partial(jax.jit, static_argnames=("num_classes",))
def lstm_forward(x, packed, *, num_classes):
    """x: (B, T, input_size), batch_first -> (B, num_classes)."""
    B, T, D = x.shape
    Dp = packed["layers"][0][0].shape[0]
    Bp = _round_up(B, _SUBLANE)
    x_tbd = jnp.transpose(x, (1, 0, 2)).astype(jnp.bfloat16)      # (T, B, D)
    x_p = jnp.zeros((T, Bp, Dp), jnp.bfloat16).at[:, :B, :D].set(x_tbd)
    out_p = _fused_forward(x_p, packed["layers"], packed["fc_w_t"], packed["fc_b"])
    return out_p[:B, :num_classes]


# ----------------------------------------------------------------------------
# Parameter init (PyTorch layout) + packing (pad / transpose / bf16 cast).
# ----------------------------------------------------------------------------
def init_params(key, input_size, hidden_size, num_layers, num_classes):
    k = 1.0 / jnp.sqrt(hidden_size)
    raw = {"lstm": []}
    for layer in range(num_layers):
        d_in = input_size if layer == 0 else hidden_size
        key, k1, k2, k3, k4 = jax.random.split(key, 5)
        w_ih = jax.random.uniform(k1, (4 * hidden_size, d_in), jnp.float32, -k, k)
        w_hh = jax.random.uniform(k2, (4 * hidden_size, hidden_size), jnp.float32, -k, k)
        b_ih = jax.random.uniform(k3, (4 * hidden_size,), jnp.float32, -k, k)
        b_hh = jax.random.uniform(k4, (4 * hidden_size,), jnp.float32, -k, k)
        raw["lstm"].append((w_ih, w_hh, b_ih, b_hh))
    key, k5, k6 = jax.random.split(key, 3)
    raw["fc_w"] = jax.random.uniform(k5, (num_classes, hidden_size), jnp.float32, -k, k)
    raw["fc_b"] = jax.random.uniform(k6, (num_classes,), jnp.float32, -k, k)
    return raw


def pack_params(raw):
    """Pad to (8,128) tiles, pre-transpose, cast weights to bf16.

    Gate blocks (i,f,g,o) are re-laid-out at Hp strides so each in-kernel
    gate slice is lane-tile aligned; all padding is exactly zero so padded
    hidden lanes stay zero through the recurrence.
    """
    layers = []
    for (w_ih, w_hh, b_ih, b_hh) in raw["lstm"]:
        four_h, d_in = w_ih.shape
        H = four_h // 4
        Hp = _round_up(H, _LANE)
        Dp = _round_up(d_in, _LANE)
        w_ih_t = jnp.zeros((Dp, 4 * Hp), jnp.float32)
        w_hh_t = jnp.zeros((Hp, 4 * Hp), jnp.float32)
        bias = jnp.zeros((1, 4 * Hp), jnp.float32)
        wi = w_ih.T                                    # (Din, 4H)
        wh = w_hh.T                                    # (H,   4H)
        bb = (b_ih + b_hh).reshape(1, 4 * H)
        for k in range(4):                             # i, f, g, o
            w_ih_t = w_ih_t.at[:d_in, k * Hp:k * Hp + H].set(wi[:, k * H:(k + 1) * H])
            w_hh_t = w_hh_t.at[:H, k * Hp:k * Hp + H].set(wh[:, k * H:(k + 1) * H])
            bias = bias.at[:, k * Hp:k * Hp + H].set(bb[:, k * H:(k + 1) * H])
        layers.append((w_ih_t.astype(jnp.bfloat16),
                       w_hh_t.astype(jnp.bfloat16),
                       bias))
    C, H = raw["fc_w"].shape
    Hp = _round_up(H, _LANE)
    Cp = _round_up(C, _LANE)
    fc_w_t = jnp.zeros((Hp, Cp), jnp.float32).at[:H, :C].set(raw["fc_w"].T)
    fc_b = jnp.zeros((1, Cp), jnp.float32).at[0, :C].set(raw["fc_b"])
    return {"layers": layers,
            "fc_w_t": fc_w_t.astype(jnp.bfloat16),
            "fc_b": fc_b}


# ----------------------------------------------------------------------------
# Pure-JAX reference with identical numerics (bf16 weights & gate pre-acts,
# f32 accumulation / elementwise, same tanh-based sigmoid).
# ----------------------------------------------------------------------------
def reference_forward(x, raw):
    B, T, _ = x.shape
    seq = jnp.transpose(x, (1, 0, 2)).astype(jnp.float32)          # (T, B, Din)
    for (w_ih, w_hh, b_ih, b_hh) in raw["lstm"]:
        H = w_hh.shape[1]
        w_ih_t = w_ih.T.astype(jnp.bfloat16)
        w_hh_t = w_hh.T.astype(jnp.bfloat16)
        bias = (b_ih + b_hh).reshape(1, 4 * H)
        gx = (jnp.dot(seq.astype(jnp.bfloat16).reshape(T * B, -1), w_ih_t,
                      preferred_element_type=jnp.float32).reshape(T, B, 4 * H)
              + bias).astype(jnp.bfloat16)
        h = jnp.zeros((B, H), jnp.float32)
        c = jnp.zeros((B, H), jnp.float32)
        outs = []
        for t in range(T):
            gates = gx[t].astype(jnp.float32) + jnp.dot(
                h.astype(jnp.bfloat16), w_hh_t, preferred_element_type=jnp.float32)
            i = _sigmoid(gates[:, 0 * H:1 * H])
            f = _sigmoid(gates[:, 1 * H:2 * H])
            g = jnp.tanh(gates[:, 2 * H:3 * H])
            o = _sigmoid(gates[:, 3 * H:4 * H])
            c = f * c + i * g
            h = o * jnp.tanh(c)
            outs.append(h)
        seq = jnp.stack(outs, axis=0)
    y = jnp.dot(seq[-1].astype(jnp.bfloat16), raw["fc_w"].T.astype(jnp.bfloat16),
                preferred_element_type=jnp.float32) + raw["fc_b"].reshape(1, -1)
    return jnp.maximum(y, 0.0)


if __name__ == "__main__":
    # Small shapes consistent with the module's forward.
    batch, seq_len = 2, 8
    input_size, hidden_size, num_layers, num_classes = 16, 32, 2, 8

    key = jax.random.PRNGKey(0)
    key, kx, kp = jax.random.split(key, 3)
    x = jax.random.normal(kx, (batch, seq_len, input_size), jnp.float32)
    raw = init_params(kp, input_size, hidden_size, num_layers, num_classes)
    packed = pack_params(raw)

    out = lstm_forward(x, packed, num_classes=num_classes)
    out = jax.block_until_ready(out)

    ref = reference_forward(x, raw)
    assert out.shape == (batch, num_classes), out.shape
    assert jnp.allclose(out, ref, atol=1e-3, rtol=1e-3), (
        "mismatch vs reference: max abs err = "
        f"{float(jnp.max(jnp.abs(out - ref)))}")
    print("KERNEL_OK")
</pallas_src>

<mosaic_0001>
module attributes {stable_mosaic.version = 11 : i64} {
  func.func @kernel(%arg0: memref<8x8x128xbf16, #tpu.memory_space<vmem>>, %arg1: memref<128x512xbf16, #tpu.memory_space<vmem>>, %arg2: memref<128x512xbf16, #tpu.memory_space<vmem>>, %arg3: memref<1x512xf32, #tpu.memory_space<vmem>>, %arg4: memref<128x512xbf16, #tpu.memory_space<vmem>>, %arg5: memref<128x512xbf16, #tpu.memory_space<vmem>>, %arg6: memref<1x512xf32, #tpu.memory_space<vmem>>, %arg7: memref<128x128xbf16, #tpu.memory_space<vmem>>, %arg8: memref<1x128xf32, #tpu.memory_space<vmem>>, %arg9: memref<8x128xf32, #tpu.memory_space<vmem>>, %arg10: memref<8x8x512xbf16, #tpu.memory_space<vmem>>, %arg11: memref<8x8x128xbf16, #tpu.memory_space<vmem>>) attributes {dimension_semantics = [], scalar_prefetch = 0 : i64, scratch_operands = 2 : i64, tpu.core_type = #tpu.core_type<tc>} {
    %c0 = arith.constant 0 : index
    %c0_0 = arith.constant 0 : index
    %c0_1 = arith.constant 0 : index
    %0 = vector.load %arg0[%c0, %c0_0, %c0_1] : memref<8x8x128xbf16, #tpu.memory_space<vmem>>, vector<8x8x128xbf16>
    %1 = vector.shape_cast %0 : vector<8x8x128xbf16> to vector<64x128xbf16>
    %c0_2 = arith.constant 0 : index
    %c0_3 = arith.constant 0 : index
    %2 = vector.load %arg1[%c0_2, %c0_3] : memref<128x512xbf16, #tpu.memory_space<vmem>>, vector<128x512xbf16>
    %cst = arith.constant dense<0.000000e+00> : vector<64x512xf32>
    %3 = tpu.matmul %1, %2, %cst {dimension_numbers = #tpu.dot_dimension_numbers<[1], [0], [0], [1], [0, 0, 1, 1], [], []>} : vector<64x128xbf16>, vector<128x512xbf16>, vector<64x512xf32> -> vector<64x512xf32>
    %c0_4 = arith.constant 0 : index
    %c0_5 = arith.constant 0 : index
    %4 = vector.load %arg3[%c0_4, %c0_5] : memref<1x512xf32, #tpu.memory_space<vmem>>, vector<1x512xf32>
    %5 = vector.broadcast %4 : vector<1x512xf32> to vector<64x512xf32>
    %6 = arith.addf %3, %5 : vector<64x512xf32>
    %7 = vector.shape_cast %6 : vector<64x512xf32> to vector<8x8x512xf32>
    %8 = arith.truncf %7 : vector<8x8x512xf32> to vector<8x8x512xbf16>
    %c0_6 = arith.constant 0 : index
    %c0_7 = arith.constant 0 : index
    %c0_8 = arith.constant 0 : index
    %9 = vector.load %arg10[%c0_6, %c0_7, %c0_8] : memref<8x8x512xbf16, #tpu.memory_space<vmem>>, vector<8x8x512xbf16>
    tpu.vector_store %arg10[%c0_6, %c0_7, %c0_8], %8 {strides = array<i32>} : memref<8x8x512xbf16, #tpu.memory_space<vmem>>, vector<8x8x512xbf16>,
    %cst_9 = arith.constant 0.000000e+00 : f32
    %10 = vector.broadcast %cst_9 : f32 to vector<8x128xf32>
    %cst_10 = arith.constant 0.000000e+00 : f32
    %11 = vector.broadcast %cst_10 : f32 to vector<8x128xf32>
    %c0_i32 = arith.constant 0 : i32
    %12 = arith.index_cast %c0_i32 : i32 to index
    %c0_11 = arith.constant 0 : index
    %c0_12 = arith.constant 0 : index
    %13 = vector.load %arg10[%12, %c0_11, %c0_12] : memref<8x8x512xbf16, #tpu.memory_space<vmem>>, vector<1x8x512xbf16>
    %14 = vector.shape_cast %13 : vector<1x8x512xbf16> to vector<8x512xbf16>
    %15 = arith.extf %14 : vector<8x512xbf16> to vector<8x512xf32>
    %16 = arith.truncf %10 : vector<8x128xf32> to vector<8x128xbf16>
    %c0_13 = arith.constant 0 : index
    %c0_14 = arith.constant 0 : index
    %17 = vector.load %arg2[%c0_13, %c0_14] : memref<128x512xbf16, #tpu.memory_space<vmem>>, vector<128x512xbf16>
    %cst_15 = arith.constant dense<0.000000e+00> : vector<8x512xf32>
    %18 = tpu.matmul %16, %17, %cst_15 {dimension_numbers = #tpu.dot_dimension_numbers<[1], [0], [0], [1], [0, 0, 1, 1], [], []>} : vector<8x128xbf16>, vector<128x512xbf16>, vector<8x512xf32> -> vector<8x512xf32>
    %19 = arith.addf %15, %18 : vector<8x512xf32>
    %20 = vector.extract_strided_slice %19 {offsets = [0, 0], sizes = [8, 128], strides = [1, 1]} : vector<8x512xf32> to vector<8x128xf32>
    %cst_16 = arith.constant 5.000000e-01 : f32
    %21 = vector.broadcast %cst_16 : f32 to vector<8x128xf32>
    %22 = arith.mulf %21, %20 : vector<8x128xf32>
    %23 = math.tanh %22 : vector<8x128xf32>
    %cst_17 = arith.constant 1.000000e+00 : f32
    %24 = vector.broadcast %cst_17 : f32 to vector<8x128xf32>
    %25 = arith.addf %23, %24 : vector<8x128xf32>
    %cst_18 = arith.constant 5.000000e-01 : f32
    %26 = vector.broadcast %cst_18 : f32 to vector<8x128xf32>
    %27 = arith.mulf %26, %25 : vector<8x128xf32>
    %28 = vector.extract_strided_slice %19 {offsets = [0, 128], sizes = [8, 128], strides = [1, 1]} : vector<8x512xf32> to vector<8x128xf32>
    %cst_19 = arith.constant 5.000000e-01 : f32
    %29 = vector.broadcast %cst_19 : f32 to vector<8x128xf32>
    %30 = arith.mulf %29, %28 : vector<8x128xf32>
    %31 = math.tanh %30 : vector<8x128xf32>
    %cst_20 = arith.constant 1.000000e+00 : f32
    %32 = vector.broadcast %cst_20 : f32 to vector<8x128xf32>
    %33 = arith.addf %31, %32 : vector<8x128xf32>
    %cst_21 = arith.constant 5.000000e-01 : f32
    %34 = vector.broadcast %cst_21 : f32 to vector<8x128xf32>
    %35 = arith.mulf %34, %33 : vector<8x128xf32>
    %36 = vector.extract_strided_slice %19 {offsets = [0, 256], sizes = [8, 128], strides = [1, 1]} : vector<8x512xf32> to vector<8x128xf32>
    %37 = math.tanh %36 : vector<8x128xf32>
    %38 = vector.extract_strided_slice %19 {offsets = [0, 384], sizes = [8, 128], strides = [1, 1]} : vector<8x512xf32> to vector<8x128xf32>
    %cst_22 = arith.constant 5.000000e-01 : f32
    %39 = vector.broadcast %cst_22 : f32 to vector<8x128xf32>
    %40 = arith.mulf %39, %38 : vector<8x128xf32>
    %41 = math.tanh %40 : vector<8x128xf32>
    %cst_23 = arith.constant 1.000000e+00 : f32
    %42 = vector.broadcast %cst_23 : f32 to vector<8x128xf32>
    %43 = arith.addf %41, %42 : vector<8x128xf32>
    %cst_24 = arith.constant 5.000000e-01 : f32
    %44 = vector.broadcast %cst_24 : f32 to vector<8x128xf32>
    %45 = arith.mulf %44, %43 : vector<8x128xf32>
    %46 = arith.mulf %35, %11 : vector<8x128xf32>
    %47 = arith.mulf %27, %37 : vector<8x128xf32>
    %48 = arith.addf %46, %47 : vector<8x128xf32>
    %49 = math.tanh %48 : vector<8x128xf32>
    %50 = arith.mulf %45, %49 : vector<8x128xf32>
    %51 = arith.truncf %50 : vector<8x128xf32> to vector<8x128xbf16>
    %52 = arith.index_cast %c0_i32 : i32 to index
    %c0_25 = arith.constant 0 : index
    %c0_26 = arith.constant 0 : index
    %53 = vector.load %arg11[%52, %c0_25, %c0_26] : memref<8x8x128xbf16, #tpu.memory_space<vmem>>, vector<1x8x128xbf16>
    %54 = vector.shape_cast %53 : vector<1x8x128xbf16> to vector<8x128xbf16>
    %55 = vector.shape_cast %51 : vector<8x128xbf16> to vector<1x8x128xbf16>
    tpu.vector_store %arg11[%52, %c0_25, %c0_26], %55 {strides = array<i32>} : memref<8x8x128xbf16, #tpu.memory_space<vmem>>, vector<1x8x128xbf16>,
    %c1_i32 = arith.constant 1 : i32
    %56 = arith.index_cast %c1_i32 : i32 to index
    %c0_27 = arith.constant 0 : index
    %c0_28 = arith.constant 0 : index
    %57 = vector.load %arg10[%56, %c0_27, %c0_28] : memref<8x8x512xbf16, #tpu.memory_space<vmem>>, vector<1x8x512xbf16>
    %58 = vector.shape_cast %57 : vector<1x8x512xbf16> to vector<8x512xbf16>
    %59 = arith.extf %58 : vector<8x512xbf16> to vector<8x512xf32>
    %60 = arith.truncf %50 : vector<8x128xf32> to vector<8x128xbf16>
    %c0_29 = arith.constant 0 : index
    %c0_30 = arith.constant 0 : index
    %61 = vector.load %arg2[%c0_29, %c0_30] : memref<128x512xbf16, #tpu.memory_space<vmem>>, vector<128x512xbf16>
    %cst_31 = arith.constant dense<0.000000e+00> : vector<8x512xf32>
    %62 = tpu.matmul %60, %61, %cst_31 {dimension_numbers = #tpu.dot_dimension_numbers<[1], [0], [0], [1], [0, 0, 1, 1], [], []>} : vector<8x128xbf16>, vector<128x512xbf16>, vector<8x512xf32> -> vector<8x512xf32>
    %63 = arith.addf %59, %62 : vector<8x512xf32>
    %64 = vector.extract_strided_slice %63 {offsets = [0, 0], sizes = [8, 128], strides = [1, 1]} : vector<8x512xf32> to vector<8x128xf32>
    %cst_32 = arith.constant 5.000000e-01 : f32
    %65 = vector.broadcast %cst_32 : f32 to vector<8x128xf32>
    %66 = arith.mulf %65, %64 : vector<8x128xf32>
    %67 = math.tanh %66 : vector<8x128xf32>
    %cst_33 = arith.constant 1.000000e+00 : f32
    %68 = vector.broadcast %cst_33 : f32 to vector<8x128xf32>
    %69 = arith.addf %67, %68 : vector<8x128xf32>
    %cst_34 = arith.constant 5.000000e-01 : f32
    %70 = vector.broadcast %cst_34 : f32 to vector<8x128xf32>
    %71 = arith.mulf %70, %69 : vector<8x128xf32>
    %72 = vector.extract_strided_slice %63 {offsets = [0, 128], sizes = [8, 128], strides = [1, 1]} : vector<8x512xf32> to vector<8x128xf32>
    %cst_35 = arith.constant 5.000000e-01 : f32
    %73 = vector.broadcast %cst_35 : f32 to vector<8x128xf32>
    %74 = arith.mulf %73, %72 : vector<8x128xf32>
    %75 = math.tanh %74 : vector<8x128xf32>
    %cst_36 = arith.constant 1.000000e+00 : f32
    %76 = vector.broadcast %cst_36 : f32 to vector<8x128xf32>
    %77 = arith.addf %75, %76 : vector<8x128xf32>
    %cst_37 = arith.constant 5.000000e-01 : f32
    %78 = vector.broadcast %cst_37 : f32 to vector<8x128xf32>
    %79 = arith.mulf %78, %77 : vector<8x128xf32>
    %80 = vector.extract_strided_slice %63 {offsets = [0, 256], sizes = [8, 128], strides = [1, 1]} : vector<8x512xf32> to vector<8x128xf32>
    %81 = math.tanh %80 : vector<8x128xf32>
    %82 = vector.extract_strided_slice %63 {offsets = [0, 384], sizes = [8, 128], strides = [1, 1]} : vector<8x512xf32> to vector<8x128xf32>
    %cst_38 = arith.constant 5.000000e-01 : f32
    %83 = vector.broadcast %cst_38 : f32 to vector<8x128xf32>
    %84 = arith.mulf %83, %82 : vector<8x128xf32>
    %85 = math.tanh %84 : vector<8x128xf32>
    %cst_39 = arith.constant 1.000000e+00 : f32
    %86 = vector.broadcast %cst_39 : f32 to vector<8x128xf32>
    %87 = arith.addf %85, %86 : vector<8x128xf32>
    %cst_40 = arith.constant 5.000000e-01 : f32
    %88 = vector.broadcast %cst_40 : f32 to vector<8x128xf32>
    %89 = arith.mulf %88, %87 : vector<8x128xf32>
    %90 = arith.mulf %79, %48 : vector<8x128xf32>
    %91 = arith.mulf %71, %81 : vector<8x128xf32>
    %92 = arith.addf %90, %91 : vector<8x128xf32>
    %93 = math.tanh %92 : vector<8x128xf32>
    %94 = arith.mulf %89, %93 : vector<8x128xf32>
    %95 = arith.truncf %94 : vector<8x128xf32> to vector<8x128xbf16>
    %96 = arith.index_cast %c1_i32 : i32 to index
    %c0_41 = arith.constant 0 : index
    %c0_42 = arith.constant 0 : index
    %97 = vector.load %arg11[%96, %c0_41, %c0_42] : memref<8x8x128xbf16, #tpu.memory_space<vmem>>, vector<1x8x128xbf16>
    %98 = vector.shape_cast %97 : vector<1x8x128xbf16> to vector<8x128xbf16>
    %99 = vector.shape_cast %95 : vector<8x128xbf16> to vector<1x8x128xbf16>
    tpu.vector_store %arg11[%96, %c0_41, %c0_42], %99 {strides = array<i32>} : memref<8x8x128xbf16, #tpu.memory_space<vmem>>, vector<1x8x128xbf16>,
    %c2_i32 = arith.constant 2 : i32
    %100 = arith.index_cast %c2_i32 : i32 to index
    %c0_43 = arith.constant 0 : index
    %c0_44 = arith.constant 0 : index
    %101 = vector.load %arg10[%100, %c0_43, %c0_44] : memref<8x8x512xbf16, #tpu.memory_space<vmem>>, vector<1x8x512xbf16>
    %102 = vector.shape_cast %101 : vector<1x8x512xbf16> to vector<8x512xbf16>
    %103 = arith.extf %102 : vector<8x512xbf16> to vector<8x512xf32>
    %104 = arith.truncf %94 : vector<8x128xf32> to vector<8x128xbf16>
    %c0_45 = arith.constant 0 : index
    %c0_46 = arith.constant 0 : index
    %105 = vector.load %arg2[%c0_45, %c0_46] : memref<128x512xbf16, #tpu.memory_space<vmem>>, vector<128x512xbf16>
    %cst_47 = arith.constant dense<0.000000e+00> : vector<8x512xf32>
    %106 = tpu.matmul %104, %105, %cst_47 {dimension_numbers = #tpu.dot_dimension_numbers<[1], [0], [0], [1], [0, 0, 1, 1], [], []>} : vector<8x128xbf16>, vector<128x512xbf16>, vector<8x512xf32> -> vector<8x512xf32>
    %107 = arith.addf %103, %106 : vector<8x512xf32>
    %108 = vector.extract_strided_slice %107 {offsets = [0, 0], sizes = [8, 128], strides = [1, 1]} : vector<8x512xf32> to vector<8x128xf32>
    %cst_48 = arith.constant 5.000000e-01 : f32
    %109 = vector.broadcast %cst_48 : f32 to vector<8x128xf32>
    %110 = arith.mulf %109, %108 : vector<8x128xf32>
    %111 = math.tanh %110 : vector<8x128xf32>
    %cst_49 = arith.constant 1.000000e+00 : f32
    %112 = vector.broadcast %cst_49 : f32 to vector<8x128xf32>
    %113 = arith.addf %111, %112 : vector<8x128xf32>
    %cst_50 = arith.constant 5.000000e-01 : f32
    %114 = vector.broadcast %cst_50 : f32 to vector<8x128xf32>
    %115 = arith.mulf %114, %113 : vector<8x128xf32>
    %116 = vector.extract_strided_slice %107 {offsets = [0, 128], sizes = [8, 128], strides = [1, 1]} : vector<8x512xf32> to vector<8x128xf32>
    %cst_51 = arith.constant 5.000000e-01 : f32
    %117 = vector.broadcast %cst_51 : f32 to vector<8x128xf32>
    %118 = arith.mulf %117, %116 : vector<8x128xf32>
    %119 = math.tanh %118 : vector<8x128xf32>
    %cst_52 = arith.constant 1.000000e+00 : f32
    %120 = vector.broadcast %cst_52 : f32 to vector<8x128xf32>
    %121 = arith.addf %119, %120 : vector<8x128xf32>
    %cst_53 = arith.constant 5.000000e-01 : f32
    %122 = vector.broadcast %cst_53 : f32 to vector<8x128xf32>
    %123 = arith.mulf %122, %121 : vector<8x128xf32>
    %124 = vector.extract_strided_slice %107 {offsets = [0, 256], sizes = [8, 128], strides = [1, 1]} : vector<8x512xf32> to vector<8x128xf32>
    %125 = math.tanh %124 : vector<8x128xf32>
    %126 = vector.extract_strided_slice %107 {offsets = [0, 384], sizes = [8, 128], strides = [1, 1]} : vector<8x512xf32> to vector<8x128xf32>
    %cst_54 = arith.constant 5.000000e-01 : f32
    %127 = vector.broadcast %cst_54 : f32 to vector<8x128xf32>
    %128 = arith.mulf %127, %126 : vector<8x128xf32>
    %129 = math.tanh %128 : vector<8x128xf32>
    %cst_55 = arith.constant 1.000000e+00 : f32
    %130 = vector.broadcast %cst_55 : f32 to vector<8x128xf32>
    %131 = arith.addf %129, %130 : vector<8x128xf32>
    %cst_56 = arith.constant 5.000000e-01 : f32
    %132 = vector.broadcast %cst_56 : f32 to vector<8x128xf32>
    %133 = arith.mulf %132, %131 : vector<8x128xf32>
    %134 = arith.mulf %123, %92 : vector<8x128xf32>
    %135 = arith.mulf %115, %125 : vector<8x128xf32>
    %136 = arith.addf %134, %135 : vector<8x128xf32>
    %137 = math.tanh %136 : vector<8x128xf32>
    %138 = arith.mulf %133, %137 : vector<8x128xf32>
    %139 = arith.truncf %138 : vector<8x128xf32> to vector<8x128xbf16>
    %140 = arith.index_cast %c2_i32 : i32 to index
    %c0_57 = arith.constant 0 : index
    %c0_58 = arith.constant 0 : index
    %141 = vector.load %arg11[%140, %c0_57, %c0_58] : memref<8x8x128xbf16, #tpu.memory_space<vmem>>, vector<1x8x128xbf16>
    %142 = vector.shape_cast %141 : vector<1x8x128xbf16> to vector<8x128xbf16>
    %143 = vector.shape_cast %139 : vector<8x128xbf16> to vector<1x8x128xbf16>
    tpu.vector_store %arg11[%140, %c0_57, %c0_58], %143 {strides = array<i32>} : memref<8x8x128xbf16, #tpu.memory_space<vmem>>, vector<1x8x128xbf16>,
    %c3_i32 = arith.constant 3 : i32
    %144 = arith.index_cast %c3_i32 : i32 to index
    %c0_59 = arith.constant 0 : index
    %c0_60 = arith.constant 0 : index
    %145 = vector.load %arg10[%144, %c0_59, %c0_60] : memref<8x8x512xbf16, #tpu.memory_space<vmem>>, vector<1x8x512xbf16>
    %146 = vector.shape_cast %145 : vector<1x8x512xbf16> to vector<8x512xbf16>
    %147 = arith.extf %146 : vector<8x512xbf16> to vector<8x512xf32>
    %148 = arith.truncf %138 : vector<8x128xf32> to vector<8x128xbf16>
    %c0_61 = arith.constant 0 : index
    %c0_62 = arith.constant 0 : index
    %149 = vector.load %arg2[%c0_61, %c0_62] : memref<128x512xbf16, #tpu.memory_space<vmem>>, vector<128x512xbf16>
    %cst_63 = arith.constant dense<0.000000e+00> : vector<8x512xf32>
    %150 = tpu.matmul %148, %149, %cst_63 {dimension_numbers = #tpu.dot_dimension_numbers<[1], [0], [0], [1], [0, 0, 1, 1], [], []>} : vector<8x128xbf16>, vector<128x512xbf16>, vector<8x512xf32> -> vector<8x512xf32>
    %151 = arith.addf %147, %150 : vector<8x512xf32>
    %152 = vector.extract_strided_slice %151 {offsets = [0, 0], sizes = [8, 128], strides = [1, 1]} : vector<8x512xf32> to vector<8x128xf32>
    %cst_64 = arith.constant 5.000000e-01 : f32
    %153 = vector.broadcast %cst_64 : f32 to vector<8x128xf32>
    %154 = arith.mulf %153, %152 : vector<8x128xf32>
    %155 = math.tanh %154 : vector<8x128xf32>
    %cst_65 = arith.constant 1.000000e+00 : f32
    %156 = vector.broadcast %cst_65 : f32 to vector<8x128xf32>
    %157 = arith.addf %155, %156 : vector<8x128xf32>
    %cst_66 = arith.constant 5.000000e-01 : f32
    %158 = vector.broadcast %cst_66 : f32 to vector<8x128xf32>
    %159 = arith.mulf %158, %157 : vector<8x128xf32>
    %160 = vector.extract_strided_slice %151 {offsets = [0, 128], sizes = [8, 128], strides = [1, 1]} : vector<8x512xf32> to vector<8x128xf32>
    %cst_67 = arith.constant 5.000000e-01 : f32
    %161 = vector.broadcast %cst_67 : f32 to vector<8x128xf32>
    %162 = arith.mulf %161, %160 : vector<8x128xf32>
    %163 = math.tanh %162 : vector<8x128xf32>
    %cst_68 = arith.constant 1.000000e+00 : f32
    %164 = vector.broadcast %cst_68 : f32 to vector<8x128xf32>
    %165 = arith.addf %163, %164 : vector<8x128xf32>
    %cst_69 = arith.constant 5.000000e-01 : f32
    %166 = vector.broadcast %cst_69 : f32 to vector<8x128xf32>
    %167 = arith.mulf %166, %165 : vector<8x128xf32>
    %168 = vector.extract_strided_slice %151 {offsets = [0, 256], sizes = [8, 128], strides = [1, 1]} : vector<8x512xf32> to vector<8x128xf32>
    %169 = math.tanh %168 : vector<8x128xf32>
    %170 = vector.extract_strided_slice %151 {offsets = [0, 384], sizes = [8, 128], strides = [1, 1]} : vector<8x512xf32> to vector<8x128xf32>
    %cst_70 = arith.constant 5.000000e-01 : f32
    %171 = vector.broadcast %cst_70 : f32 to vector<8x128xf32>
    %172 = arith.mulf %171, %170 : vector<8x128xf32>
    %173 = math.tanh %172 : vector<8x128xf32>
    %cst_71 = arith.constant 1.000000e+00 : f32
    %174 = vector.broadcast %cst_71 : f32 to vector<8x128xf32>
    %175 = arith.addf %173, %174 : vector<8x128xf32>
    %cst_72 = arith.constant 5.000000e-01 : f32
    %176 = vector.broadcast %cst_72 : f32 to vector<8x128xf32>
    %177 = arith.mulf %176, %175 : vector<8x128xf32>
    %178 = arith.mulf %167, %136 : vector<8x128xf32>
    %179 = arith.mulf %159, %169 : vector<8x128xf32>
    %180 = arith.addf %178, %179 : vector<8x128xf32>
    %181 = math.tanh %180 : vector<8x128xf32>
    %182 = arith.mulf %177, %181 : vector<8x128xf32>
    %183 = arith.truncf %182 : vector<8x128xf32> to vector<8x128xbf16>
    %184 = arith.index_cast %c3_i32 : i32 to index
    %c0_73 = arith.constant 0 : index
    %c0_74 = arith.constant 0 : index
    %185 = vector.load %arg11[%184, %c0_73, %c0_74] : memref<8x8x128xbf16, #tpu.memory_space<vmem>>, vector<1x8x128xbf16>
    %186 = vector.shape_cast %185 : vector<1x8x128xbf16> to vector<8x128xbf16>
    %187 = vector.shape_cast %183 : vector<8x128xbf16> to vector<1x8x128xbf16>
    tpu.vector_store %arg11[%184, %c0_73, %c0_74], %187 {strides = array<i32>} : memref<8x8x128xbf16, #tpu.memory_space<vmem>>, vector<1x8x128xbf16>,
    %c4_i32 = arith.constant 4 : i32
    %188 = arith.index_cast %c4_i32 : i32 to index
    %c0_75 = arith.constant 0 : index
    %c0_76 = arith.constant 0 : index
    %189 = vector.load %arg10[%188, %c0_75, %c0_76] : memref<8x8x512xbf16, #tpu.memory_space<vmem>>, vector<1x8x512xbf16>
    %190 = vector.shape_cast %189 : vector<1x8x512xbf16> to vector<8x512xbf16>
    %191 = arith.extf %190 : vector<8x512xbf16> to vector<8x512xf32>
    %192 = arith.truncf %182 : vector<8x128xf32> to vector<8x128xbf16>
    %c0_77 = arith.constant 0 : index
    %c0_78 = arith.constant 0 : index
    %193 = vector.load %arg2[%c0_77, %c0_78] : memref<128x512xbf16, #tpu.memory_space<vmem>>, vector<128x512xbf16>
    %cst_79 = arith.constant dense<0.000000e+00> : vector<8x512xf32>
    %194 = tpu.matmul %192, %193, %cst_79 {dimension_numbers = #tpu.dot_dimension_numbers<[1], [0], [0], [1], [0, 0, 1, 1], [], []>} : vector<8x128xbf16>, vector<128x512xbf16>, vector<8x512xf32> -> vector<8x512xf32>
    %195 = arith.addf %191, %194 : vector<8x512xf32>
    %196 = vector.extract_strided_slice %195 {offsets = [0, 0], sizes = [8, 128], strides = [1, 1]} : vector<8x512xf32> to vector<8x128xf32>
    %cst_80 = arith.constant 5.000000e-01 : f32
    %197 = vector.broadcast %cst_80 : f32 to vector<8x128xf32>
    %198 = arith.mulf %197, %196 : vector<8x128xf32>
    %199 = math.tanh %198 : vector<8x128xf32>
    %cst_81 = arith.constant 1.000000e+00 : f32
    %200 = vector.broadcast %cst_81 : f32 to vector<8x128xf32>
    %201 = arith.addf %199, %200 : vector<8x128xf32>
    %cst_82 = arith.constant 5.000000e-01 : f32
    %202 = vector.broadcast %cst_82 : f32 to vector<8x128xf32>
    %203 = arith.mulf %202, %201 : vector<8x128xf32>
    %204 = vector.extract_strided_slice %195 {offsets = [0, 128], sizes = [8, 128], strides = [1, 1]} : vector<8x512xf32> to vector<8x128xf32>
    %cst_83 = arith.constant 5.000000e-01 : f32
    %205 = vector.broadcast %cst_83 : f32 to vector<8x128xf32>
    %206 = arith.mulf %205, %204 : vector<8x128xf32>
    %207 = math.tanh %206 : vector<8x128xf32>
    %cst_84 = arith.constant 1.000000e+00 : f32
    %208 = vector.broadcast %cst_84 : f32 to vector<8x128xf32>
    %209 = arith.addf %207, %208 : vector<8x128xf32>
    %cst_85 = arith.constant 5.000000e-01 : f32
    %210 = vector.broadcast %cst_85 : f32 to vector<8x128xf32>
    %211 = arith.mulf %210, %209 : vector<8x128xf32>
    %212 = vector.extract_strided_slice %195 {offsets = [0, 256], sizes = [8, 128], strides = [1, 1]} : vector<8x512xf32> to vector<8x128xf32>
    %213 = math.tanh %212 : vector<8x128xf32>
    %214 = vector.extract_strided_slice %195 {offsets = [0, 384], sizes = [8, 128], strides = [1, 1]} : vector<8x512xf32> to vector<8x128xf32>
    %cst_86 = arith.constant 5.000000e-01 : f32
    %215 = vector.broadcast %cst_86 : f32 to vector<8x128xf32>
    %216 = arith.mulf %215, %214 : vector<8x128xf32>
    %217 = math.tanh %216 : vector<8x128xf32>
    %cst_87 = arith.constant 1.000000e+00 : f32
    %218 = vector.broadcast %cst_87 : f32 to vector<8x128xf32>
    %219 = arith.addf %217, %218 : vector<8x128xf32>
    %cst_88 = arith.constant 5.000000e-01 : f32
    %220 = vector.broadcast %cst_88 : f32 to vector<8x128xf32>
    %221 = arith.mulf %220, %219 : vector<8x128xf32>
    %222 = arith.mulf %211, %180 : vector<8x128xf32>
    %223 = arith.mulf %203, %213 : vector<8x128xf32>
    %224 = arith.addf %222, %223 : vector<8x128xf32>
    %225 = math.tanh %224 : vector<8x128xf32>
    %226 = arith.mulf %221, %225 : vector<8x128xf32>
    %227 = arith.truncf %226 : vector<8x128xf32> to vector<8x128xbf16>
    %228 = arith.index_cast %c4_i32 : i32 to index
    %c0_89 = arith.constant 0 : index
    %c0_90 = arith.constant 0 : index
    %229 = vector.load %arg11[%228, %c0_89, %c0_90] : memref<8x8x128xbf16, #tpu.memory_space<vmem>>, vector<1x8x128xbf16>
    %230 = vector.shape_cast %229 : vector<1x8x128xbf16> to vector<8x128xbf16>
    %231 = vector.shape_cast %227 : vector<8x128xbf16> to vector<1x8x128xbf16>
    tpu.vector_store %arg11[%228, %c0_89, %c0_90], %231 {strides = array<i32>} : memref<8x8x128xbf16, #tpu.memory_space<vmem>>, vector<1x8x128xbf16>,
    %c5_i32 = arith.constant 5 : i32
    %232 = arith.index_cast %c5_i32 : i32 to index
    %c0_91 = arith.constant 0 : index
    %c0_92 = arith.constant 0 : index
    %233 = vector.load %arg10[%232, %c0_91, %c0_92] : memref<8x8x512xbf16, #tpu.memory_space<vmem>>, vector<1x8x512xbf16>
    %234 = vector.shape_cast %233 : vector<1x8x512xbf16> to vector<8x512xbf16>
    %235 = arith.extf %234 : vector<8x512xbf16> to vector<8x512xf32>
    %236 = arith.truncf %226 : vector<8x128xf32> to vector<8x128xbf16>
    %c0_93 = arith.constant 0 : index
    %c0_94 = arith.constant 0 : index
    %237 = vector.load %arg2[%c0_93, %c0_94] : memref<128x512xbf16, #tpu.memory_space<vmem>>, vector<128x512xbf16>
    %cst_95 = arith.constant dense<0.000000e+00> : vector<8x512xf32>
    %238 = tpu.matmul %236, %237, %cst_95 {dimension_numbers = #tpu.dot_dimension_numbers<[1], [0], [0], [1], [0, 0, 1, 1], [], []>} : vector<8x128xbf16>, vector<128x512xbf16>, vector<8x512xf32> -> vector<8x512xf32>
    %239 = arith.addf %235, %238 : vector<8x512xf32>
    %240 = vector.extract_strided_slice %239 {offsets = [0, 0], sizes = [8, 128], strides = [1, 1]} : vector<8x512xf32> to vector<8x128xf32>
    %cst_96 = arith.constant 5.000000e-01 : f32
    %241 = vector.broadcast %cst_96 : f32 to vector<8x128xf32>
    %242 = arith.mulf %241, %240 : vector<8x128xf32>
    %243 = math.tanh %242 : vector<8x128xf32>
    %cst_97 = arith.constant 1.000000e+00 : f32
    %244 = vector.broadcast %cst_97 : f32 to vector<8x128xf32>
    %245 = arith.addf %243, %244 : vector<8x128xf32>
    %cst_98 = arith.constant 5.000000e-01 : f32
    %246 = vector.broadcast %cst_98 : f32 to vector<8x128xf32>
    %247 = arith.mulf %246, %245 : vector<8x128xf32>
    %248 = vector.extract_strided_slice %239 {offsets = [0, 128], sizes = [8, 128], strides = [1, 1]} : vector<8x512xf32> to vector<8x128xf32>
    %cst_99 = arith.constant 5.000000e-01 : f32
    %249 = vector.broadcast %cst_99 : f32 to vector<8x128xf32>
    %250 = arith.mulf %249, %248 : vector<8x128xf32>
    %251 = math.tanh %250 : vector<8x128xf32>
    %cst_100 = arith.constant 1.000000e+00 : f32
    %252 = vector.broadcast %cst_100 : f32 to vector<8x128xf32>
    %253 = arith.addf %251, %252 : vector<8x128xf32>
    %cst_101 = arith.constant 5.000000e-01 : f32
    %254 = vector.broadcast %cst_101 : f32 to vector<8x128xf32>
    %255 = arith.mulf %254, %253 : vector<8x128xf32>
    %256 = vector.extract_strided_slice %239 {offsets = [0, 256], sizes = [8, 128], strides = [1, 1]} : vector<8x512xf32> to vector<8x128xf32>
    %257 = math.tanh %256 : vector<8x128xf32>
    %258 = vector.extract_strided_slice %239 {offsets = [0, 384], sizes = [8, 128], strides = [1, 1]} : vector<8x512xf32> to vector<8x128xf32>
    %cst_102 = arith.constant 5.000000e-01 : f32
    %259 = vector.broadcast %cst_102 : f32 to vector<8x128xf32>
    %260 = arith.mulf %259, %258 : vector<8x128xf32>
    %261 = math.tanh %260 : vector<8x128xf32>
    %cst_103 = arith.constant 1.000000e+00 : f32
    %262 = vector.broadcast %cst_103 : f32 to vector<8x128xf32>
    %263 = arith.addf %261, %262 : vector<8x128xf32>
    %cst_104 = arith.constant 5.000000e-01 : f32
    %264 = vector.broadcast %cst_104 : f32 to vector<8x128xf32>
    %265 = arith.mulf %264, %263 : vector<8x128xf32>
    %266 = arith.mulf %255, %224 : vector<8x128xf32>
    %267 = arith.mulf %247, %257 : vector<8x128xf32>
    %268 = arith.addf %266, %267 : vector<8x128xf32>
    %269 = math.tanh %268 : vector<8x128xf32>
    %270 = arith.mulf %265, %269 : vector<8x128xf32>
    %271 = arith.truncf %270 : vector<8x128xf32> to vector<8x128xbf16>
    %272 = arith.index_cast %c5_i32 : i32 to index
    %c0_105 = arith.constant 0 : index
    %c0_106 = arith.constant 0 : index
    %273 = vector.load %arg11[%272, %c0_105, %c0_106] : memref<8x8x128xbf16, #tpu.memory_space<vmem>>, vector<1x8x128xbf16>
    %274 = vector.shape_cast %273 : vector<1x8x128xbf16> to vector<8x128xbf16>
    %275 = vector.shape_cast %271 : vector<8x128xbf16> to vector<1x8x128xbf16>
    tpu.vector_store %arg11[%272, %c0_105, %c0_106], %275 {strides = array<i32>} : memref<8x8x128xbf16, #tpu.memory_space<vmem>>, vector<1x8x128xbf16>,
    %c6_i32 = arith.constant 6 : i32
    %276 = arith.index_cast %c6_i32 : i32 to index
    %c0_107 = arith.constant 0 : index
    %c0_108 = arith.constant 0 : index
    %277 = vector.load %arg10[%276, %c0_107, %c0_108] : memref<8x8x512xbf16, #tpu.memory_space<vmem>>, vector<1x8x512xbf16>
    %278 = vector.shape_cast %277 : vector<1x8x512xbf16> to vector<8x512xbf16>
    %279 = arith.extf %278 : vector<8x512xbf16> to vector<8x512xf32>
    %280 = arith.truncf %270 : vector<8x128xf32> to vector<8x128xbf16>
    %c0_109 = arith.constant 0 : index
    %c0_110 = arith.constant 0 : index
    %281 = vector.load %arg2[%c0_109, %c0_110] : memref<128x512xbf16, #tpu.memory_space<vmem>>, vector<128x512xbf16>
    %cst_111 = arith.constant dense<0.000000e+00> : vector<8x512xf32>
    %282 = tpu.matmul %280, %281, %cst_111 {dimension_numbers = #tpu.dot_dimension_numbers<[1], [0], [0], [1], [0, 0, 1, 1], [], []>} : vector<8x128xbf16>, vector<128x512xbf16>, vector<8x512xf32> -> vector<8x512xf32>
    %283 = arith.addf %279, %282 : vector<8x512xf32>
    %284 = vector.extract_strided_slice %283 {offsets = [0, 0], sizes = [8, 128], strides = [1, 1]} : vector<8x512xf32> to vector<8x128xf32>
    %cst_112 = arith.constant 5.000000e-01 : f32
    %285 = vector.broadcast %cst_112 : f32 to vector<8x128xf32>
    %286 = arith.mulf %285, %284 : vector<8x128xf32>
    %287 = math.tanh %286 : vector<8x128xf32>
    %cst_113 = arith.constant 1.000000e+00 : f32
    %288 = vector.broadcast %cst_113 : f32 to vector<8x128xf32>
    %289 = arith.addf %287, %288 : vector<8x128xf32>
    %cst_114 = arith.constant 5.000000e-01 : f32
    %290 = vector.broadcast %cst_114 : f32 to vector<8x128xf32>
    %291 = arith.mulf %290, %289 : vector<8x128xf32>
    %292 = vector.extract_strided_slice %283 {offsets = [0, 128], sizes = [8, 128], strides = [1, 1]} : vector<8x512xf32> to vector<8x128xf32>
    %cst_115 = arith.constant 5.000000e-01 : f32
    %293 = vector.broadcast %cst_115 : f32 to vector<8x128xf32>
    %294 = arith.mulf %293, %292 : vector<8x128xf32>
    %295 = math.tanh %294 : vector<8x128xf32>
    %cst_116 = arith.constant 1.000000e+00 : f32
    %296 = vector.broadcast %cst_116 : f32 to vector<8x128xf32>
    %297 = arith.addf %295, %296 : vector<8x128xf32>
    %cst_117 = arith.constant 5.000000e-01 : f32
    %298 = vector.broadcast %cst_117 : f32 to vector<8x128xf32>
    %299 = arith.mulf %298, %297 : vector<8x128xf32>
    %300 = vector.extract_strided_slice %283 {offsets = [0, 256], sizes = [8, 128], strides = [1, 1]} : vector<8x512xf32> to vector<8x128xf32>
    %301 = math.tanh %300 : vector<8x128xf32>
    %302 = vector.extract_strided_slice %283 {offsets = [0, 384], sizes = [8, 128], strides = [1, 1]} : vector<8x512xf32> to vector<8x128xf32>
    %cst_118 = arith.constant 5.000000e-01 : f32
    %303 = vector.broadcast %cst_118 : f32 to vector<8x128xf32>
    %304 = arith.mulf %303, %302 : vector<8x128xf32>
    %305 = math.tanh %304 : vector<8x128xf32>
    %cst_119 = arith.constant 1.000000e+00 : f32
    %306 = vector.broadcast %cst_119 : f32 to vector<8x128xf32>
    %307 = arith.addf %305, %306 : vector<8x128xf32>
    %cst_120 = arith.constant 5.000000e-01 : f32
    %308 = vector.broadcast %cst_120 : f32 to vector<8x128xf32>
    %309 = arith.mulf %308, %307 : vector<8x128xf32>
    %310 = arith.mulf %299, %268 : vector<8x128xf32>
    %311 = arith.mulf %291, %301 : vector<8x128xf32>
    %312 = arith.addf %310, %311 : vector<8x128xf32>
    %313 = math.tanh %312 : vector<8x128xf32>
    %314 = arith.mulf %309, %313 : vector<8x128xf32>
    %315 = arith.truncf %314 : vector<8x128xf32> to vector<8x128xbf16>
    %316 = arith.index_cast %c6_i32 : i32 to index
    %c0_121 = arith.constant 0 : index
    %c0_122 = arith.constant 0 : index
    %317 = vector.load %arg11[%316, %c0_121, %c0_122] : memref<8x8x128xbf16, #tpu.memory_space<vmem>>, vector<1x8x128xbf16>
    %318 = vector.shape_cast %317 : vector<1x8x128xbf16> to vector<8x128xbf16>
    %319 = vector.shape_cast %315 : vector<8x128xbf16> to vector<1x8x128xbf16>
    tpu.vector_store %arg11[%316, %c0_121, %c0_122], %319 {strides = array<i32>} : memref<8x8x128xbf16, #tpu.memory_space<vmem>>, vector<1x8x128xbf16>,
    %c7_i32 = arith.constant 7 : i32
    %320 = arith.index_cast %c7_i32 : i32 to index
    %c0_123 = arith.constant 0 : index
    %c0_124 = arith.constant 0 : index
    %321 = vector.load %arg10[%320, %c0_123, %c0_124] : memref<8x8x512xbf16, #tpu.memory_space<vmem>>, vector<1x8x512xbf16>
    %322 = vector.shape_cast %321 : vector<1x8x512xbf16> to vector<8x512xbf16>
    %323 = arith.extf %322 : vector<8x512xbf16> to vector<8x512xf32>
    %324 = arith.truncf %314 : vector<8x128xf32> to vector<8x128xbf16>
    %c0_125 = arith.constant 0 : index
    %c0_126 = arith.constant 0 : index
    %325 = vector.load %arg2[%c0_125, %c0_126] : memref<128x512xbf16, #tpu.memory_space<vmem>>, vector<128x512xbf16>
    %cst_127 = arith.constant dense<0.000000e+00> : vector<8x512xf32>
    %326 = tpu.matmul %324, %325, %cst_127 {dimension_numbers = #tpu.dot_dimension_numbers<[1], [0], [0], [1], [0, 0, 1, 1], [], []>} : vector<8x128xbf16>, vector<128x512xbf16>, vector<8x512xf32> -> vector<8x512xf32>
    %327 = arith.addf %323, %326 : vector<8x512xf32>
    %328 = vector.extract_strided_slice %327 {offsets = [0, 0], sizes = [8, 128], strides = [1, 1]} : vector<8x512xf32> to vector<8x128xf32>
    %cst_128 = arith.constant 5.000000e-01 : f32
    %329 = vector.broadcast %cst_128 : f32 to vector<8x128xf32>
    %330 = arith.mulf %329, %328 : vector<8x128xf32>
    %331 = math.tanh %330 : vector<8x128xf32>
    %cst_129 = arith.constant 1.000000e+00 : f32
    %332 = vector.broadcast %cst_129 : f32 to vector<8x128xf32>
    %333 = arith.addf %331, %332 : vector<8x128xf32>
    %cst_130 = arith.constant 5.000000e-01 : f32
    %334 = vector.broadcast %cst_130 : f32 to vector<8x128xf32>
    %335 = arith.mulf %334, %333 : vector<8x128xf32>
    %336 = vector.extract_strided_slice %327 {offsets = [0, 128], sizes = [8, 128], strides = [1, 1]} : vector<8x512xf32> to vector<8x128xf32>
    %cst_131 = arith.constant 5.000000e-01 : f32
    %337 = vector.broadcast %cst_131 : f32 to vector<8x128xf32>
    %338 = arith.mulf %337, %336 : vector<8x128xf32>
    %339 = math.tanh %338 : vector<8x128xf32>
    %cst_132 = arith.constant 1.000000e+00 : f32
    %340 = vector.broadcast %cst_132 : f32 to vector<8x128xf32>
    %341 = arith.addf %339, %340 : vector<8x128xf32>
    %cst_133 = arith.constant 5.000000e-01 : f32
    %342 = vector.broadcast %cst_133 : f32 to vector<8x128xf32>
    %343 = arith.mulf %342, %341 : vector<8x128xf32>
    %344 = vector.extract_strided_slice %327 {offsets = [0, 256], sizes = [8, 128], strides = [1, 1]} : vector<8x512xf32> to vector<8x128xf32>
    %345 = math.tanh %344 : vector<8x128xf32>
    %346 = vector.extract_strided_slice %327 {offsets = [0, 384], sizes = [8, 128], strides = [1, 1]} : vector<8x512xf32> to vector<8x128xf32>
    %cst_134 = arith.constant 5.000000e-01 : f32
    %347 = vector.broadcast %cst_134 : f32 to vector<8x128xf32>
    %348 = arith.mulf %347, %346 : vector<8x128xf32>
    %349 = math.tanh %348 : vector<8x128xf32>
    %cst_135 = arith.constant 1.000000e+00 : f32
    %350 = vector.broadcast %cst_135 : f32 to vector<8x128xf32>
    %351 = arith.addf %349, %350 : vector<8x128xf32>
    %cst_136 = arith.constant 5.000000e-01 : f32
    %352 = vector.broadcast %cst_136 : f32 to vector<8x128xf32>
    %353 = arith.mulf %352, %351 : vector<8x128xf32>
    %354 = arith.mulf %343, %312 : vector<8x128xf32>
    %355 = arith.mulf %335, %345 : vector<8x128xf32>
    %356 = arith.addf %354, %355 : vector<8x128xf32>
    %357 = math.tanh %356 : vector<8x128xf32>
    %358 = arith.mulf %353, %357 : vector<8x128xf32>
    %359 = arith.truncf %358 : vector<8x128xf32> to vector<8x128xbf16>
    %360 = arith.index_cast %c7_i32 : i32 to index
    %c0_137 = arith.constant 0 : index
    %c0_138 = arith.constant 0 : index
    %361 = vector.load %arg11[%360, %c0_137, %c0_138] : memref<8x8x128xbf16, #tpu.memory_space<vmem>>, vector<1x8x128xbf16>
    %362 = vector.shape_cast %361 : vector<1x8x128xbf16> to vector<8x128xbf16>
    %363 = vector.shape_cast %359 : vector<8x128xbf16> to vector<1x8x128xbf16>
    tpu.vector_store %arg11[%360, %c0_137, %c0_138], %363 {strides = array<i32>} : memref<8x8x128xbf16, #tpu.memory_space<vmem>>, vector<1x8x128xbf16>,
    %c8_i32 = arith.constant 8 : i32
    %c0_139 = arith.constant 0 : index
    %c0_140 = arith.constant 0 : index
    %c0_141 = arith.constant 0 : index
    %364 = vector.load %arg11[%c0_139, %c0_140, %c0_141] : memref<8x8x128xbf16, #tpu.memory_space<vmem>>, vector<8x8x128xbf16>
    %365 = vector.shape_cast %364 : vector<8x8x128xbf16> to vector<64x128xbf16>
    %c0_142 = arith.constant 0 : index
    %c0_143 = arith.constant 0 : index
    %366 = vector.load %arg4[%c0_142, %c0_143] : memref<128x512xbf16, #tpu.memory_space<vmem>>, vector<128x512xbf16>
    %cst_144 = arith.constant dense<0.000000e+00> : vector<64x512xf32>
    %367 = tpu.matmul %365, %366, %cst_144 {dimension_numbers = #tpu.dot_dimension_numbers<[1], [0], [0], [1], [0, 0, 1, 1], [], []>} : vector<64x128xbf16>, vector<128x512xbf16>, vector<64x512xf32> -> vector<64x512xf32>
    %c0_145 = arith.constant 0 : index
    %c0_146 = arith.constant 0 : index
    %368 = vector.load %arg6[%c0_145, %c0_146] : memref<1x512xf32, #tpu.memory_space<vmem>>, vector<1x512xf32>
    %369 = vector.broadcast %368 : vector<1x512xf32> to vector<64x512xf32>
    %370 = arith.addf %367, %369 : vector<64x512xf32>
    %371 = vector.shape_cast %370 : vector<64x512xf32> to vector<8x8x512xf32>
    %372 = arith.truncf %371 : vector<8x8x512xf32> to vector<8x8x512xbf16>
    %c0_147 = arith.constant 0 : index
    %c0_148 = arith.constant 0 : index
    %c0_149 = arith.constant 0 : index
    %373 = vector.load %arg10[%c0_147, %c0_148, %c0_149] : memref<8x8x512xbf16, #tpu.memory_space<vmem>>, vector<8x8x512xbf16>
    tpu.vector_store %arg10[%c0_147, %c0_148, %c0_149], %372 {strides = array<i32>} : memref<8x8x512xbf16, #tpu.memory_space<vmem>>, vector<8x8x512xbf16>,
    %cst_150 = arith.constant 0.000000e+00 : f32
    %374 = vector.broadcast %cst_150 : f32 to vector<8x128xf32>
    %cst_151 = arith.constant 0.000000e+00 : f32
    %375 = vector.broadcast %cst_151 : f32 to vector<8x128xf32>
    %c0_i32_152 = arith.constant 0 : i32
    %376 = arith.index_cast %c0_i32_152 : i32 to index
    %c0_153 = arith.constant 0 : index
    %c0_154 = arith.constant 0 : index
    %377 = vector.load %arg10[%376, %c0_153, %c0_154] : memref<8x8x512xbf16, #tpu.memory_space<vmem>>, vector<1x8x512xbf16>
    %378 = vector.shape_cast %377 : vector<1x8x512xbf16> to vector<8x512xbf16>
    %379 = arith.extf %378 : vector<8x512xbf16> to vector<8x512xf32>
    %380 = arith.truncf %374 : vector<8x128xf32> to vector<8x128xbf16>
    %c0_155 = arith.constant 0 : index
    %c0_156 = arith.constant 0 : index
    %381 = vector.load %arg5[%c0_155, %c0_156] : memref<128x512xbf16, #tpu.memory_space<vmem>>, vector<128x512xbf16>
    %cst_157 = arith.constant dense<0.000000e+00> : vector<8x512xf32>
    %382 = tpu.matmul %380, %381, %cst_157 {dimension_numbers = #tpu.dot_dimension_numbers<[1], [0], [0], [1], [0, 0, 1, 1], [], []>} : vector<8x128xbf16>, vector<128x512xbf16>, vector<8x512xf32> -> vector<8x512xf32>
    %383 = arith.addf %379, %382 : vector<8x512xf32>
    %384 = vector.extract_strided_slice %383 {offsets = [0, 0], sizes = [8, 128], strides = [1, 1]} : vector<8x512xf32> to vector<8x128xf32>
    %cst_158 = arith.constant 5.000000e-01 : f32
    %385 = vector.broadcast %cst_158 : f32 to vector<8x128xf32>
    %386 = arith.mulf %385, %384 : vector<8x128xf32>
    %387 = math.tanh %386 : vector<8x128xf32>
    %cst_159 = arith.constant 1.000000e+00 : f32
    %388 = vector.broadcast %cst_159 : f32 to vector<8x128xf32>
    %389 = arith.addf %387, %388 : vector<8x128xf32>
    %cst_160 = arith.constant 5.000000e-01 : f32
    %390 = vector.broadcast %cst_160 : f32 to vector<8x128xf32>
    %391 = arith.mulf %390, %389 : vector<8x128xf32>
    %392 = vector.extract_strided_slice %383 {offsets = [0, 128], sizes = [8, 128], strides = [1, 1]} : vector<8x512xf32> to vector<8x128xf32>
    %cst_161 = arith.constant 5.000000e-01 : f32
    %393 = vector.broadcast %cst_161 : f32 to vector<8x128xf32>
    %394 = arith.mulf %393, %392 : vector<8x128xf32>
    %395 = math.tanh %394 : vector<8x128xf32>
    %cst_162 = arith.constant 1.000000e+00 : f32
    %396 = vector.broadcast %cst_162 : f32 to vector<8x128xf32>
    %397 = arith.addf %395, %396 : vector<8x128xf32>
    %cst_163 = arith.constant 5.000000e-01 : f32
    %398 = vector.broadcast %cst_163 : f32 to vector<8x128xf32>
    %399 = arith.mulf %398, %397 : vector<8x128xf32>
    %400 = vector.extract_strided_slice %383 {offsets = [0, 256], sizes = [8, 128], strides = [1, 1]} : vector<8x512xf32> to vector<8x128xf32>
    %401 = math.tanh %400 : vector<8x128xf32>
    %402 = vector.extract_strided_slice %383 {offsets = [0, 384], sizes = [8, 128], strides = [1, 1]} : vector<8x512xf32> to vector<8x128xf32>
    %cst_164 = arith.constant 5.000000e-01 : f32
    %403 = vector.broadcast %cst_164 : f32 to vector<8x128xf32>
    %404 = arith.mulf %403, %402 : vector<8x128xf32>
    %405 = math.tanh %404 : vector<8x128xf32>
    %cst_165 = arith.constant 1.000000e+00 : f32
    %406 = vector.broadcast %cst_165 : f32 to vector<8x128xf32>
    %407 = arith.addf %405, %406 : vector<8x128xf32>
    %cst_166 = arith.constant 5.000000e-01 : f32
    %408 = vector.broadcast %cst_166 : f32 to vector<8x128xf32>
    %409 = arith.mulf %408, %407 : vector<8x128xf32>
    %410 = arith.mulf %399, %375 : vector<8x128xf32>
    %411 = arith.mulf %391, %401 : vector<8x128xf32>
    %412 = arith.addf %410, %411 : vector<8x128xf32>
    %413 = math.tanh %412 : vector<8x128xf32>
    %414 = arith.mulf %409, %413 : vector<8x128xf32>
    %c1_i32_167 = arith.constant 1 : i32
    %415 = arith.index_cast %c1_i32_167 : i32 to index
    %c0_168 = arith.constant 0 : index
    %c0_169 = arith.constant 0 : index
    %416 = vector.load %arg10[%415, %c0_168, %c0_169] : memref<8x8x512xbf16, #tpu.memory_space<vmem>>, vector<1x8x512xbf16>
    %417 = vector.shape_cast %416 : vector<1x8x512xbf16> to vector<8x512xbf16>
    %418 = arith.extf %417 : vector<8x512xbf16> to vector<8x512xf32>
    %419 = arith.truncf %414 : vector<8x128xf32> to vector<8x128xbf16>
    %c0_170 = arith.constant 0 : index
    %c0_171 = arith.constant 0 : index
    %420 = vector.load %arg5[%c0_170, %c0_171] : memref<128x512xbf16, #tpu.memory_space<vmem>>, vector<128x512xbf16>
    %cst_172 = arith.constant dense<0.000000e+00> : vector<8x512xf32>
    %421 = tpu.matmul %419, %420, %cst_172 {dimension_numbers = #tpu.dot_dimension_numbers<[1], [0], [0], [1], [0, 0, 1, 1], [], []>} : vector<8x128xbf16>, vector<128x512xbf16>, vector<8x512xf32> -> vector<8x512xf32>
    %422 = arith.addf %418, %421 : vector<8x512xf32>
    %423 = vector.extract_strided_slice %422 {offsets = [0, 0], sizes = [8, 128], strides = [1, 1]} : vector<8x512xf32> to vector<8x128xf32>
    %cst_173 = arith.constant 5.000000e-01 : f32
    %424 = vector.broadcast %cst_173 : f32 to vector<8x128xf32>
    %425 = arith.mulf %424, %423 : vector<8x128xf32>
    %426 = math.tanh %425 : vector<8x128xf32>
    %cst_174 = arith.constant 1.000000e+00 : f32
    %427 = vector.broadcast %cst_174 : f32 to vector<8x128xf32>
    %428 = arith.addf %426, %427 : vector<8x128xf32>
    %cst_175 = arith.constant 5.000000e-01 : f32
    %429 = vector.broadcast %cst_175 : f32 to vector<8x128xf32>
    %430 = arith.mulf %429, %428 : vector<8x128xf32>
    %431 = vector.extract_strided_slice %422 {offsets = [0, 128], sizes = [8, 128], strides = [1, 1]} : vector<8x512xf32> to vector<8x128xf32>
    %cst_176 = arith.constant 5.000000e-01 : f32
    %432 = vector.broadcast %cst_176 : f32 to vector<8x128xf32>
    %433 = arith.mulf %432, %431 : vector<8x128xf32>
    %434 = math.tanh %433 : vector<8x128xf32>
    %cst_177 = arith.constant 1.000000e+00 : f32
    %435 = vector.broadcast %cst_177 : f32 to vector<8x128xf32>
    %436 = arith.addf %434, %435 : vector<8x128xf32>
    %cst_178 = arith.constant 5.000000e-01 : f32
    %437 = vector.broadcast %cst_178 : f32 to vector<8x128xf32>
    %438 = arith.mulf %437, %436 : vector<8x128xf32>
    %439 = vector.extract_strided_slice %422 {offsets = [0, 256], sizes = [8, 128], strides = [1, 1]} : vector<8x512xf32> to vector<8x128xf32>
    %440 = math.tanh %439 : vector<8x128xf32>
    %441 = vector.extract_strided_slice %422 {offsets = [0, 384], sizes = [8, 128], strides = [1, 1]} : vector<8x512xf32> to vector<8x128xf32>
    %cst_179 = arith.constant 5.000000e-01 : f32
    %442 = vector.broadcast %cst_179 : f32 to vector<8x128xf32>
    %443 = arith.mulf %442, %441 : vector<8x128xf32>
    %444 = math.tanh %443 : vector<8x128xf32>
    %cst_180 = arith.constant 1.000000e+00 : f32
    %445 = vector.broadcast %cst_180 : f32 to vector<8x128xf32>
    %446 = arith.addf %444, %445 : vector<8x128xf32>
    %cst_181 = arith.constant 5.000000e-01 : f32
    %447 = vector.broadcast %cst_181 : f32 to vector<8x128xf32>
    %448 = arith.mulf %447, %446 : vector<8x128xf32>
    %449 = arith.mulf %438, %412 : vector<8x128xf32>
    %450 = arith.mulf %430, %440 : vector<8x128xf32>
    %451 = arith.addf %449, %450 : vector<8x128xf32>
    %452 = math.tanh %451 : vector<8x128xf32>
    %453 = arith.mulf %448, %452 : vector<8x128xf32>
    %c2_i32_182 = arith.constant 2 : i32
    %454 = arith.index_cast %c2_i32_182 : i32 to index
    %c0_183 = arith.constant 0 : index
    %c0_184 = arith.constant 0 : index
    %455 = vector.load %arg10[%454, %c0_183, %c0_184] : memref<8x8x512xbf16, #tpu.memory_space<vmem>>, vector<1x8x512xbf16>
    %456 = vector.shape_cast %455 : vector<1x8x512xbf16> to vector<8x512xbf16>
    %457 = arith.extf %456 : vector<8x512xbf16> to vector<8x512xf32>
    %458 = arith.truncf %453 : vector<8x128xf32> to vector<8x128xbf16>
    %c0_185 = arith.constant 0 : index
    %c0_186 = arith.constant 0 : index
    %459 = vector.load %arg5[%c0_185, %c0_186] : memref<128x512xbf16, #tpu.memory_space<vmem>>, vector<128x512xbf16>
    %cst_187 = arith.constant dense<0.000000e+00> : vector<8x512xf32>
    %460 = tpu.matmul %458, %459, %cst_187 {dimension_numbers = #tpu.dot_dimension_numbers<[1], [0], [0], [1], [0, 0, 1, 1], [], []>} : vector<8x128xbf16>, vector<128x512xbf16>, vector<8x512xf32> -> vector<8x512xf32>
    %461 = arith.addf %457, %460 : vector<8x512xf32>
    %462 = vector.extract_strided_slice %461 {offsets = [0, 0], sizes = [8, 128], strides = [1, 1]} : vector<8x512xf32> to vector<8x128xf32>
    %cst_188 = arith.constant 5.000000e-01 : f32
    %463 = vector.broadcast %cst_188 : f32 to vector<8x128xf32>
    %464 = arith.mulf %463, %462 : vector<8x128xf32>
    %465 = math.tanh %464 : vector<8x128xf32>
    %cst_189 = arith.constant 1.000000e+00 : f32
    %466 = vector.broadcast %cst_189 : f32 to vector<8x128xf32>
    %467 = arith.addf %465, %466 : vector<8x128xf32>
    %cst_190 = arith.constant 5.000000e-01 : f32
    %468 = vector.broadcast %cst_190 : f32 to vector<8x128xf32>
    %469 = arith.mulf %468, %467 : vector<8x128xf32>
    %470 = vector.extract_strided_slice %461 {offsets = [0, 128], sizes = [8, 128], strides = [1, 1]} : vector<8x512xf32> to vector<8x128xf32>
    %cst_191 = arith.constant 5.000000e-01 : f32
    %471 = vector.broadcast %cst_191 : f32 to vector<8x128xf32>
    %472 = arith.mulf %471, %470 : vector<8x128xf32>
    %473 = math.tanh %472 : vector<8x128xf32>
    %cst_192 = arith.constant 1.000000e+00 : f32
    %474 = vector.broadcast %cst_192 : f32 to vector<8x128xf32>
    %475 = arith.addf %473, %474 : vector<8x128xf32>
    %cst_193 = arith.constant 5.000000e-01 : f32
    %476 = vector.broadcast %cst_193 : f32 to vector<8x128xf32>
    %477 = arith.mulf %476, %475 : vector<8x128xf32>
    %478 = vector.extract_strided_slice %461 {offsets = [0, 256], sizes = [8, 128], strides = [1, 1]} : vector<8x512xf32> to vector<8x128xf32>
    %479 = math.tanh %478 : vector<8x128xf32>
    %480 = vector.extract_strided_slice %461 {offsets = [0, 384], sizes = [8, 128], strides = [1, 1]} : vector<8x512xf32> to vector<8x128xf32>
    %cst_194 = arith.constant 5.000000e-01 : f32
    %481 = vector.broadcast %cst_194 : f32 to vector<8x128xf32>
    %482 = arith.mulf %481, %480 : vector<8x128xf32>
    %483 = math.tanh %482 : vector<8x128xf32>
    %cst_195 = arith.constant 1.000000e+00 : f32
    %484 = vector.broadcast %cst_195 : f32 to vector<8x128xf32>
    %485 = arith.addf %483, %484 : vector<8x128xf32>
    %cst_196 = arith.constant 5.000000e-01 : f32
    %486 = vector.broadcast %cst_196 : f32 to vector<8x128xf32>
    %487 = arith.mulf %486, %485 : vector<8x128xf32>
    %488 = arith.mulf %477, %451 : vector<8x128xf32>
    %489 = arith.mulf %469, %479 : vector<8x128xf32>
    %490 = arith.addf %488, %489 : vector<8x128xf32>
    %491 = math.tanh %490 : vector<8x128xf32>
    %492 = arith.mulf %487, %491 : vector<8x128xf32>
    %c3_i32_197 = arith.constant 3 : i32
    %493 = arith.index_cast %c3_i32_197 : i32 to index
    %c0_198 = arith.constant 0 : index
    %c0_199 = arith.constant 0 : index
    %494 = vector.load %arg10[%493, %c0_198, %c0_199] : memref<8x8x512xbf16, #tpu.memory_space<vmem>>, vector<1x8x512xbf16>
    %495 = vector.shape_cast %494 : vector<1x8x512xbf16> to vector<8x512xbf16>
    %496 = arith.extf %495 : vector<8x512xbf16> to vector<8x512xf32>
    %497 = arith.truncf %492 : vector<8x128xf32> to vector<8x128xbf16>
    %c0_200 = arith.constant 0 : index
    %c0_201 = arith.constant 0 : index
    %498 = vector.load %arg5[%c0_200, %c0_201] : memref<128x512xbf16, #tpu.memory_space<vmem>>, vector<128x512xbf16>
    %cst_202 = arith.constant dense<0.000000e+00> : vector<8x512xf32>
    %499 = tpu.matmul %497, %498, %cst_202 {dimension_numbers = #tpu.dot_dimension_numbers<[1], [0], [0], [1], [0, 0, 1, 1], [], []>} : vector<8x128xbf16>, vector<128x512xbf16>, vector<8x512xf32> -> vector<8x512xf32>
    %500 = arith.addf %496, %499 : vector<8x512xf32>
    %501 = vector.extract_strided_slice %500 {offsets = [0, 0], sizes = [8, 128], strides = [1, 1]} : vector<8x512xf32> to vector<8x128xf32>
    %cst_203 = arith.constant 5.000000e-01 : f32
    %502 = vector.broadcast %cst_203 : f32 to vector<8x128xf32>
    %503 = arith.mulf %502, %501 : vector<8x128xf32>
    %504 = math.tanh %503 : vector<8x128xf32>
    %cst_204 = arith.constant 1.000000e+00 : f32
    %505 = vector.broadcast %cst_204 : f32 to vector<8x128xf32>
    %506 = arith.addf %504, %505 : vector<8x128xf32>
    %cst_205 = arith.constant 5.000000e-01 : f32
    %507 = vector.broadcast %cst_205 : f32 to vector<8x128xf32>
    %508 = arith.mulf %507, %506 : vector<8x128xf32>
    %509 = vector.extract_strided_slice %500 {offsets = [0, 128], sizes = [8, 128], strides = [1, 1]} : vector<8x512xf32> to vector<8x128xf32>
    %cst_206 = arith.constant 5.000000e-01 : f32
    %510 = vector.broadcast %cst_206 : f32 to vector<8x128xf32>
    %511 = arith.mulf %510, %509 : vector<8x128xf32>
    %512 = math.tanh %511 : vector<8x128xf32>
    %cst_207 = arith.constant 1.000000e+00 : f32
    %513 = vector.broadcast %cst_207 : f32 to vector<8x128xf32>
    %514 = arith.addf %512, %513 : vector<8x128xf32>
    %cst_208 = arith.constant 5.000000e-01 : f32
    %515 = vector.broadcast %cst_208 : f32 to vector<8x128xf32>
    %516 = arith.mulf %515, %514 : vector<8x128xf32>
    %517 = vector.extract_strided_slice %500 {offsets = [0, 256], sizes = [8, 128], strides = [1, 1]} : vector<8x512xf32> to vector<8x128xf32>
    %518 = math.tanh %517 : vector<8x128xf32>
    %519 = vector.extract_strided_slice %500 {offsets = [0, 384], sizes = [8, 128], strides = [1, 1]} : vector<8x512xf32> to vector<8x128xf32>
    %cst_209 = arith.constant 5.000000e-01 : f32
    %520 = vector.broadcast %cst_209 : f32 to vector<8x128xf32>
    %521 = arith.mulf %520, %519 : vector<8x128xf32>
    %522 = math.tanh %521 : vector<8x128xf32>
    %cst_210 = arith.constant 1.000000e+00 : f32
    %523 = vector.broadcast %cst_210 : f32 to vector<8x128xf32>
    %524 = arith.addf %522, %523 : vector<8x128xf32>
    %cst_211 = arith.constant 5.000000e-01 : f32
    %525 = vector.broadcast %cst_211 : f32 to vector<8x128xf32>
    %526 = arith.mulf %525, %524 : vector<8x128xf32>
    %527 = arith.mulf %516, %490 : vector<8x128xf32>
    %528 = arith.mulf %508, %518 : vector<8x128xf32>
    %529 = arith.addf %527, %528 : vector<8x128xf32>
    %530 = math.tanh %529 : vector<8x128xf32>
    %531 = arith.mulf %526, %530 : vector<8x128xf32>
    %c4_i32_212 = arith.constant 4 : i32
    %532 = arith.index_cast %c4_i32_212 : i32 to index
    %c0_213 = arith.constant 0 : index
    %c0_214 = arith.constant 0 : index
    %533 = vector.load %arg10[%532, %c0_213, %c0_214] : memref<8x8x512xbf16, #tpu.memory_space<vmem>>, vector<1x8x512xbf16>
    %534 = vector.shape_cast %533 : vector<1x8x512xbf16> to vector<8x512xbf16>
    %535 = arith.extf %534 : vector<8x512xbf16> to vector<8x512xf32>
    %536 = arith.truncf %531 : vector<8x128xf32> to vector<8x128xbf16>
    %c0_215 = arith.constant 0 : index
    %c0_216 = arith.constant 0 : index
    %537 = vector.load %arg5[%c0_215, %c0_216] : memref<128x512xbf16, #tpu.memory_space<vmem>>, vector<128x512xbf16>
    %cst_217 = arith.constant dense<0.000000e+00> : vector<8x512xf32>
    %538 = tpu.matmul %536, %537, %cst_217 {dimension_numbers = #tpu.dot_dimension_numbers<[1], [0], [0], [1], [0, 0, 1, 1], [], []>} : vector<8x128xbf16>, vector<128x512xbf16>, vector<8x512xf32> -> vector<8x512xf32>
    %539 = arith.addf %535, %538 : vector<8x512xf32>
    %540 = vector.extract_strided_slice %539 {offsets = [0, 0], sizes = [8, 128], strides = [1, 1]} : vector<8x512xf32> to vector<8x128xf32>
    %cst_218 = arith.constant 5.000000e-01 : f32
    %541 = vector.broadcast %cst_218 : f32 to vector<8x128xf32>
    %542 = arith.mulf %541, %540 : vector<8x128xf32>
    %543 = math.tanh %542 : vector<8x128xf32>
    %cst_219 = arith.constant 1.000000e+00 : f32
    %544 = vector.broadcast %cst_219 : f32 to vector<8x128xf32>
    %545 = arith.addf %543, %544 : vector<8x128xf32>
    %cst_220 = arith.constant 5.000000e-01 : f32
    %546 = vector.broadcast %cst_220 : f32 to vector<8x128xf32>
    %547 = arith.mulf %546, %545 : vector<8x128xf32>
    %548 = vector.extract_strided_slice %539 {offsets = [0, 128], sizes = [8, 128], strides = [1, 1]} : vector<8x512xf32> to vector<8x128xf32>
    %cst_221 = arith.constant 5.000000e-01 : f32
    %549 = vector.broadcast %cst_221 : f32 to vector<8x128xf32>
    %550 = arith.mulf %549, %548 : vector<8x128xf32>
    %551 = math.tanh %550 : vector<8x128xf32>
    %cst_222 = arith.constant 1.000000e+00 : f32
    %552 = vector.broadcast %cst_222 : f32 to vector<8x128xf32>
    %553 = arith.addf %551, %552 : vector<8x128xf32>
    %cst_223 = arith.constant 5.000000e-01 : f32
    %554 = vector.broadcast %cst_223 : f32 to vector<8x128xf32>
    %555 = arith.mulf %554, %553 : vector<8x128xf32>
    %556 = vector.extract_strided_slice %539 {offsets = [0, 256], sizes = [8, 128], strides = [1, 1]} : vector<8x512xf32> to vector<8x128xf32>
    %557 = math.tanh %556 : vector<8x128xf32>
    %558 = vector.extract_strided_slice %539 {offsets = [0, 384], sizes = [8, 128], strides = [1, 1]} : vector<8x512xf32> to vector<8x128xf32>
    %cst_224 = arith.constant 5.000000e-01 : f32
    %559 = vector.broadcast %cst_224 : f32 to vector<8x128xf32>
    %560 = arith.mulf %559, %558 : vector<8x128xf32>
    %561 = math.tanh %560 : vector<8x128xf32>
    %cst_225 = arith.constant 1.000000e+00 : f32
    %562 = vector.broadcast %cst_225 : f32 to vector<8x128xf32>
    %563 = arith.addf %561, %562 : vector<8x128xf32>
    %cst_226 = arith.constant 5.000000e-01 : f32
    %564 = vector.broadcast %cst_226 : f32 to vector<8x128xf32>
    %565 = arith.mulf %564, %563 : vector<8x128xf32>
    %566 = arith.mulf %555, %529 : vector<8x128xf32>
    %567 = arith.mulf %547, %557 : vector<8x128xf32>
    %568 = arith.addf %566, %567 : vector<8x128xf32>
    %569 = math.tanh %568 : vector<8x128xf32>
    %570 = arith.mulf %565, %569 : vector<8x128xf32>
    %c5_i32_227 = arith.constant 5 : i32
    %571 = arith.index_cast %c5_i32_227 : i32 to index
    %c0_228 = arith.constant 0 : index
    %c0_229 = arith.constant 0 : index
    %572 = vector.load %arg10[%571, %c0_228, %c0_229] : memref<8x8x512xbf16, #tpu.memory_space<vmem>>, vector<1x8x512xbf16>
    %573 = vector.shape_cast %572 : vector<1x8x512xbf16> to vector<8x512xbf16>
    %574 = arith.extf %573 : vector<8x512xbf16> to vector<8x512xf32>
    %575 = arith.truncf %570 : vector<8x128xf32> to vector<8x128xbf16>
    %c0_230 = arith.constant 0 : index
    %c0_231 = arith.constant 0 : index
    %576 = vector.load %arg5[%c0_230, %c0_231] : memref<128x512xbf16, #tpu.memory_space<vmem>>, vector<128x512xbf16>
    %cst_232 = arith.constant dense<0.000000e+00> : vector<8x512xf32>
    %577 = tpu.matmul %575, %576, %cst_232 {dimension_numbers = #tpu.dot_dimension_numbers<[1], [0], [0], [1], [0, 0, 1, 1], [], []>} : vector<8x128xbf16>, vector<128x512xbf16>, vector<8x512xf32> -> vector<8x512xf32>
    %578 = arith.addf %574, %577 : vector<8x512xf32>
    %579 = vector.extract_strided_slice %578 {offsets = [0, 0], sizes = [8, 128], strides = [1, 1]} : vector<8x512xf32> to vector<8x128xf32>
    %cst_233 = arith.constant 5.000000e-01 : f32
    %580 = vector.broadcast %cst_233 : f32 to vector<8x128xf32>
    %581 = arith.mulf %580, %579 : vector<8x128xf32>
    %582 = math.tanh %581 : vector<8x128xf32>
    %cst_234 = arith.constant 1.000000e+00 : f32
    %583 = vector.broadcast %cst_234 : f32 to vector<8x128xf32>
    %584 = arith.addf %582, %583 : vector<8x128xf32>
    %cst_235 = arith.constant 5.000000e-01 : f32
    %585 = vector.broadcast %cst_235 : f32 to vector<8x128xf32>
    %586 = arith.mulf %585, %584 : vector<8x128xf32>
    %587 = vector.extract_strided_slice %578 {offsets = [0, 128], sizes = [8, 128], strides = [1, 1]} : vector<8x512xf32> to vector<8x128xf32>
    %cst_236 = arith.constant 5.000000e-01 : f32
    %588 = vector.broadcast %cst_236 : f32 to vector<8x128xf32>
    %589 = arith.mulf %588, %587 : vector<8x128xf32>
    %590 = math.tanh %589 : vector<8x128xf32>
    %cst_237 = arith.constant 1.000000e+00 : f32
    %591 = vector.broadcast %cst_237 : f32 to vector<8x128xf32>
    %592 = arith.addf %590, %591 : vector<8x128xf32>
    %cst_238 = arith.constant 5.000000e-01 : f32
    %593 = vector.broadcast %cst_238 : f32 to vector<8x128xf32>
    %594 = arith.mulf %593, %592 : vector<8x128xf32>
    %595 = vector.extract_strided_slice %578 {offsets = [0, 256], sizes = [8, 128], strides = [1, 1]} : vector<8x512xf32> to vector<8x128xf32>
    %596 = math.tanh %595 : vector<8x128xf32>
    %597 = vector.extract_strided_slice %578 {offsets = [0, 384], sizes = [8, 128], strides = [1, 1]} : vector<8x512xf32> to vector<8x128xf32>
    %cst_239 = arith.constant 5.000000e-01 : f32
    %598 = vector.broadcast %cst_239 : f32 to vector<8x128xf32>
    %599 = arith.mulf %598, %597 : vector<8x128xf32>
    %600 = math.tanh %599 : vector<8x128xf32>
    %cst_240 = arith.constant 1.000000e+00 : f32
    %601 = vector.broadcast %cst_240 : f32 to vector<8x128xf32>
    %602 = arith.addf %600, %601 : vector<8x128xf32>
    %cst_241 = arith.constant 5.000000e-01 : f32
    %603 = vector.broadcast %cst_241 : f32 to vector<8x128xf32>
    %604 = arith.mulf %603, %602 : vector<8x128xf32>
    %605 = arith.mulf %594, %568 : vector<8x128xf32>
    %606 = arith.mulf %586, %596 : vector<8x128xf32>
    %607 = arith.addf %605, %606 : vector<8x128xf32>
    %608 = math.tanh %607 : vector<8x128xf32>
    %609 = arith.mulf %604, %608 : vector<8x128xf32>
    %c6_i32_242 = arith.constant 6 : i32
    %610 = arith.index_cast %c6_i32_242 : i32 to index
    %c0_243 = arith.constant 0 : index
    %c0_244 = arith.constant 0 : index
    %611 = vector.load %arg10[%610, %c0_243, %c0_244] : memref<8x8x512xbf16, #tpu.memory_space<vmem>>, vector<1x8x512xbf16>
    %612 = vector.shape_cast %611 : vector<1x8x512xbf16> to vector<8x512xbf16>
    %613 = arith.extf %612 : vector<8x512xbf16> to vector<8x512xf32>
    %614 = arith.truncf %609 : vector<8x128xf32> to vector<8x128xbf16>
    %c0_245 = arith.constant 0 : index
    %c0_246 = arith.constant 0 : index
    %615 = vector.load %arg5[%c0_245, %c0_246] : memref<128x512xbf16, #tpu.memory_space<vmem>>, vector<128x512xbf16>
    %cst_247 = arith.constant dense<0.000000e+00> : vector<8x512xf32>
    %616 = tpu.matmul %614, %615, %cst_247 {dimension_numbers = #tpu.dot_dimension_numbers<[1], [0], [0], [1], [0, 0, 1, 1], [], []>} : vector<8x128xbf16>, vector<128x512xbf16>, vector<8x512xf32> -> vector<8x512xf32>
    %617 = arith.addf %613, %616 : vector<8x512xf32>
    %618 = vector.extract_strided_slice %617 {offsets = [0, 0], sizes = [8, 128], strides = [1, 1]} : vector<8x512xf32> to vector<8x128xf32>
    %cst_248 = arith.constant 5.000000e-01 : f32
    %619 = vector.broadcast %cst_248 : f32 to vector<8x128xf32>
    %620 = arith.mulf %619, %618 : vector<8x128xf32>
    %621 = math.tanh %620 : vector<8x128xf32>
    %cst_249 = arith.constant 1.000000e+00 : f32
    %622 = vector.broadcast %cst_249 : f32 to vector<8x128xf32>
    %623 = arith.addf %621, %622 : vector<8x128xf32>
    %cst_250 = arith.constant 5.000000e-01 : f32
    %624 = vector.broadcast %cst_250 : f32 to vector<8x128xf32>
    %625 = arith.mulf %624, %623 : vector<8x128xf32>
    %626 = vector.extract_strided_slice %617 {offsets = [0, 128], sizes = [8, 128], strides = [1, 1]} : vector<8x512xf32> to vector<8x128xf32>
    %cst_251 = arith.constant 5.000000e-01 : f32
    %627 = vector.broadcast %cst_251 : f32 to vector<8x128xf32>
    %628 = arith.mulf %627, %626 : vector<8x128xf32>
    %629 = math.tanh %628 : vector<8x128xf32>
    %cst_252 = arith.constant 1.000000e+00 : f32
    %630 = vector.broadcast %cst_252 : f32 to vector<8x128xf32>
    %631 = arith.addf %629, %630 : vector<8x128xf32>
    %cst_253 = arith.constant 5.000000e-01 : f32
    %632 = vector.broadcast %cst_253 : f32 to vector<8x128xf32>
    %633 = arith.mulf %632, %631 : vector<8x128xf32>
    %634 = vector.extract_strided_slice %617 {offsets = [0, 256], sizes = [8, 128], strides = [1, 1]} : vector<8x512xf32> to vector<8x128xf32>
    %635 = math.tanh %634 : vector<8x128xf32>
    %636 = vector.extract_strided_slice %617 {offsets = [0, 384], sizes = [8, 128], strides = [1, 1]} : vector<8x512xf32> to vector<8x128xf32>
    %cst_254 = arith.constant 5.000000e-01 : f32
    %637 = vector.broadcast %cst_254 : f32 to vector<8x128xf32>
    %638 = arith.mulf %637, %636 : vector<8x128xf32>
    %639 = math.tanh %638 : vector<8x128xf32>
    %cst_255 = arith.constant 1.000000e+00 : f32
    %640 = vector.broadcast %cst_255 : f32 to vector<8x128xf32>
    %641 = arith.addf %639, %640 : vector<8x128xf32>
    %cst_256 = arith.constant 5.000000e-01 : f32
    %642 = vector.broadcast %cst_256 : f32 to vector<8x128xf32>
    %643 = arith.mulf %642, %641 : vector<8x128xf32>
    %644 = arith.mulf %633, %607 : vector<8x128xf32>
    %645 = arith.mulf %625, %635 : vector<8x128xf32>
    %646 = arith.addf %644, %645 : vector<8x128xf32>
    %647 = math.tanh %646 : vector<8x128xf32>
    %648 = arith.mulf %643, %647 : vector<8x128xf32>
    %c7_i32_257 = arith.constant 7 : i32
    %649 = arith.index_cast %c7_i32_257 : i32 to index
    %c0_258 = arith.constant 0 : index
    %c0_259 = arith.constant 0 : index
    %650 = vector.load %arg10[%649, %c0_258, %c0_259] : memref<8x8x512xbf16, #tpu.memory_space<vmem>>, vector<1x8x512xbf16>
    %651 = vector.shape_cast %650 : vector<1x8x512xbf16> to vector<8x512xbf16>
    %652 = arith.extf %651 : vector<8x512xbf16> to vector<8x512xf32>
    %653 = arith.truncf %648 : vector<8x128xf32> to vector<8x128xbf16>
    %c0_260 = arith.constant 0 : index
    %c0_261 = arith.constant 0 : index
    %654 = vector.load %arg5[%c0_260, %c0_261] : memref<128x512xbf16, #tpu.memory_space<vmem>>, vector<128x512xbf16>
    %cst_262 = arith.constant dense<0.000000e+00> : vector<8x512xf32>
    %655 = tpu.matmul %653, %654, %cst_262 {dimension_numbers = #tpu.dot_dimension_numbers<[1], [0], [0], [1], [0, 0, 1, 1], [], []>} : vector<8x128xbf16>, vector<128x512xbf16>, vector<8x512xf32> -> vector<8x512xf32>
    %656 = arith.addf %652, %655 : vector<8x512xf32>
    %657 = vector.extract_strided_slice %656 {offsets = [0, 0], sizes = [8, 128], strides = [1, 1]} : vector<8x512xf32> to vector<8x128xf32>
    %cst_263 = arith.constant 5.000000e-01 : f32
    %658 = vector.broadcast %cst_263 : f32 to vector<8x128xf32>
    %659 = arith.mulf %658, %657 : vector<8x128xf32>
    %660 = math.tanh %659 : vector<8x128xf32>
    %cst_264 = arith.constant 1.000000e+00 : f32
    %661 = vector.broadcast %cst_264 : f32 to vector<8x128xf32>
    %662 = arith.addf %660, %661 : vector<8x128xf32>
    %cst_265 = arith.constant 5.000000e-01 : f32
    %663 = vector.broadcast %cst_265 : f32 to vector<8x128xf32>
    %664 = arith.mulf %663, %662 : vector<8x128xf32>
    %665 = vector.extract_strided_slice %656 {offsets = [0, 128], sizes = [8, 128], strides = [1, 1]} : vector<8x512xf32> to vector<8x128xf32>
    %cst_266 = arith.constant 5.000000e-01 : f32
    %666 = vector.broadcast %cst_266 : f32 to vector<8x128xf32>
    %667 = arith.mulf %666, %665 : vector<8x128xf32>
    %668 = math.tanh %667 : vector<8x128xf32>
    %cst_267 = arith.constant 1.000000e+00 : f32
    %669 = vector.broadcast %cst_267 : f32 to vector<8x128xf32>
    %670 = arith.addf %668, %669 : vector<8x128xf32>
    %cst_268 = arith.constant 5.000000e-01 : f32
    %671 = vector.broadcast %cst_268 : f32 to vector<8x128xf32>
    %672 = arith.mulf %671, %670 : vector<8x128xf32>
    %673 = vector.extract_strided_slice %656 {offsets = [0, 256], sizes = [8, 128], strides = [1, 1]} : vector<8x512xf32> to vector<8x128xf32>
    %674 = math.tanh %673 : vector<8x128xf32>
    %675 = vector.extract_strided_slice %656 {offsets = [0, 384], sizes = [8, 128], strides = [1, 1]} : vector<8x512xf32> to vector<8x128xf32>
    %cst_269 = arith.constant 5.000000e-01 : f32
    %676 = vector.broadcast %cst_269 : f32 to vector<8x128xf32>
    %677 = arith.mulf %676, %675 : vector<8x128xf32>
    %678 = math.tanh %677 : vector<8x128xf32>
    %cst_270 = arith.constant 1.000000e+00 : f32
    %679 = vector.broadcast %cst_270 : f32 to vector<8x128xf32>
    %680 = arith.addf %678, %679 : vector<8x128xf32>
    %cst_271 = arith.constant 5.000000e-01 : f32
    %681 = vector.broadcast %cst_271 : f32 to vector<8x128xf32>
    %682 = arith.mulf %681, %680 : vector<8x128xf32>
    %683 = arith.mulf %672, %646 : vector<8x128xf32>
    %684 = arith.mulf %664, %674 : vector<8x128xf32>
    %685 = arith.addf %683, %684 : vector<8x128xf32>
    %686 = math.tanh %685 : vector<8x128xf32>
    %687 = arith.mulf %682, %686 : vector<8x128xf32>
    %c8_i32_272 = arith.constant 8 : i32
    %688 = arith.truncf %687 : vector<8x128xf32> to vector<8x128xbf16>
    %c0_273 = arith.constant 0 : index
    %c0_274 = arith.constant 0 : index
    %689 = vector.load %arg7[%c0_273, %c0_274] : memref<128x128xbf16, #tpu.memory_space<vmem>>, vector<128x128xbf16>
    %cst_275 = arith.constant dense<0.000000e+00> : vector<8x128xf32>
    %690 = tpu.matmul %688, %689, %cst_275 {dimension_numbers = #tpu.dot_dimension_numbers<[1], [0], [0], [1], [0, 0, 1, 1], [], []>} : vector<8x128xbf16>, vector<128x128xbf16>, vector<8x128xf32> -> vector<8x128xf32>
    %c0_276 = arith.constant 0 : index
    %c0_277 = arith.constant 0 : index
    %691 = vector.load %arg8[%c0_276, %c0_277] : memref<1x128xf32, #tpu.memory_space<vmem>>, vector<1x128xf32>
    %692 = vector.broadcast %691 : vector<1x128xf32> to vector<8x128xf32>
    %693 = arith.addf %690, %692 : vector<8x128xf32>
    %cst_278 = arith.constant 0.000000e+00 : f32
    %694 = vector.broadcast %cst_278 : f32 to vector<8x128xf32>
    %695 = arith.maximumf %693, %694 : vector<8x128xf32>
    %c0_279 = arith.constant 0 : index
    %c0_280 = arith.constant 0 : index
    %696 = vector.load %arg9[%c0_279, %c0_280] : memref<8x128xf32, #tpu.memory_space<vmem>>, vector<8x128xf32>
    tpu.vector_store %arg9[%c0_279, %c0_280], %695 {strides = array<i32>} : memref<8x128xf32, #tpu.memory_space<vmem>>, vector<8x128xf32>,
    return
  }
}

</mosaic_0001>

<llo_original>
// kernel: lstm_forward.1
$region0: #{lstm_forward.1}
  #allocation0 [shape = 'u32[]', space=smem, size = 0x4, offset = 0x4, fixed_abs, tag = 'smem constant byte address 0x4 - core index']
  #allocation1 [shape = 'u32[144,128]{1,0:T(1,128)}', space=vmem, size = 0x12000, scoped, tag = 'internal scratch']
  #allocation2 [shape = 'bf16[8,8,512]{2,1,0:T(8,128)(2,1)}', space=vmem, size = 0x10000, scoped, tag = 'scratch operand']
  #allocation3 [shape = 'bf16[8,8,128]{2,1,0:T(8,128)(2,1)}', space=vmem, size = 0x4000, scoped, tag = 'scratch operand']
  %s0 = inlined_call_operand.vmem [shape: bf16[8,8,128], index: 0, kind: input, shape index: {}]
  %s1 = inlined_call_operand.hbm [shape: bf16[128,512], index: 1, kind: input, shape index: {}]
  %s2 = inlined_call_operand.hbm [shape: bf16[128,512], index: 2, kind: input, shape index: {}]
  %s3 = inlined_call_operand.vmem [shape: f32[1,512], index: 3, kind: input, shape index: {}]
  %s4 = inlined_call_operand.hbm [shape: bf16[128,512], index: 4, kind: input, shape index: {}]
  %s5 = inlined_call_operand.hbm [shape: bf16[128,512], index: 5, kind: input, shape index: {}]
  %s6 = inlined_call_operand.vmem [shape: f32[1,512], index: 6, kind: input, shape index: {}]
  %s7 = inlined_call_operand.vmem [shape: bf16[128,128], index: 7, kind: input, shape index: {}]
  %s8 = inlined_call_operand.hbm [shape: f32[1,128], index: 8, kind: input, shape index: {}]
  %s9 = inlined_call_operand.vmem [shape: f32[8,128], index: 9, kind: output, shape index: {}]
  %s10 = sld [smem:[#allocation0]]
  $region66: #{lstm_forward.1} parent=0
    _
  %s12 = ssub.s32 1, %s10
  %s13 = scalar_select 0, %s12, %s10
  $region1: #{lstm_forward.1} parent=0
    #allocation4 [shape = 'u8[131072]{0}', space=vmem, size = 0x20000, scoped, tag = 'input window, operand 1, single buffered']
    #allocation5 [shape = 's32[1]{0}', space=sflag, size = 0x4, scoped, tag = 'scoped memory for lstm_forward.1']
    #allocation6 [shape = 'u8[131072]{0}', space=vmem, size = 0x20000, scoped, tag = 'input window, operand 2, single buffered']
    #allocation7 [shape = 's32[1]{0}', space=sflag, size = 0x4, scoped, tag = 'scoped memory for lstm_forward.1']
    #allocation8 [shape = 'u8[131072]{0}', space=vmem, size = 0x20000, scoped, tag = 'input window, operand 4, single buffered']
    #allocation9 [shape = 'u8[131072]{0}', space=vmem, size = 0x20000, scoped, tag = 'input window, operand 5, single buffered']
    #allocation10 [shape = 's32[1]{0}', space=sflag, size = 0x4, scoped, tag = 'scoped memory for lstm_forward.1']
    #allocation11 [shape = 'u8[512]{0}', space=vmem, size = 0x400, scoped, tag = 'input window, operand 8, single buffered']
    %14 = vsyncpa [#allocation5], 0
    %15 = vsyncpa [#allocation7], 0
    %16 = vsyncpa [#allocation10], 0
    // Predicated region
    $region2: #{lstm_forward.1} parent=1 // pred_check
      _
    $region3: #{lstm_forward.1} parent=1 // pred_check_branch
      %18 = sbr.rel (0) target = $region5
    $region4: #{lstm_forward.1} parent=1 // pred_region
      _
    $region5: #{lstm_forward.1} parent=1 // pred_fallthru
      _
    // Predicated region
    $region6: #{lstm_forward.1} parent=1 // pred_check
      _
    $region7: #{lstm_forward.1} parent=1 // pred_check_branch
      %20 = sbr.rel (0) target = $region9
    $region8: #{lstm_forward.1} parent=1 // pred_region
      %s22 = ssub.s32 4096, 4096
      %23 = vsyncadd [#allocation5], %s22
      %s24 = sshll.u32 [#allocation4], 4
      %s25 = int_to_ptr.vmem [resolvable:$true] %s24
      %30 = dma.hbm_to_vmem [thread:$0]  %s1, 4096, %s25, [#allocation5], 256, 256, 16
    $region9: #{lstm_forward.1} parent=1 // pred_fallthru
      _
    // Predicated region
    $region10: #{lstm_forward.1} parent=1 // pred_check
      _
    $region11: #{lstm_forward.1} parent=1 // pred_check_branch
      %32 = sbr.rel (0) target = $region13
    $region12: #{lstm_forward.1} parent=1 // pred_region
      %s34 = ssub.s32 4096, 4096
      %35 = vsyncadd [#allocation7], %s34
      %s36 = sshll.u32 [#allocation6], 4
      %s37 = int_to_ptr.vmem [resolvable:$true] %s36
      %42 = dma.hbm_to_vmem [thread:$0]  %s2, 4096, %s37, [#allocation7], 256, 256, 16
    $region13: #{lstm_forward.1} parent=1 // pred_fallthru
      _
    // Predicated region
    $region14: #{lstm_forward.1} parent=1 // pred_check
      _
    $region15: #{lstm_forward.1} parent=1 // pred_check_branch
      %44 = sbr.rel (0) target = $region17
    $region16: #{lstm_forward.1} parent=1 // pred_region
      _
    $region17: #{lstm_forward.1} parent=1 // pred_fallthru
      _
    // Predicated region
    $region18: #{lstm_forward.1} parent=1 // pred_check
      _
    $region19: #{lstm_forward.1} parent=1 // pred_check_branch
      %46 = sbr.rel (0) target = $region21
    $region20: #{lstm_forward.1} parent=1 // pred_region
      %s48 = ssub.s32 4096, 4096
      %49 = vsyncadd [#allocation7], %s48
      %s50 = sshll.u32 [#allocation8], 4
      %s51 = int_to_ptr.vmem [resolvable:$true] %s50
      %56 = dma.hbm_to_vmem [thread:$0]  %s4, 4096, %s51, [#allocation7], 256, 256, 16
    $region21: #{lstm_forward.1} parent=1 // pred_fallthru
      _
    // Predicated region
    $region22: #{lstm_forward.1} parent=1 // pred_check
      _
    $region23: #{lstm_forward.1} parent=1 // pred_check_branch
      %58 = sbr.rel (0) target = $region25
    $region24: #{lstm_forward.1} parent=1 // pred_region
      %s60 = ssub.s32 4096, 4096
      %61 = vsyncadd [#allocation10], %s60
      %s62 = sshll.u32 [#allocation9], 4
      %s63 = int_to_ptr.vmem [resolvable:$true] %s62
      %68 = dma.hbm_to_vmem [thread:$0]  %s5, 4096, %s63, [#allocation10], 256, 256, 16
    $region25: #{lstm_forward.1} parent=1 // pred_fallthru
      _
    // Predicated region
    $region26: #{lstm_forward.1} parent=1 // pred_check
      _
    $region27: #{lstm_forward.1} parent=1 // pred_check_branch
      %70 = sbr.rel (0) target = $region29
    $region28: #{lstm_forward.1} parent=1 // pred_region
      _
    $region29: #{lstm_forward.1} parent=1 // pred_fallthru
      _
    // Predicated region
    $region30: #{lstm_forward.1} parent=1 // pred_check
      _
    $region31: #{lstm_forward.1} parent=1 // pred_check_branch
      %72 = sbr.rel (0) target = $region33
    $region32: #{lstm_forward.1} parent=1 // pred_region
      _
    $region33: #{lstm_forward.1} parent=1 // pred_fallthru
      _
    // Predicated region
    $region34: #{lstm_forward.1} parent=1 // pred_check
      _
    $region35: #{lstm_forward.1} parent=1 // pred_check_branch
      %74 = sbr.rel (0) target = $region37
    $region36: #{lstm_forward.1} parent=1 // pred_region
      %s76 = ssub.s32 16, 16
      %77 = vsyncadd [#allocation10], %s76
      %s79 = sshll.u32 [#allocation11], 4
      %s80 = int_to_ptr.vmem [resolvable:$true] %s79
      %82 = dma.hbm_to_vmem [thread:$0]  %s8, 16, %s80, [#allocation10]
    $region37: #{lstm_forward.1} parent=1 // pred_fallthru
      _
    // Predicated region
    $region38: #{lstm_forward.1} parent=1 // pred_check
      _
    $region39: #{lstm_forward.1} parent=1 // pred_check_branch
      %84 = sbr.rel (0) target = $region41
    $region40: #{lstm_forward.1} parent=1 // pred_region
      %85 = dma.done [#allocation5], 4096
    $region41: #{lstm_forward.1} parent=1 // pred_fallthru
      _
    // Predicated region
    $region42: #{lstm_forward.1} parent=1 // pred_check
      _
    $region43: #{lstm_forward.1} parent=1 // pred_check_branch
      %87 = sbr.rel (0) target = $region45
    $region44: #{lstm_forward.1} parent=1 // pred_region
      %88 = dma.done [#allocation7], 4096
    $region45: #{lstm_forward.1} parent=1 // pred_fallthru
      _
    // Predicated region
    $region46: #{lstm_forward.1} parent=1 // pred_check
      _
    $region47: #{lstm_forward.1} parent=1 // pred_check_branch
      %90 = sbr.rel (0) target = $region49
    $region48: #{lstm_forward.1} parent=1 // pred_region
      %91 = dma.done [#allocation7], 4096
    $region49: #{lstm_forward.1} parent=1 // pred_fallthru
      _
    // Predicated region
    $region50: #{lstm_forward.1} parent=1 // pred_check
      _
    $region51: #{lstm_forward.1} parent=1 // pred_check_branch
      %93 = sbr.rel (0) target = $region53
    $region52: #{lstm_forward.1} parent=1 // pred_region
      %94 = dma.done [#allocation10], 4096
    $region53: #{lstm_forward.1} parent=1 // pred_fallthru
      _
    // Predicated region
    $region54: #{lstm_forward.1} parent=1 // pred_check
      _
    $region55: #{lstm_forward.1} parent=1 // pred_check_branch
      %96 = sbr.rel (0) target = $region57
    $region56: #{lstm_forward.1} parent=1 // pred_region
      %97 = dma.done [#allocation10], 16
    $region57: #{lstm_forward.1} parent=1 // pred_fallthru
      _
    %v99 = vld [vmem:[%s0] sm:$0xf]
    %v100 = vld [vmem:[%s0 + $0x4] sm:$0xf]
    %v101 = vld [vmem:[%s0 + $0x8] sm:$0xf]
    %v102 = vld [vmem:[%s0 + $0xc] sm:$0xf]
    %v103 = vld [vmem:[%s0 + $0x10] sm:$0xf]
    %v104 = vld [vmem:[%s0 + $0x14] sm:$0xf]
    %v105 = vld [vmem:[%s0 + $0x18] sm:$0xf]
    %v106 = vld [vmem:[%s0 + $0x1c] sm:$0xf]
    %v107 = vld [vmem:[#allocation4] sm:$0xff]
    %v108 = vld [vmem:[#allocation4 + $0x8] sm:$0xff]
    %v109 = vld [vmem:[#allocation4 + $0x10] sm:$0xff]
    %v110 = vld [vmem:[#allocation4 + $0x18] sm:$0xff]
    %v111 = vld [vmem:[#allocation4 + $0x20] sm:$0xff]
    %v112 = vld [vmem:[#allocation4 + $0x28] sm:$0xff]
    %v113 = vld [vmem:[#allocation4 + $0x30] sm:$0xff]
    %v114 = vld [vmem:[#allocation4 + $0x38] sm:$0xff]
    %v115 = vld [vmem:[#allocation4 + $0x40] sm:$0xff]
    %v116 = vld [vmem:[#allocation4 + $0x48] sm:$0xff]
    %v117 = vld [vmem:[#allocation4 + $0x50] sm:$0xff]
    %v118 = vld [vmem:[#allocation4 + $0x58] sm:$0xff]
    %v119 = vld [vmem:[#allocation4 + $0x60] sm:$0xff]
    %v120 = vld [vmem:[#allocation4 + $0x68] sm:$0xff]
    %v121 = vld [vmem:[#allocation4 + $0x70] sm:$0xff]
    %v122 = vld [vmem:[#allocation4 + $0x78] sm:$0xff]
    %v123 = vld [vmem:[#allocation4 + $0x80] sm:$0xff]
    %v124 = vld [vmem:[#allocation4 + $0x88] sm:$0xff]
    %v125 = vld [vmem:[#allocation4 + $0x90] sm:$0xff]
    %v126 = vld [vmem:[#allocation4 + $0x98] sm:$0xff]
    %v127 = vld [vmem:[#allocation4 + $0xa0] sm:$0xff]
    %v128 = vld [vmem:[#allocation4 + $0xa8] sm:$0xff]
    %v129 = vld [vmem:[#allocation4 + $0xb0] sm:$0xff]
    %v130 = vld [vmem:[#allocation4 + $0xb8] sm:$0xff]
    %v131 = vld [vmem:[#allocation4 + $0xc0] sm:$0xff]
    %v132 = vld [vmem:[#allocation4 + $0xc8] sm:$0xff]
    %v133 = vld [vmem:[#allocation4 + $0xd0] sm:$0xff]
    %v134 = vld [vmem:[#allocation4 + $0xd8] sm:$0xff]
    %v135 = vld [vmem:[#allocation4 + $0xe0] sm:$0xff]
    %v136 = vld [vmem:[#allocation4 + $0xe8] sm:$0xff]
    %v137 = vld [vmem:[#allocation4 + $0xf0] sm:$0xff]
    %v138 = vld [vmem:[#allocation4 + $0xf8] sm:$0xff]
    %v139 = vld [vmem:[%s3] sm:$0xf]
    %v141 = vlaneseq
    %v142 = vshrl.u32 %v141, 7
    %v143 = vsub.s32 0, %v142
    %v144 = vrot.slane %v139, %v143
    %v145 = vlaneseq
    %v146 = vshrl.u32 %v145, 7
    %v147 = vsub.s32 1, %v146
    %v148 = vrot.slane %v139, %v147
    %v149 = vlaneseq
    %v150 = vshrl.u32 %v149, 7
    %v151 = vsub.s32 2, %v150
    %v152 = vrot.slane %v139, %v151
    %v153 = vlaneseq
    %v154 = vshrl.u32 %v153, 7
    %v155 = vsub.s32 3, %v154
    %v156 = vrot.slane %v139, %v155
    %v169 = vunpack.c.l.b16 %v99
    %v170 = vunpack.c.l.b16 %v100
    %v171 = vunpack.c.l.b16 %v101
    %v172 = vunpack.c.l.b16 %v102
    %v173 = vunpack.c.l.b16 %v103
    %v174 = vunpack.c.l.b16 %v104
    %v175 = vunpack.c.l.b16 %v105
    %v176 = vunpack.c.l.b16 %v106
    %v177 = vpack.c.b16 %v170, %v169
    %v178 = vpack.c.b16 %v172, %v171
    %v179 = vpack.c.b16 %v174, %v173
    %v180 = vpack.c.b16 %v176, %v175
    %v217 = vunpack.c.l.b16 %v107
    %v218 = vunpack.c.h.b16 %v107
    %v219 = vunpack.c.l.b16 %v108
    %v220 = vunpack.c.h.b16 %v108
    %v221 = vunpack.c.l.b16 %v109
    %v222 = vunpack.c.h.b16 %v109
    %v223 = vunpack.c.l.b16 %v110
    %v224 = vunpack.c.h.b16 %v110
    %v225 = vunpack.c.l.b16 %v111
    %v226 = vunpack.c.h.b16 %v111
    %v227 = vunpack.c.l.b16 %v112
    %v228 = vunpack.c.h.b16 %v112
    %v229 = vunpack.c.l.b16 %v113
    %v230 = vunpack.c.h.b16 %v113
    %v231 = vunpack.c.l.b16 %v114
    %v232 = vunpack.c.h.b16 %v114
    %v233 = vunpack.c.l.b16 %v115
    %v234 = vunpack.c.h.b16 %v115
    %v235 = vunpack.c.l.b16 %v116
    %v236 = vunpack.c.h.b16 %v116
    %v237 = vunpack.c.l.b16 %v117
    %v238 = vunpack.c.h.b16 %v117
    %v239 = vunpack.c.l.b16 %v118
    %v240 = vunpack.c.h.b16 %v118
    %v241 = vunpack.c.l.b16 %v119
    %v242 = vunpack.c.h.b16 %v119
    %v243 = vunpack.c.l.b16 %v120
    %v244 = vunpack.c.h.b16 %v120
    %v245 = vunpack.c.l.b16 %v121
    %v246 = vunpack.c.h.b16 %v121
    %v247 = vunpack.c.l.b16 %v122
    %v248 = vunpack.c.h.b16 %v122
    %v249 = vunpack.c.l.b16 %v123
    %v250 = vunpack.c.h.b16 %v123
    %v251 = vunpack.c.l.b16 %v124
    %v252 = vunpack.c.h.b16 %v124
    %v253 = vunpack.c.l.b16 %v125
    %v254 = vunpack.c.h.b16 %v125
    %v255 = vunpack.c.l.b16 %v126
    %v256 = vunpack.c.h.b16 %v126
    %v257 = vunpack.c.l.b16 %v127
    %v258 = vunpack.c.h.b16 %v127
    %v259 = vunpack.c.l.b16 %v128
    %v260 = vunpack.c.h.b16 %v128
    %v261 = vunpack.c.l.b16 %v129
    %v262 = vunpack.c.h.b16 %v129
    %v263 = vunpack.c.l.b16 %v130
    %v264 = vunpack.c.h.b16 %v130
    %v265 = vunpack.c.l.b16 %v131
    %v266 = vunpack.c.h.b16 %v131
    %v267 = vunpack.c.l.b16 %v132
    %v268 = vunpack.c.h.b16 %v132
    %v269 = vunpack.c.l.b16 %v133
    %v270 = vunpack.c.h.b16 %v133
    %v271 = vunpack.c.l.b16 %v134
    %v272 = vunpack.c.h.b16 %v134
    %v273 = vunpack.c.l.b16 %v135
    %v274 = vunpack.c.h.b16 %v135
    %v275 = vunpack.c.l.b16 %v136
    %v276 = vunpack.c.h.b16 %v136
    %v277 = vunpack.c.l.b16 %v137
    %v278 = vunpack.c.h.b16 %v137
    %v279 = vunpack.c.l.b16 %v138
    %v280 = vunpack.c.h.b16 %v138
    %v281 = vpack.c.b16 %v221, %v217
    %v282 = vpack.c.b16 %v222, %v218
    %v283 = vpack.c.b16 %v223, %v219
    %v284 = vpack.c.b16 %v224, %v220
    %v285 = vpack.c.b16 %v229, %v225
    %v286 = vpack.c.b16 %v230, %v226
    %v287 = vpack.c.b16 %v231, %v227
    %v288 = vpack.c.b16 %v232, %v228
    %v289 = vpack.c.b16 %v237, %v233
    %v290 = vpack.c.b16 %v238, %v234
    %v291 = vpack.c.b16 %v239, %v235
    %v292 = vpack.c.b16 %v240, %v236
    %v293 = vpack.c.b16 %v245, %v241
    %v294 = vpack.c.b16 %v246, %v242
    %v295 = vpack.c.b16 %v247, %v243
    %v296 = vpack.c.b16 %v248, %v244
    %v297 = vpack.c.b16 %v253, %v249
    %v298 = vpack.c.b16 %v254, %v250
    %v299 = vpack.c.b16 %v255, %v251
    %v300 = vpack.c.b16 %v256, %v252
    %v301 = vpack.c.b16 %v261, %v257
    %v302 = vpack.c.b16 %v262, %v258
    %v303 = vpack.c.b16 %v263, %v259
    %v304 = vpack.c.b16 %v264, %v260
    %v305 = vpack.c.b16 %v269, %v265
    %v306 = vpack.c.b16 %v270, %v266
    %v307 = vpack.c.b16 %v271, %v267
    %v308 = vpack.c.b16 %v272, %v268
    %v309 = vpack.c.b16 %v277, %v273
    %v310 = vpack.c.b16 %v278, %v274
    %v311 = vpack.c.b16 %v279, %v275
    %v312 = vpack.c.b16 %v280, %v276
    %345 = vmatprep.subr.bf16.mxu0 %v282
    %346 = vmatpush1.bf16.msra.mxu0 %v281
    %347 = vmatprep.subr.bf16.mxu0 %v286
    %348 = vmatpush1.bf16.msra.mxu0 %v285
    %349 = vmatprep.subr.bf16.mxu0 %v290
    %350 = vmatpush1.bf16.msra.mxu0 %v289
    %351 = vmatprep.subr.bf16.mxu0 %v294
    %352 = vmatpush1.bf16.msra.mxu0 %v293
    %353 = vmatprep.subr.bf16.mxu0 %v298
    %354 = vmatpush1.bf16.msra.mxu0 %v297
    %355 = vmatprep.subr.bf16.mxu0 %v302
    %356 = vmatpush1.bf16.msra.mxu0 %v301
    %357 = vmatprep.subr.bf16.mxu0 %v306
    %358 = vmatpush1.bf16.msra.mxu0 %v305
    %359 = vmatprep.subr.bf16.mxu0 %v310
    %360 = vmatpush1.bf16.msra.mxu0 %v309
    %361 = vmatprep.subr.bf16.mxu0 0
    %362 = vmatpush1.bf16.msra.mxu0 0
    %363 = vmatprep.subr.bf16.mxu0 0
    %364 = vmatpush1.bf16.msra.mxu0 0
    %365 = vmatprep.subr.bf16.mxu0 0
    %366 = vmatpush1.bf16.msra.mxu0 0
    %367 = vmatprep.subr.bf16.mxu0 0
    %368 = vmatpush1.bf16.msra.mxu0 0
    %369 = vmatprep.subr.bf16.mxu0 0
    %370 = vmatpush1.bf16.msra.mxu0 0
    %371 = vmatprep.subr.bf16.mxu0 0
    %372 = vmatpush1.bf16.msra.mxu0 0
    %373 = vmatprep.subr.bf16.mxu0 0
    %374 = vmatpush1.bf16.msra.mxu0 0
    %375 = vmatprep.subr.bf16.mxu0 0
    %376 = vmatpush1.bf16.msra.mxu0 0
    %377 = vmatprep.mubr.bf16.mxu0 0
    %378 = vmatmul.mubr.bf16.gmra.mrb[0].mxu0 %v177
    %v379 = vpop.f32.mrb[0].mxu0
    %v380 = vadd.f32 %v144, %v379
    %v381 = vpop.f32.mrb[0].mxu0
    %v382 = vadd.f32 %v148, %v381
    %v383 = vpop.f32.mrb[0].mxu0
    %v384 = vadd.f32 %v144, %v383
    %v385 = vpop.f32.mrb[0].mxu0
    %v386 = vadd.f32 %v148, %v385
    %387 = vmatprep.mubr.bf16.mxu0 0
    %388 = vmatmul.mubr.bf16.gmra.mrb[0].mxu0 %v178
    %v389 = vpop.f32.mrb[0].mxu0
    %v390 = vadd.f32 %v144, %v389
    %v391 = vpop.f32.mrb[0].mxu0
    %v392 = vadd.f32 %v148, %v391
    %v393 = vpop.f32.mrb[0].mxu0
    %v394 = vadd.f32 %v144, %v393
    %v395 = vpop.f32.mrb[0].mxu0
    %v396 = vadd.f32 %v148, %v395
    %397 = vmatprep.mubr.bf16.mxu0 0
    %398 = vmatmul.mubr.bf16.gmra.mrb[0].mxu0 %v179
    %v399 = vpop.f32.mrb[0].mxu0
    %v400 = vadd.f32 %v144, %v399
    %v401 = vpop.f32.mrb[0].mxu0
    %v402 = vadd.f32 %v148, %v401
    %v403 = vpop.f32.mrb[0].mxu0
    %v404 = vadd.f32 %v144, %v403
    %v405 = vpop.f32.mrb[0].mxu0
    %v406 = vadd.f32 %v148, %v405
    %407 = vmatprep.mubr.bf16.mxu0 0
    %408 = vmatmul.mubr.bf16.gmra.mrb[0].mxu0 %v180
    %v409 = vpop.f32.mrb[0].mxu0
    %v410 = vadd.f32 %v144, %v409
    %v411 = vpop.f32.mrb[0].mxu0
    %v412 = vadd.f32 %v148, %v411
    %v413 = vpop.f32.mrb[0].mxu0
    %v414 = vadd.f32 %v144, %v413
    %v415 = vpop.f32.mrb[0].mxu0
    %v416 = vadd.f32 %v148, %v415
    %417 = vdwg.mxu0
    %418 = vmatprep.subr.bf16.mxu0 %v284
    %419 = vmatpush1.bf16.msra.mxu0 %v283
    %420 = vmatprep.subr.bf16.mxu0 %v288
    %421 = vmatpush1.bf16.msra.mxu0 %v287
    %422 = vmatprep.subr.bf16.mxu0 %v292
    %423 = vmatpush1.bf16.msra.mxu0 %v291
    %424 = vmatprep.subr.bf16.mxu0 %v296
    %425 = vmatpush1.bf16.msra.mxu0 %v295
    %426 = vmatprep.subr.bf16.mxu0 %v300
    %427 = vmatpush1.bf16.msra.mxu0 %v299
    %428 = vmatprep.subr.bf16.mxu0 %v304
    %429 = vmatpush1.bf16.msra.mxu0 %v303
    %430 = vmatprep.subr.bf16.mxu0 %v308
    %431 = vmatpush1.bf16.msra.mxu0 %v307
    %432 = vmatprep.subr.bf16.mxu0 %v312
    %433 = vmatpush1.bf16.msra.mxu0 %v311
    %434 = vmatprep.subr.bf16.mxu0 0
    %435 = vmatpush1.bf16.msra.mxu0 0
    %436 = vmatprep.subr.bf16.mxu0 0
    %437 = vmatpush1.bf16.msra.mxu0 0
    %438 = vmatprep.subr.bf16.mxu0 0
    %439 = vmatpush1.bf16.msra.mxu0 0
    %440 = vmatprep.subr.bf16.mxu0 0
    %441 = vmatpush1.bf16.msra.mxu0 0
    %442 = vmatprep.subr.bf16.mxu0 0
    %443 = vmatpush1.bf16.msra.mxu0 0
    %444 = vmatprep.subr.bf16.mxu0 0
    %445 = vmatpush1.bf16.msra.mxu0 0
    %446 = vmatprep.subr.bf16.mxu0 0
    %447 = vmatpush1.bf16.msra.mxu0 0
    %448 = vmatprep.subr.bf16.mxu0 0
    %449 = vmatpush1.bf16.msra.mxu0 0
    %450 = vmatprep.mubr.bf16.mxu0 0
    %451 = vmatmul.mubr.bf16.gmra.mrb[0].mxu0 %v177
    %v452 = vpop.f32.mrb[0].mxu0
    %v453 = vadd.f32 %v152, %v452
    %v454 = vpop.f32.mrb[0].mxu0
    %v455 = vadd.f32 %v156, %v454
    %v456 = vpop.f32.mrb[0].mxu0
    %v457 = vadd.f32 %v152, %v456
    %v458 = vpop.f32.mrb[0].mxu0
    %v459 = vadd.f32 %v156, %v458
    %460 = vmatprep.mubr.bf16.mxu0 0
    %461 = vmatmul.mubr.bf16.gmra.mrb[0].mxu0 %v178
    %v462 = vpop.f32.mrb[0].mxu0
    %v463 = vadd.f32 %v152, %v462
    %v464 = vpop.f32.mrb[0].mxu0
    %v465 = vadd.f32 %v156, %v464
    %v466 = vpop.f32.mrb[0].mxu0
    %v467 = vadd.f32 %v152, %v466
    %v468 = vpop.f32.mrb[0].mxu0
    %v469 = vadd.f32 %v156, %v468
    %470 = vmatprep.mubr.bf16.mxu0 0
    %471 = vmatmul.mubr.bf16.gmra.mrb[0].mxu0 %v179
    %v472 = vpop.f32.mrb[0].mxu0
    %v473 = vadd.f32 %v152, %v472
    %v474 = vpop.f32.mrb[0].mxu0
    %v475 = vadd.f32 %v156, %v474
    %v476 = vpop.f32.mrb[0].mxu0
    %v477 = vadd.f32 %v152, %v476
    %v478 = vpop.f32.mrb[0].mxu0
    %v479 = vadd.f32 %v156, %v478
    %480 = vmatprep.mubr.bf16.mxu0 0
    %481 = vmatmul.mubr.bf16.gmra.mrb[0].mxu0 %v180
    %v482 = vpop.f32.mrb[0].mxu0
    %v483 = vadd.f32 %v152, %v482
    %v484 = vpop.f32.mrb[0].mxu0
    %v485 = vadd.f32 %v156, %v484
    %v486 = vpop.f32.mrb[0].mxu0
    %v487 = vadd.f32 %v152, %v486
    %v488 = vpop.f32.mrb[0].mxu0
    %v489 = vadd.f32 %v156, %v488
    %490 = vdwg.mxu0
    %v491 = vpack.c.bf16 %v380, %v380
    %v492 = vpack.c.bf16 %v382, %v382
    %v493 = vpack.c.bf16 %v453, %v453
    %v494 = vpack.c.bf16 %v455, %v455
    %v495 = vpack.c.bf16 %v384, %v384
    %v496 = vpack.c.bf16 %v386, %v386
    %v497 = vpack.c.bf16 %v457, %v457
    %v498 = vpack.c.bf16 %v459, %v459
    %v499 = vpack.c.bf16 %v390, %v390
    %v500 = vpack.c.bf16 %v392, %v392
    %v501 = vpack.c.bf16 %v463, %v463
    %v502 = vpack.c.bf16 %v465, %v465
    %v503 = vpack.c.bf16 %v394, %v394
    %v504 = vpack.c.bf16 %v396, %v396
    %v505 = vpack.c.bf16 %v467, %v467
    %v506 = vpack.c.bf16 %v469, %v469
    %v507 = vpack.c.bf16 %v400, %v400
    %v508 = vpack.c.bf16 %v402, %v402
    %v509 = vpack.c.bf16 %v473, %v473
    %v510 = vpack.c.bf16 %v475, %v475
    %v511 = vpack.c.bf16 %v404, %v404
    %v512 = vpack.c.bf16 %v406, %v406
    %v513 = vpack.c.bf16 %v477, %v477
    %v514 = vpack.c.bf16 %v479, %v479
    %v515 = vpack.c.bf16 %v410, %v410
    %v516 = vpack.c.bf16 %v412, %v412
    %v517 = vpack.c.bf16 %v483, %v483
    %v518 = vpack.c.bf16 %v485, %v485
    %v519 = vpack.c.bf16 %v414, %v414
    %v520 = vpack.c.bf16 %v416, %v416
    %v521 = vpack.c.bf16 %v487, %v487
    %v522 = vpack.c.bf16 %v489, %v489
    %v555 = vunpack.c.l.b16 %v491
    %v556 = vunpack.c.l.b16 %v492
    %v557 = vunpack.c.l.b16 %v493
    %v558 = vunpack.c.l.b16 %v494
    %v559 = vunpack.c.l.b16 %v495
    %v560 = vunpack.c.l.b16 %v496
    %v561 = vunpack.c.l.b16 %v497
    %v562 = vunpack.c.l.b16 %v498
    %v563 = vunpack.c.l.b16 %v499
    %v564 = vunpack.c.l.b16 %v500
    %v565 = vunpack.c.l.b16 %v501
    %v566 = vunpack.c.l.b16 %v502
    %v567 = vunpack.c.l.b16 %v503
    %v568 = vunpack.c.l.b16 %v504
    %v569 = vunpack.c.l.b16 %v505
    %v570 = vunpack.c.l.b16 %v506
    %v571 = vunpack.c.l.b16 %v507
    %v572 = vunpack.c.l.b16 %v508
    %v573 = vunpack.c.l.b16 %v509
    %v574 = vunpack.c.l.b16 %v510
    %v575 = vunpack.c.l.b16 %v511
    %v576 = vunpack.c.l.b16 %v512
    %v577 = vunpack.c.l.b16 %v513
    %v578 = vunpack.c.l.b16 %v514
    %v579 = vunpack.c.l.b16 %v515
    %v580 = vunpack.c.l.b16 %v516
    %v581 = vunpack.c.l.b16 %v517
    %v582 = vunpack.c.l.b16 %v518
    %v583 = vunpack.c.l.b16 %v519
    %v584 = vunpack.c.l.b16 %v520
    %v585 = vunpack.c.l.b16 %v521
    %v586 = vunpack.c.l.b16 %v522
    %v587 = vpack.c.b16 %v556, %v555
    %v588 = vpack.c.b16 %v558, %v557
    %v589 = vpack.c.b16 %v560, %v559
    %v590 = vpack.c.b16 %v562, %v561
    %v591 = vpack.c.b16 %v564, %v563
    %v592 = vpack.c.b16 %v566, %v565
    %v593 = vpack.c.b16 %v568, %v567
    %v594 = vpack.c.b16 %v570, %v569
    %v595 = vpack.c.b16 %v572, %v571
    %v596 = vpack.c.b16 %v574, %v573
    %v597 = vpack.c.b16 %v576, %v575
    %v598 = vpack.c.b16 %v578, %v577
    %v599 = vpack.c.b16 %v580, %v579
    %v600 = vpack.c.b16 %v582, %v581
    %v601 = vpack.c.b16 %v584, %v583
    %v602 = vpack.c.b16 %v586, %v585
    %619 = vst [vmem:[#allocation2] sm:$0xff] %v587
    %620 = vst [vmem:[#allocation2 + $0x8] sm:$0xff] %v588
    %621 = vst [vmem:[#allocation2 + $0x10] sm:$0xff] %v589
    %622 = vst [vmem:[#allocation2 + $0x18] sm:$0xff] %v590
    %623 = vst [vmem:[#allocation2 + $0x20] sm:$0xff] %v591
    %624 = vst [vmem:[#allocation2 + $0x28] sm:$0xff] %v592
    %625 = vst [vmem:[#allocation2 + $0x30] sm:$0xff] %v593
    %626 = vst [vmem:[#allocation2 + $0x38] sm:$0xff] %v594
    %627 = vst [vmem:[#allocation2 + $0x40] sm:$0xff] %v595
    %628 = vst [vmem:[#allocation2 + $0x48] sm:$0xff] %v596
    %629 = vst [vmem:[#allocation2 + $0x50] sm:$0xff] %v597
    %630 = vst [vmem:[#allocation2 + $0x58] sm:$0xff] %v598
    %631 = vst [vmem:[#allocation2 + $0x60] sm:$0xff] %v599
    %632 = vst [vmem:[#allocation2 + $0x68] sm:$0xff] %v600
    %633 = vst [vmem:[#allocation2 + $0x70] sm:$0xff] %v601
    %634 = vst [vmem:[#allocation2 + $0x78] sm:$0xff] %v602
    %v635 = vld [vmem:[#allocation2] sm:$0xff]
    %v636 = vld [vmem:[#allocation2 + $0x8] sm:$0xff]
    %v637 = vunpack.c.l.bf16 %v635
    %v638 = vunpack.c.h.bf16 %v635
    %v639 = vunpack.c.l.bf16 %v636
    %v640 = vunpack.c.h.bf16 %v636
    %v641 = vld [vmem:[#allocation6] sm:$0xff]
    %v642 = vld [vmem:[#allocation6 + $0x8] sm:$0xff]
    %v643 = vld [vmem:[#allocation6 + $0x10] sm:$0xff]
    %v644 = vld [vmem:[#allocation6 + $0x18] sm:$0xff]
    %v645 = vld [vmem:[#allocation6 + $0x20] sm:$0xff]
    %v646 = vld [vmem:[#allocation6 + $0x28] sm:$0xff]
    %v647 = vld [vmem:[#allocation6 + $0x30] sm:$0xff]
    %v648 = vld [vmem:[#allocation6 + $0x38] sm:$0xff]
    %v649 = vld [vmem:[#allocation6 + $0x40] sm:$0xff]
    %v650 = vld [vmem:[#allocation6 + $0x48] sm:$0xff]
    %v651 = vld [vmem:[#allocation6 + $0x50] sm:$0xff]
    %v652 = vld [vmem:[#allocation6 + $0x58] sm:$0xff]
    %v653 = vld [vmem:[#allocation6 + $0x60] sm:$0xff]
    %v654 = vld [vmem:[#allocation6 + $0x68] sm:$0xff]
    %v655 = vld [vmem:[#allocation6 + $0x70] sm:$0xff]
    %v656 = vld [vmem:[#allocation6 + $0x78] sm:$0xff]
    %v657 = vld [vmem:[#allocation6 + $0x80] sm:$0xff]
    %v658 = vld [vmem:[#allocation6 + $0x88] sm:$0xff]
    %v659 = vld [vmem:[#allocation6 + $0x90] sm:$0xff]
    %v660 = vld [vmem:[#allocation6 + $0x98] sm:$0xff]
    %v661 = vld [vmem:[#allocation6 + $0xa0] sm:$0xff]
    %v662 = vld [vmem:[#allocation6 + $0xa8] sm:$0xff]
    %v663 = vld [vmem:[#allocation6 + $0xb0] sm:$0xff]
    %v664 = vld [vmem:[#allocation6 + $0xb8] sm:$0xff]
    %v665 = vld [vmem:[#allocation6 + $0xc0] sm:$0xff]
    %v666 = vld [vmem:[#allocation6 + $0xc8] sm:$0xff]
    %v667 = vld [vmem:[#allocation6 + $0xd0] sm:$0xff]
    %v668 = vld [vmem:[#allocation6 + $0xd8] sm:$0xff]
    %v669 = vld [vmem:[#allocation6 + $0xe0] sm:$0xff]
    %v670 = vld [vmem:[#allocation6 + $0xe8] sm:$0xff]
    %v671 = vld [vmem:[#allocation6 + $0xf0] sm:$0xff]
    %v672 = vld [vmem:[#allocation6 + $0xf8] sm:$0xff]
    %v705 = vunpack.c.l.b16 %v641
    %v706 = vunpack.c.h.b16 %v641
    %v707 = vunpack.c.l.b16 %v642
    %v708 = vunpack.c.h.b16 %v642
    %v709 = vunpack.c.l.b16 %v643
    %v710 = vunpack.c.h.b16 %v643
    %v711 = vunpack.c.l.b16 %v644
    %v712 = vunpack.c.h.b16 %v644
    %v713 = vunpack.c.l.b16 %v645
    %v714 = vunpack.c.h.b16 %v645
    %v715 = vunpack.c.l.b16 %v646
    %v716 = vunpack.c.h.b16 %v646
    %v717 = vunpack.c.l.b16 %v647
    %v718 = vunpack.c.h.b16 %v647
    %v719 = vunpack.c.l.b16 %v648
    %v720 = vunpack.c.h.b16 %v648
    %v721 = vunpack.c.l.b16 %v649
    %v722 = vunpack.c.h.b16 %v649
    %v723 = vunpack.c.l.b16 %v650
    %v724 = vunpack.c.h.b16 %v650
    %v725 = vunpack.c.l.b16 %v651
    %v726 = vunpack.c.h.b16 %v651
    %v727 = vunpack.c.l.b16 %v652
    %v728 = vunpack.c.h.b16 %v652
    %v729 = vunpack.c.l.b16 %v653
    %v730 = vunpack.c.h.b16 %v653
    %v731 = vunpack.c.l.b16 %v654
    %v732 = vunpack.c.h.b16 %v654
    %v733 = vunpack.c.l.b16 %v655
    %v734 = vunpack.c.h.b16 %v655
    %v735 = vunpack.c.l.b16 %v656
    %v736 = vunpack.c.h.b16 %v656
    %v737 = vunpack.c.l.b16 %v657
    %v738 = vunpack.c.h.b16 %v657
    %v739 = vunpack.c.l.b16 %v658
    %v740 = vunpack.c.h.b16 %v658
    %v741 = vunpack.c.l.b16 %v659
    %v742 = vunpack.c.h.b16 %v659
    %v743 = vunpack.c.l.b16 %v660
    %v744 = vunpack.c.h.b16 %v660
    %v745 = vunpack.c.l.b16 %v661
    %v746 = vunpack.c.h.b16 %v661
    %v747 = vunpack.c.l.b16 %v662
    %v748 = vunpack.c.h.b16 %v662
    %v749 = vunpack.c.l.b16 %v663
    %v750 = vunpack.c.h.b16 %v663
    %v751 = vunpack.c.l.b16 %v664
    %v752 = vunpack.c.h.b16 %v664
    %v753 = vunpack.c.l.b16 %v665
    %v754 = vunpack.c.h.b16 %v665
    %v755 = vunpack.c.l.b16 %v666
    %v756 = vunpack.c.h.b16 %v666
    %v757 = vunpack.c.l.b16 %v667
    %v758 = vunpack.c.h.b16 %v667
    %v759 = vunpack.c.l.b16 %v668
    %v760 = vunpack.c.h.b16 %v668
    %v761 = vunpack.c.l.b16 %v669
    %v762 = vunpack.c.h.b16 %v669
    %v763 = vunpack.c.l.b16 %v670
    %v764 = vunpack.c.h.b16 %v670
    %v765 = vunpack.c.l.b16 %v671
    %v766 = vunpack.c.h.b16 %v671
    %v767 = vunpack.c.l.b16 %v672
    %v768 = vunpack.c.h.b16 %v672
    %v769 = vpack.c.b16 %v709, %v705
    %v770 = vpack.c.b16 %v710, %v706
    %v771 = vpack.c.b16 %v711, %v707
    %v772 = vpack.c.b16 %v712, %v708
    %v773 = vpack.c.b16 %v717, %v713
    %v774 = vpack.c.b16 %v718, %v714
    %v775 = vpack.c.b16 %v719, %v715
    %v776 = vpack.c.b16 %v720, %v716
    %v777 = vpack.c.b16 %v725, %v721
    %v778 = vpack.c.b16 %v726, %v722
    %v779 = vpack.c.b16 %v727, %v723
    %v780 = vpack.c.b16 %v728, %v724
    %v781 = vpack.c.b16 %v733, %v729
    %v782 = vpack.c.b16 %v734, %v730
    %v783 = vpack.c.b16 %v735, %v731
    %v784 = vpack.c.b16 %v736, %v732
    %v785 = vpack.c.b16 %v741, %v737
    %v786 = vpack.c.b16 %v742, %v738
    %v787 = vpack.c.b16 %v743, %v739
    %v788 = vpack.c.b16 %v744, %v740
    %v789 = vpack.c.b16 %v749, %v745
    %v790 = vpack.c.b16 %v750, %v746
    %v791 = vpack.c.b16 %v751, %v747
    %v792 = vpack.c.b16 %v752, %v748
    %v793 = vpack.c.b16 %v757, %v753
    %v794 = vpack.c.b16 %v758, %v754
    %v795 = vpack.c.b16 %v759, %v755
    %v796 = vpack.c.b16 %v760, %v756
    %v797 = vpack.c.b16 %v765, %v761
    %v798 = vpack.c.b16 %v766, %v762
    %v799 = vpack.c.b16 %v767, %v763
    %v800 = vpack.c.b16 %v768, %v764
    %833 = vmatprep.subr.bf16.mxu0 %v770
    %834 = vmatpush1.bf16.msra.mxu0 %v769
    %835 = vmatprep.subr.bf16.mxu0 %v774
    %836 = vmatpush1.bf16.msra.mxu0 %v773
    %837 = vmatprep.subr.bf16.mxu0 %v778
    %838 = vmatpush1.bf16.msra.mxu0 %v777
    %839 = vmatprep.subr.bf16.mxu0 %v782
    %840 = vmatpush1.bf16.msra.mxu0 %v781
    %841 = vmatprep.subr.bf16.mxu0 %v786
    %842 = vmatpush1.bf16.msra.mxu0 %v785
    %843 = vmatprep.subr.bf16.mxu0 %v790
    %844 = vmatpush1.bf16.msra.mxu0 %v789
    %845 = vmatprep.subr.bf16.mxu0 %v794
    %846 = vmatpush1.bf16.msra.mxu0 %v793
    %847 = vmatprep.subr.bf16.mxu0 %v798
    %848 = vmatpush1.bf16.msra.mxu0 %v797
    %849 = vmatprep.subr.bf16.mxu0 0
    %850 = vmatpush1.bf16.msra.mxu0 0
    %851 = vmatprep.subr.bf16.mxu0 0
    %852 = vmatpush1.bf16.msra.mxu0 0
    %853 = vmatprep.subr.bf16.mxu0 0
    %854 = vmatpush1.bf16.msra.mxu0 0
    %855 = vmatprep.subr.bf16.mxu0 0
    %856 = vmatpush1.bf16.msra.mxu0 0
    %857 = vmatprep.subr.bf16.mxu0 0
    %858 = vmatpush1.bf16.msra.mxu0 0
    %859 = vmatprep.subr.bf16.mxu0 0
    %860 = vmatpush1.bf16.msra.mxu0 0
    %861 = vmatprep.subr.bf16.mxu0 0
    %862 = vmatpush1.bf16.msra.mxu0 0
    %863 = vmatprep.subr.bf16.mxu0 0
    %864 = vmatpush1.bf16.msra.mxu0 0
    %865 = vmatprep.mubr.bf16.mxu0 0
    %866 = vmatmul.mubr.bf16.gmra.mrb[0].mxu0 0
    %v867 = vpop.f32.mrb[0].mxu0
    %v868 = vadd.f32 0.0, %v867
    %v869 = vpop.f32.mrb[0].mxu0
    %v870 = vadd.f32 0.0, %v869
    %v871 = vpop.f32.mrb[0].mxu0
    %v872 = vpop.f32.mrb[0].mxu0
    %873 = vdwg.mxu0
    %874 = vmatprep.subr.bf16.mxu0 %v772
    %875 = vmatpush1.bf16.msra.mxu0 %v771
    %876 = vmatprep.subr.bf16.mxu0 %v776
    %877 = vmatpush1.bf16.msra.mxu0 %v775
    %878 = vmatprep.subr.bf16.mxu0 %v780
    %879 = vmatpush1.bf16.msra.mxu0 %v779
    %880 = vmatprep.subr.bf16.mxu0 %v784
    %881 = vmatpush1.bf16.msra.mxu0 %v783
    %882 = vmatprep.subr.bf16.mxu0 %v788
    %883 = vmatpush1.bf16.msra.mxu0 %v787
    %884 = vmatprep.subr.bf16.mxu0 %v792
    %885 = vmatpush1.bf16.msra.mxu0 %v791
    %886 = vmatprep.subr.bf16.mxu0 %v796
    %887 = vmatpush1.bf16.msra.mxu0 %v795
    %888 = vmatprep.subr.bf16.mxu0 %v800
    %889 = vmatpush1.bf16.msra.mxu0 %v799
    %890 = vmatprep.subr.bf16.mxu0 0
    %891 = vmatpush1.bf16.msra.mxu0 0
    %892 = vmatprep.subr.bf16.mxu0 0
    %893 = vmatpush1.bf16.msra.mxu0 0
    %894 = vmatprep.subr.bf16.mxu0 0
    %895 = vmatpush1.bf16.msra.mxu0 0
    %896 = vmatprep.subr.bf16.mxu0 0
    %897 = vmatpush1.bf16.msra.mxu0 0
    %898 = vmatprep.subr.bf16.mxu0 0
    %899 = vmatpush1.bf16.msra.mxu0 0
    %900 = vmatprep.subr.bf16.mxu0 0
    %901 = vmatpush1.bf16.msra.mxu0 0
    %902 = vmatprep.subr.bf16.mxu0 0
    %903 = vmatpush1.bf16.msra.mxu0 0
    %904 = vmatprep.subr.bf16.mxu0 0
    %905 = vmatpush1.bf16.msra.mxu0 0
    %906 = vmatprep.mubr.bf16.mxu0 0
    %907 = vmatmul.mubr.bf16.gmra.mrb[0].mxu0 0
    %v908 = vpop.f32.mrb[0].mxu0
    %v909 = vadd.f32 0.0, %v908
    %v910 = vpop.f32.mrb[0].mxu0
    %v911 = vadd.f32 0.0, %v910
    %v912 = vpop.f32.mrb[0].mxu0
    %v913 = vpop.f32.mrb[0].mxu0
    %914 = vdwg.mxu0
    %v915 = vadd.f32 %v637, %v868
    %v916 = vadd.f32 %v638, %v870
    %v917 = vadd.f32 %v639, %v909
    %v918 = vadd.f32 %v640, %v911
    %v919 = vmul.f32 %v915, 0.5
    %v920 = vtanh.pop %v919
    %v921 = vadd.f32 %v920, 1.0
    %v922 = vmul.f32 %v921, 0.5
    %v923 = vmul.f32 %v916, 0.5
    %v924 = vtanh.pop %v923
    %v925 = vadd.f32 %v924, 1.0
    %v926 = vmul.f32 %v925, 0.5
    %v927 = vtanh.pop %v917
    %v928 = vmul.f32 %v918, 0.5
    %v929 = vtanh.pop %v928
    %v930 = vadd.f32 %v929, 1.0
    %v931 = vmul.f32 %v930, 0.5
    %v932 = vmul.f32 %v926, 0.0
    %v933 = vmul.f32 %v922, %v927
    %v934 = vadd.f32 %v932, %v933
    %v935 = vtanh.pop %v934
    %v936 = vmul.f32 %v931, %v935
    %v937 = vpack.c.bf16 %v936, %v936
    %938 = vst [vmem:[#allocation3] sm:$0xf] %v937
    %s939 = scalar_lea.vmem [#allocation2], 16
    %v940 = vld [vmem:[%s939] sm:$0xff]
    %v941 = vld [vmem:[%s939 + $0x8] sm:$0xff]
    %v942 = vunpack.c.l.bf16 %v940
    %v943 = vunpack.c.h.bf16 %v940
    %v944 = vunpack.c.l.bf16 %v941
    %v945 = vunpack.c.h.bf16 %v941
    %v946 = vld [vmem:[#allocation6] sm:$0xff]
    %v947 = vld [vmem:[#allocation6 + $0x8] sm:$0xff]
    %v948 = vld [vmem:[#allocation6 + $0x10] sm:$0xff]
    %v949 = vld [vmem:[#allocation6 + $0x18] sm:$0xff]
    %v950 = vld [vmem:[#allocation6 + $0x20] sm:$0xff]
    %v951 = vld [vmem:[#allocation6 + $0x28] sm:$0xff]
    %v952 = vld [vmem:[#allocation6 + $0x30] sm:$0xff]
    %v953 = vld [vmem:[#allocation6 + $0x38] sm:$0xff]
    %v954 = vld [vmem:[#allocation6 + $0x40] sm:$0xff]
    %v955 = vld [vmem:[#allocation6 + $0x48] sm:$0xff]
    %v956 = vld [vmem:[#allocation6 + $0x50] sm:$0xff]
    %v957 = vld [vmem:[#allocation6 + $0x58] sm:$0xff]
    %v958 = vld [vmem:[#allocation6 + $0x60] sm:$0xff]
    %v959 = vld [vmem:[#allocation6 + $0x68] sm:$0xff]
    %v960 = vld [vmem:[#allocation6 + $0x70] sm:$0xff]
    %v961 = vld [vmem:[#allocation6 + $0x78] sm:$0xff]
    %v962 = vld [vmem:[#allocation6 + $0x80] sm:$0xff]
    %v963 = vld [vmem:[#allocation6 + $0x88] sm:$0xff]
    %v964 = vld [vmem:[#allocation6 + $0x90] sm:$0xff]
    %v965 = vld [vmem:[#allocation6 + $0x98] sm:$0xff]
    %v966 = vld [vmem:[#allocation6 + $0xa0] sm:$0xff]
    %v967 = vld [vmem:[#allocation6 + $0xa8] sm:$0xff]
    %v968 = vld [vmem:[#allocation6 + $0xb0] sm:$0xff]
    %v969 = vld [vmem:[#allocation6 + $0xb8] sm:$0xff]
    %v970 = vld [vmem:[#allocation6 + $0xc0] sm:$0xff]
    %v971 = vld [vmem:[#allocation6 + $0xc8] sm:$0xff]
    %v972 = vld [vmem:[#allocation6 + $0xd0] sm:$0xff]
    %v973 = vld [vmem:[#allocation6 + $0xd8] sm:$0xff]
    %v974 = vld [vmem:[#allocation6 + $0xe0] sm:$0xff]
    %v975 = vld [vmem:[#allocation6 + $0xe8] sm:$0xff]
    %v976 = vld [vmem:[#allocation6 + $0xf0] sm:$0xff]
    %v977 = vld [vmem:[#allocation6 + $0xf8] sm:$0xff]
    %v1010 = vunpack.c.l.b16 %v946
    %v1011 = vunpack.c.h.b16 %v946
    %v1012 = vunpack.c.l.b16 %v947
    %v1013 = vunpack.c.h.b16 %v947
    %v1014 = vunpack.c.l.b16 %v948
    %v1015 = vunpack.c.h.b16 %v948
    %v1016 = vunpack.c.l.b16 %v949
    %v1017 = vunpack.c.h.b16 %v949
    %v1018 = vunpack.c.l.b16 %v950
    %v1019 = vunpack.c.h.b16 %v950
    %v1020 = vunpack.c.l.b16 %v951
    %v1021 = vunpack.c.h.b16 %v951
    %v1022 = vunpack.c.l.b16 %v952
    %v1023 = vunpack.c.h.b16 %v952
    %v1024 = vunpack.c.l.b16 %v953
    %v1025 = vunpack.c.h.b16 %v953
    %v1026 = vunpack.c.l.b16 %v954
    %v1027 = vunpack.c.h.b16 %v954
    %v1028 = vunpack.c.l.b16 %v955
    %v1029 = vunpack.c.h.b16 %v955
    %v1030 = vunpack.c.l.b16 %v956
    %v1031 = vunpack.c.h.b16 %v956
    %v1032 = vunpack.c.l.b16 %v957
    %v1033 = vunpack.c.h.b16 %v957
    %v1034 = vunpack.c.l.b16 %v958
    %v1035 = vunpack.c.h.b16 %v958
    %v1036 = vunpack.c.l.b16 %v959
    %v1037 = vunpack.c.h.b16 %v959
    %v1038 = vunpack.c.l.b16 %v960
    %v1039 = vunpack.c.h.b16 %v960
    %v1040 = vunpack.c.l.b16 %v961
    %v1041 = vunpack.c.h.b16 %v961
    %v1042 = vunpack.c.l.b16 %v962
    %v1043 = vunpack.c.h.b16 %v962
    %v1044 = vunpack.c.l.b16 %v963
    %v1045 = vunpack.c.h.b16 %v963
    %v1046 = vunpack.c.l.b16 %v964
    %v1047 = vunpack.c.h.b16 %v964
    %v1048 = vunpack.c.l.b16 %v965
    %v1049 = vunpack.c.h.b16 %v965
    %v1050 = vunpack.c.l.b16 %v966
    %v1051 = vunpack.c.h.b16 %v966
    %v1052 = vunpack.c.l.b16 %v967
    %v1053 = vunpack.c.h.b16 %v967
    %v1054 = vunpack.c.l.b16 %v968
    %v1055 = vunpack.c.h.b16 %v968
    %v1056 = vunpack.c.l.b16 %v969
    %v1057 = vunpack.c.h.b16 %v969
    %v1058 = vunpack.c.l.b16 %v970
    %v1059 = vunpack.c.h.b16 %v970
    %v1060 = vunpack.c.l.b16 %v971
    %v1061 = vunpack.c.h.b16 %v971
    %v1062 = vunpack.c.l.b16 %v972
    %v1063 = vunpack.c.h.b16 %v972
    %v1064 = vunpack.c.l.b16 %v973
    %v1065 = vunpack.c.h.b16 %v973
    %v1066 = vunpack.c.l.b16 %v974
    %v1067 = vunpack.c.h.b16 %v974
    %v1068 = vunpack.c.l.b16 %v975
    %v1069 = vunpack.c.h.b16 %v975
    %v1070 = vunpack.c.l.b16 %v976
    %v1071 = vunpack.c.h.b16 %v976
    %v1072 = vunpack.c.l.b16 %v977
    %v1073 = vunpack.c.h.b16 %v977
    %v1074 = vpack.c.b16 %v1014, %v1010
    %v1075 = vpack.c.b16 %v1015, %v1011
    %v1076 = vpack.c.b16 %v1016, %v1012
    %v1077 = vpack.c.b16 %v1017, %v1013
    %v1078 = vpack.c.b16 %v1022, %v1018
    %v1079 = vpack.c.b16 %v1023, %v1019
    %v1080 = vpack.c.b16 %v1024, %v1020
    %v1081 = vpack.c.b16 %v1025, %v1021
    %v1082 = vpack.c.b16 %v1030, %v1026
    %v1083 = vpack.c.b16 %v1031, %v1027
    %v1084 = vpack.c.b16 %v1032, %v1028
    %v1085 = vpack.c.b16 %v1033, %v1029
    %v1086 = vpack.c.b16 %v1038, %v1034
    %v1087 = vpack.c.b16 %v1039, %v1035
    %v1088 = vpack.c.b16 %v1040, %v1036
    %v1089 = vpack.c.b16 %v1041, %v1037
    %v1090 = vpack.c.b16 %v1046, %v1042
    %v1091 = vpack.c.b16 %v1047, %v1043
    %v1092 = vpack.c.b16 %v1048, %v1044
    %v1093 = vpack.c.b16 %v1049, %v1045
    %v1094 = vpack.c.b16 %v1054, %v1050
    %v1095 = vpack.c.b16 %v1055, %v1051
    %v1096 = vpack.c.b16 %v1056, %v1052
    %v1097 = vpack.c.b16 %v1057, %v1053
    %v1098 = vpack.c.b16 %v1062, %v1058
    %v1099 = vpack.c.b16 %v1063, %v1059
    %v1100 = vpack.c.b16 %v1064, %v1060
    %v1101 = vpack.c.b16 %v1065, %v1061
    %v1102 = vpack.c.b16 %v1070, %v1066
    %v1103 = vpack.c.b16 %v1071, %v1067
    %v1104 = vpack.c.b16 %v1072, %v1068
    %v1105 = vpack.c.b16 %v1073, %v1069
    %1138 = vmatprep.subr.bf16.mxu0 %v1075
    %1139 = vmatpush1.bf16.msra.mxu0 %v1074
    %1140 = vmatprep.subr.bf16.mxu0 %v1079
    %1141 = vmatpush1.bf16.msra.mxu0 %v1078
    %1142 = vmatprep.subr.bf16.mxu0 %v1083
    %1143 = vmatpush1.bf16.msra.mxu0 %v1082
    %1144 = vmatprep.subr.bf16.mxu0 %v1087
    %1145 = vmatpush1.bf16.msra.mxu0 %v1086
    %1146 = vmatprep.subr.bf16.mxu0 %v1091
    %1147 = vmatpush1.bf16.msra.mxu0 %v1090
    %1148 = vmatprep.subr.bf16.mxu0 %v1095
    %1149 = vmatpush1.bf16.msra.mxu0 %v1094
    %1150 = vmatprep.subr.bf16.mxu0 %v1099
    %1151 = vmatpush1.bf16.msra.mxu0 %v1098
    %1152 = vmatprep.subr.bf16.mxu0 %v1103
    %1153 = vmatpush1.bf16.msra.mxu0 %v1102
    %1154 = vmatprep.subr.bf16.mxu0 0
    %1155 = vmatpush1.bf16.msra.mxu0 0
    %1156 = vmatprep.subr.bf16.mxu0 0
    %1157 = vmatpush1.bf16.msra.mxu0 0
    %1158 = vmatprep.subr.bf16.mxu0 0
    %1159 = vmatpush1.bf16.msra.mxu0 0
    %1160 = vmatprep.subr.bf16.mxu0 0
    %1161 = vmatpush1.bf16.msra.mxu0 0
    %1162 = vmatprep.subr.bf16.mxu0 0
    %1163 = vmatpush1.bf16.msra.mxu0 0
    %1164 = vmatprep.subr.bf16.mxu0 0
    %1165 = vmatpush1.bf16.msra.mxu0 0
    %1166 = vmatprep.subr.bf16.mxu0 0
    %1167 = vmatpush1.bf16.msra.mxu0 0
    %1168 = vmatprep.subr.bf16.mxu0 0
    %1169 = vmatpush1.bf16.msra.mxu0 0
    %1170 = vmatprep.mubr.bf16.mxu0 0
    %1171 = vmatmul.mubr.bf16.gmra.mrb[0].mxu0 %v937
    %v1172 = vpop.f32.mrb[0].mxu0
    %v1173 = vadd.f32 0.0, %v1172
    %v1174 = vpop.f32.mrb[0].mxu0
    %v1175 = vadd.f32 0.0, %v1174
    %v1176 = vpop.f32.mrb[0].mxu0
    %v1177 = vpop.f32.mrb[0].mxu0
    %1178 = vdwg.mxu0
    %1179 = vmatprep.subr.bf16.mxu0 %v1077
    %1180 = vmatpush1.bf16.msra.mxu0 %v1076
    %1181 = vmatprep.subr.bf16.mxu0 %v1081
    %1182 = vmatpush1.bf16.msra.mxu0 %v1080
    %1183 = vmatprep.subr.bf16.mxu0 %v1085
    %1184 = vmatpush1.bf16.msra.mxu0 %v1084
    %1185 = vmatprep.subr.bf16.mxu0 %v1089
    %1186 = vmatpush1.bf16.msra.mxu0 %v1088
    %1187 = vmatprep.subr.bf16.mxu0 %v1093
    %1188 = vmatpush1.bf16.msra.mxu0 %v1092
    %1189 = vmatprep.subr.bf16.mxu0 %v1097
    %1190 = vmatpush1.bf16.msra.mxu0 %v1096
    %1191 = vmatprep.subr.bf16.mxu0 %v1101
    %1192 = vmatpush1.bf16.msra.mxu0 %v1100
    %1193 = vmatprep.subr.bf16.mxu0 %v1105
    %1194 = vmatpush1.bf16.msra.mxu0 %v1104
    %1195 = vmatprep.subr.bf16.mxu0 0
    %1196 = vmatpush1.bf16.msra.mxu0 0
    %1197 = vmatprep.subr.bf16.mxu0 0
    %1198 = vmatpush1.bf16.msra.mxu0 0
    %1199 = vmatprep.subr.bf16.mxu0 0
    %1200 = vmatpush1.bf16.msra.mxu0 0
    %1201 = vmatprep.subr.bf16.mxu0 0
    %1202 = vmatpush1.bf16.msra.mxu0 0
    %1203 = vmatprep.subr.bf16.mxu0 0
    %1204 = vmatpush1.bf16.msra.mxu0 0
    %1205 = vmatprep.subr.bf16.mxu0 0
    %1206 = vmatpush1.bf16.msra.mxu0 0
    %1207 = vmatprep.subr.bf16.mxu0 0
    %1208 = vmatpush1.bf16.msra.mxu0 0
    %1209 = vmatprep.subr.bf16.mxu0 0
    %1210 = vmatpush1.bf16.msra.mxu0 0
    %1211 = vmatprep.mubr.bf16.mxu0 0
    %1212 = vmatmul.mubr.bf16.gmra.mrb[0].mxu0 %v937
    %v1213 = vpop.f32.mrb[0].mxu0
    %v1214 = vadd.f32 0.0, %v1213
    %v1215 = vpop.f32.mrb[0].mxu0
    %v1216 = vadd.f32 0.0, %v1215
    %v1217 = vpop.f32.mrb[0].mxu0
    %v1218 = vpop.f32.mrb[0].mxu0
    %1219 = vdwg.mxu0
    %v1220 = vadd.f32 %v942, %v1173
    %v1221 = vadd.f32 %v943, %v1175
    %v1222 = vadd.f32 %v944, %v1214
    %v1223 = vadd.f32 %v945, %v1216
    %v1224 = vmul.f32 %v1220, 0.5
    %v1225 = vtanh.pop %v1224
    %v1226 = vadd.f32 %v1225, 1.0
    %v1227 = vmul.f32 %v1226, 0.5
    %v1228 = vmul.f32 %v1221, 0.5
    %v1229 = vtanh.pop %v1228
    %v1230 = vadd.f32 %v1229, 1.0
    %v1231 = vmul.f32 %v1230, 0.5
    %v1232 = vtanh.pop %v1222
    %v1233 = vmul.f32 %v1223, 0.5
    %v1234 = vtanh.pop %v1233
    %v1235 = vadd.f32 %v1234, 1.0
    %v1236 = vmul.f32 %v1235, 0.5
    %v1237 = vmul.f32 %v1231, %v934
    %v1238 = vmul.f32 %v1227, %v1232
    %v1239 = vadd.f32 %v1237, %v1238
    %v1240 = vtanh.pop %v1239
    %v1241 = vmul.f32 %v1236, %v1240
    %v1242 = vpack.c.bf16 %v1241, %v1241
    %s1243 = scalar_lea.vmem [#allocation3], 4
    %1244 = vst [vmem:[%s1243] sm:$0xf] %v1242
    %s1245 = scalar_lea.vmem [#allocation2], 32
    %v1246 = vld [vmem:[%s1245] sm:$0xff]
    %v1247 = vld [vmem:[%s1245 + $0x8] sm:$0xff]
    %v1248 = vunpack.c.l.bf16 %v1246
    %v1249 = vunpack.c.h.bf16 %v1246
    %v1250 = vunpack.c.l.bf16 %v1247
    %v1251 = vunpack.c.h.bf16 %v1247
    %v1252 = vld [vmem:[#allocation6] sm:$0xff]
    %v1253 = vld [vmem:[#allocation6 + $0x8] sm:$0xff]
    %v1254 = vld [vmem:[#allocation6 + $0x10] sm:$0xff]
    %v1255 = vld [vmem:[#allocation6 + $0x18] sm:$0xff]
    %v1256 = vld [vmem:[#allocation6 + $0x20] sm:$0xff]
    %v1257 = vld [vmem:[#allocation6 + $0x28] sm:$0xff]
    %v1258 = vld [vmem:[#allocation6 + $0x30] sm:$0xff]
    %v1259 = vld [vmem:[#allocation6 + $0x38] sm:$0xff]
    %v1260 = vld [vmem:[#allocation6 + $0x40] sm:$0xff]
    %v1261 = vld [vmem:[#allocation6 + $0x48] sm:$0xff]
    %v1262 = vld [vmem:[#allocation6 + $0x50] sm:$0xff]
    %v1263 = vld [vmem:[#allocation6 + $0x58] sm:$0xff]
    %v1264 = vld [vmem:[#allocation6 + $0x60] sm:$0xff]
    %v1265 = vld [vmem:[#allocation6 + $0x68] sm:$0xff]
    %v1266 = vld [vmem:[#allocation6 + $0x70] sm:$0xff]
    %v1267 = vld [vmem:[#allocation6 + $0x78] sm:$0xff]
    %v1268 = vld [vmem:[#allocation6 + $0x80] sm:$0xff]
    %v1269 = vld [vmem:[#allocation6 + $0x88] sm:$0xff]
    %v1270 = vld [vmem:[#allocation6 + $0x90] sm:$0xff]
    %v1271 = vld [vmem:[#allocation6 + $0x98] sm:$0xff]
    %v1272 = vld [vmem:[#allocation6 + $0xa0] sm:$0xff]
    %v1273 = vld [vmem:[#allocation6 + $0xa8] sm:$0xff]
    %v1274 = vld [vmem:[#allocation6 + $0xb0] sm:$0xff]
    %v1275 = vld [vmem:[#allocation6 + $0xb8] sm:$0xff]
    %v1276 = vld [vmem:[#allocation6 + $0xc0] sm:$0xff]
    %v1277 = vld [vmem:[#allocation6 + $0xc8] sm:$0xff]
    %v1278 = vld [vmem:[#allocation6 + $0xd0] sm:$0xff]
    %v1279 = vld [vmem:[#allocation6 + $0xd8] sm:$0xff]
    %v1280 = vld [vmem:[#allocation6 + $0xe0] sm:$0xff]
    %v1281 = vld [vmem:[#allocation6 + $0xe8] sm:$0xff]
    %v1282 = vld [vmem:[#allocation6 + $0xf0] sm:$0xff]
    %v1283 = vld [vmem:[#allocation6 + $0xf8] sm:$0xff]
    %v1316 = vunpack.c.l.b16 %v1252
    %v1317 = vunpack.c.h.b16 %v1252
    %v1318 = vunpack.c.l.b16 %v1253
    %v1319 = vunpack.c.h.b16 %v1253
    %v1320 = vunpack.c.l.b16 %v1254
    %v1321 = vunpack.c.h.b16 %v1254
    %v1322 = vunpack.c.l.b16 %v1255
    %v1323 = vunpack.c.h.b16 %v1255
    %v1324 = vunpack.c.l.b16 %v1256
    %v1325 = vunpack.c.h.b16 %v1256
    %v1326 = vunpack.c.l.b16 %v1257
    %v1327 = vunpack.c.h.b16 %v1257
    %v1328 = vunpack.c.l.b16 %v1258
    %v1329 = vunpack.c.h.b16 %v1258
    %v1330 = vunpack.c.l.b16 %v1259
    %v1331 = vunpack.c.h.b16 %v1259
    %v1332 = vunpack.c.l.b16 %v1260
    %v1333 = vunpack.c.h.b16 %v1260
    %v1334 = vunpack.c.l.b16 %v1261
    %v1335 = vunpack.c.h.b16 %v1261
    %v1336 = vunpack.c.l.b16 %v1262
    %v1337 = vunpack.c.h.b16 %v1262
    %v1338 = vunpack.c.l.b16 %v1263
    %v1339 = vunpack.c.h.b16 %v1263
    %v1340 = vunpack.c.l.b16 %v1264
    %v1341 = vunpack.c.h.b16 %v1264
    %v1342 = vunpack.c.l.b16 %v1265
    %v1343 = vunpack.c.h.b16 %v1265
    %v1344 = vunpack.c.l.b16 %v1266
    %v1345 = vunpack.c.h.b16 %v1266
    %v1346 = vunpack.c.l.b16 %v1267
    %v1347 = vunpack.c.h.b16 %v1267
    %v1348 = vunpack.c.l.b16 %v1268
    %v1349 = vunpack.c.h.b16 %v1268
    %v1350 = vunpack.c.l.b16 %v1269
    %v1351 = vunpack.c.h.b16 %v1269
    %v1352 = vunpack.c.l.b16 %v1270
    %v1353 = vunpack.c.h.b16 %v1270
    %v1354 = vunpack.c.l.b16 %v1271
    %v1355 = vunpack.c.h.b16 %v1271
    %v1356 = vunpack.c.l.b16 %v1272
    %v1357 = vunpack.c.h.b16 %v1272
    %v1358 = vunpack.c.l.b16 %v1273
    %v1359 = vunpack.c.h.b16 %v1273
    %v1360 = vunpack.c.l.b16 %v1274
    %v1361 = vunpack.c.h.b16 %v1274
    %v1362 = vunpack.c.l.b16 %v1275
    %v1363 = vunpack.c.h.b16 %v1275
    %v1364 = vunpack.c.l.b16 %v1276
    %v1365 = vunpack.c.h.b16 %v1276
    %v1366 = vunpack.c.l.b16 %v1277
    %v1367 = vunpack.c.h.b16 %v1277
    %v1368 = vunpack.c.l.b16 %v1278
    %v1369 = vunpack.c.h.b16 %v1278
    %v1370 = vunpack.c.l.b16 %v1279
    %v1371 = vunpack.c.h.b16 %v1279
    %v1372 = vunpack.c.l.b16 %v1280
    %v1373 = vunpack.c.h.b16 %v1280
    %v1374 = vunpack.c.l.b16 %v1281
    %v1375 = vunpack.c.h.b16 %v1281
    %v1376 = vunpack.c.l.b16 %v1282
    %v1377 = vunpack.c.h.b16 %v1282
    %v1378 = vunpack.c.l.b16 %v1283
    %v1379 = vunpack.c.h.b16 %v1283
    %v1380 = vpack.c.b16 %v1320, %v1316
    %v1381 = vpack.c.b16 %v1321, %v1317
    %v1382 = vpack.c.b16 %v1322, %v1318
    %v1383 = vpack.c.b16 %v1323, %v1319
    %v1384 = vpack.c.b16 %v1328, %v1324
    %v1385 = vpack.c.b16 %v1329, %v1325
    %v1386 = vpack.c.b16 %v1330, %v1326
    %v1387 = vpack.c.b16 %v1331, %v1327
    %v1388 = vpack.c.b16 %v1336, %v1332
    %v1389 = vpack.c.b16 %v1337, %v1333
    %v1390 = vpack.c.b16 %v1338, %v1334
    %v1391 = vpack.c.b16 %v1339, %v1335
    %v1392 = vpack.c.b16 %v1344, %v1340
    %v1393 = vpack.c.b16 %v1345, %v1341
    %v1394 = vpack.c.b16 %v1346, %v1342
    %v1395 = vpack.c.b16 %v1347, %v1343
    %v1396 = vpack.c.b16 %v1352, %v1348
    %v1397 = vpack.c.b16 %v1353, %v1349
    %v1398 = vpack.c.b16 %v1354, %v1350
    %v1399 = vpack.c.b16 %v1355, %v1351
    %v1400 = vpack.c.b16 %v1360, %v1356
    %v1401 = vpack.c.b16 %v1361, %v1357
    %v1402 = vpack.c.b16 %v1362, %v1358
    %v1403 = vpack.c.b16 %v1363, %v1359
    %v1404 = vpack.c.b16 %v1368, %v1364
    %v1405 = vpack.c.b16 %v1369, %v1365
    %v1406 = vpack.c.b16 %v1370, %v1366
    %v1407 = vpack.c.b16 %v1371, %v1367
    %v1408 = vpack.c.b16 %v1376, %v1372
    %v1409 = vpack.c.b16 %v1377, %v1373
    %v1410 = vpack.c.b16 %v1378, %v1374
    %v1411 = vpack.c.b16 %v1379, %v1375
    %1444 = vmatprep.subr.bf16.mxu0 %v1381
    %1445 = vmatpush1.bf16.msra.mxu0 %v1380
    %1446 = vmatprep.subr.bf16.mxu0 %v1385
    %1447 = vmatpush1.bf16.msra.mxu0 %v1384
    %1448 = vmatprep.subr.bf16.mxu0 %v1389
    %1449 = vmatpush1.bf16.msra.mxu0 %v1388
    %1450 = vmatprep.subr.bf16.mxu0 %v1393
    %1451 = vmatpush1.bf16.msra.mxu0 %v1392
    %1452 = vmatprep.subr.bf16.mxu0 %v1397
    %1453 = vmatpush1.bf16.msra.mxu0 %v1396
    %1454 = vmatprep.subr.bf16.mxu0 %v1401
    %1455 = vmatpush1.bf16.msra.mxu0 %v1400
    %1456 = vmatprep.subr.bf16.mxu0 %v1405
    %1457 = vmatpush1.bf16.msra.mxu0 %v1404
    %1458 = vmatprep.subr.bf16.mxu0 %v1409
    %1459 = vmatpush1.bf16.msra.mxu0 %v1408
    %1460 = vmatprep.subr.bf16.mxu0 0
    %1461 = vmatpush1.bf16.msra.mxu0 0
    %1462 = vmatprep.subr.bf16.mxu0 0
    %1463 = vmatpush1.bf16.msra.mxu0 0
    %1464 = vmatprep.subr.bf16.mxu0 0
    %1465 = vmatpush1.bf16.msra.mxu0 0
    %1466 = vmatprep.subr.bf16.mxu0 0
    %1467 = vmatpush1.bf16.msra.mxu0 0
    %1468 = vmatprep.subr.bf16.mxu0 0
    %1469 = vmatpush1.bf16.msra.mxu0 0
    %1470 = vmatprep.subr.bf16.mxu0 0
    %1471 = vmatpush1.bf16.msra.mxu0 0
    %1472 = vmatprep.subr.bf16.mxu0 0
    %1473 = vmatpush1.bf16.msra.mxu0 0
    %1474 = vmatprep.subr.bf16.mxu0 0
    %1475 = vmatpush1.bf16.msra.mxu0 0
    %1476 = vmatprep.mubr.bf16.mxu0 0
    %1477 = vmatmul.mubr.bf16.gmra.mrb[0].mxu0 %v1242
    %v1478 = vpop.f32.mrb[0].mxu0
    %v1479 = vadd.f32 0.0, %v1478
    %v1480 = vpop.f32.mrb[0].mxu0
    %v1481 = vadd.f32 0.0, %v1480
    %v1482 = vpop.f32.mrb[0].mxu0
    %v1483 = vpop.f32.mrb[0].mxu0
    %1484 = vdwg.mxu0
    %1485 = vmatprep.subr.bf16.mxu0 %v1383
    %1486 = vmatpush1.bf16.msra.mxu0 %v1382
    %1487 = vmatprep.subr.bf16.mxu0 %v1387
    %1488 = vmatpush1.bf16.msra.mxu0 %v1386
    %1489 = vmatprep.subr.bf16.mxu0 %v1391
    %1490 = vmatpush1.bf16.msra.mxu0 %v1390
    %1491 = vmatprep.subr.bf16.mxu0 %v1395
    %1492 = vmatpush1.bf16.msra.mxu0 %v1394
    %1493 = vmatprep.subr.bf16.mxu0 %v1399
    %1494 = vmatpush1.bf16.msra.mxu0 %v1398
    %1495 = vmatprep.subr.bf16.mxu0 %v1403
    %1496 = vmatpush1.bf16.msra.mxu0 %v1402
    %1497 = vmatprep.subr.bf16.mxu0 %v1407
    %1498 = vmatpush1.bf16.msra.mxu0 %v1406
    %1499 = vmatprep.subr.bf16.mxu0 %v1411
    %1500 = vmatpush1.bf16.msra.mxu0 %v1410
    %1501 = vmatprep.subr.bf16.mxu0 0
    %1502 = vmatpush1.bf16.msra.mxu0 0
    %1503 = vmatprep.subr.bf16.mxu0 0
    %1504 = vmatpush1.bf16.msra.mxu0 0
    %1505 = vmatprep.subr.bf16.mxu0 0
    %1506 = vmatpush1.bf16.msra.mxu0 0
    %1507 = vmatprep.subr.bf16.mxu0 0
    %1508 = vmatpush1.bf16.msra.mxu0 0
    %1509 = vmatprep.subr.bf16.mxu0 0
    %1510 = vmatpush1.bf16.msra.mxu0 0
    %1511 = vmatprep.subr.bf16.mxu0 0
    %1512 = vmatpush1.bf16.msra.mxu0 0
    %1513 = vmatprep.subr.bf16.mxu0 0
    %1514 = vmatpush1.bf16.msra.mxu0 0
    %1515 = vmatprep.subr.bf16.mxu0 0
    %1516 = vmatpush1.bf16.msra.mxu0 0
    %1517 = vmatprep.mubr.bf16.mxu0 0
    %1518 = vmatmul.mubr.bf16.gmra.mrb[0].mxu0 %v1242
    %v1519 = vpop.f32.mrb[0].mxu0
    %v1520 = vadd.f32 0.0, %v1519
    %v1521 = vpop.f32.mrb[0].mxu0
    %v1522 = vadd.f32 0.0, %v1521
    %v1523 = vpop.f32.mrb[0].mxu0
    %v1524 = vpop.f32.mrb[0].mxu0
    %1525 = vdwg.mxu0
    %v1526 = vadd.f32 %v1248, %v1479
    %v1527 = vadd.f32 %v1249, %v1481
    %v1528 = vadd.f32 %v1250, %v1520
    %v1529 = vadd.f32 %v1251, %v1522
    %v1530 = vmul.f32 %v1526, 0.5
    %v1531 = vtanh.pop %v1530
    %v1532 = vadd.f32 %v1531, 1.0
    %v1533 = vmul.f32 %v1532, 0.5
    %v1534 = vmul.f32 %v1527, 0.5
    %v1535 = vtanh.pop %v1534
    %v1536 = vadd.f32 %v1535, 1.0
    %v1537 = vmul.f32 %v1536, 0.5
    %v1538 = vtanh.pop %v1528
    %v1539 = vmul.f32 %v1529, 0.5
    %v1540 = vtanh.pop %v1539
    %v1541 = vadd.f32 %v1540, 1.0
    %v1542 = vmul.f32 %v1541, 0.5
    %v1543 = vmul.f32 %v1537, %v1239
    %v1544 = vmul.f32 %v1533, %v1538
    %v1545 = vadd.f32 %v1543, %v1544
    %v1546 = vtanh.pop %v1545
    %v1547 = vmul.f32 %v1542, %v1546
    %v1548 = vpack.c.bf16 %v1547, %v1547
    %s1549 = scalar_lea.vmem [#allocation3], 8
    %1550 = vst [vmem:[%s1549] sm:$0xf] %v1548
    %s1551 = scalar_lea.vmem [#allocation2], 48
    %v1552 = vld [vmem:[%s1551] sm:$0xff]
    %v1553 = vld [vmem:[%s1551 + $0x8] sm:$0xff]
    %v1554 = vunpack.c.l.bf16 %v1552
    %v1555 = vunpack.c.h.bf16 %v1552
    %v1556 = vunpack.c.l.bf16 %v1553
    %v1557 = vunpack.c.h.bf16 %v1553
    %v1558 = vld [vmem:[#allocation6] sm:$0xff]
    %v1559 = vld [vmem:[#allocation6 + $0x8] sm:$0xff]
    %v1560 = vld [vmem:[#allocation6 + $0x10] sm:$0xff]
    %v1561 = vld [vmem:[#allocation6 + $0x18] sm:$0xff]
    %v1562 = vld [vmem:[#allocation6 + $0x20] sm:$0xff]
    %v1563 = vld [vmem:[#allocation6 + $0x28] sm:$0xff]
    %v1564 = vld [vmem:[#allocation6 + $0x30] sm:$0xff]
    %v1565 = vld [vmem:[#allocation6 + $0x38] sm:$0xff]
    %v1566 = vld [vmem:[#allocation6 + $0x40] sm:$0xff]
    %v1567 = vld [vmem:[#allocation6 + $0x48] sm:$0xff]
    %v1568 = vld [vmem:[#allocation6 + $0x50] sm:$0xff]
    %v1569 = vld [vmem:[#allocation6 + $0x58] sm:$0xff]
    %v1570 = vld [vmem:[#allocation6 + $0x60] sm:$0xff]
    %v1571 = vld [vmem:[#allocation6 + $0x68] sm:$0xff]
    %v1572 = vld [vmem:[#allocation6 + $0x70] sm:$0xff]
    %v1573 = vld [vmem:[#allocation6 + $0x78] sm:$0xff]
    %v1574 = vld [vmem:[#allocation6 + $0x80] sm:$0xff]
    %v1575 = vld [vmem:[#allocation6 + $0x88] sm:$0xff]
    %v1576 = vld [vmem:[#allocation6 + $0x90] sm:$0xff]
    %v1577 = vld [vmem:[#allocation6 + $0x98] sm:$0xff]
    %v1578 = vld [vmem:[#allocation6 + $0xa0] sm:$0xff]
    %v1579 = vld [vmem:[#allocation6 + $0xa8] sm:$0xff]
    %v1580 = vld [vmem:[#allocation6 + $0xb0] sm:$0xff]
    %v1581 = vld [vmem:[#allocation6 + $0xb8] sm:$0xff]
    %v1582 = vld [vmem:[#allocation6 + $0xc0] sm:$0xff]
    %v1583 = vld [vmem:[#allocation6 + $0xc8] sm:$0xff]
    %v1584 = vld [vmem:[#allocation6 + $0xd0] sm:$0xff]
    %v1585 = vld [vmem:[#allocation6 + $0xd8] sm:$0xff]
    %v1586 = vld [vmem:[#allocation6 + $0xe0] sm:$0xff]
    %v1587 = vld [vmem:[#allocation6 + $0xe8] sm:$0xff]
    %v1588 = vld [vmem:[#allocation6 + $0xf0] sm:$0xff]
    %v1589 = vld [vmem:[#allocation6 + $0xf8] sm:$0xff]
    %v1622 = vunpack.c.l.b16 %v1558
    %v1623 = vunpack.c.h.b16 %v1558
    %v1624 = vunpack.c.l.b16 %v1559
    %v1625 = vunpack.c.h.b16 %v1559
    %v1626 = vunpack.c.l.b16 %v1560
    %v1627 = vunpack.c.h.b16 %v1560
    %v1628 = vunpack.c.l.b16 %v1561
    %v1629 = vunpack.c.h.b16 %v1561
    %v1630 = vunpack.c.l.b16 %v1562
    %v1631 = vunpack.c.h.b16 %v1562
    %v1632 = vunpack.c.l.b16 %v1563
    %v1633 = vunpack.c.h.b16 %v1563
    %v1634 = vunpack.c.l.b16 %v1564
    %v1635 = vunpack.c.h.b16 %v1564
    %v1636 = vunpack.c.l.b16 %v1565
    %v1637 = vunpack.c.h.b16 %v1565
    %v1638 = vunpack.c.l.b16 %v1566
    %v1639 = vunpack.c.h.b16 %v1566
    %v1640 = vunpack.c.l.b16 %v1567
    %v1641 = vunpack.c.h.b16 %v1567
    %v1642 = vunpack.c.l.b16 %v1568
    %v1643 = vunpack.c.h.b16 %v1568
    %v1644 = vunpack.c.l.b16 %v1569
    %v1645 = vunpack.c.h.b16 %v1569
    %v1646 = vunpack.c.l.b16 %v1570
    %v1647 = vunpack.c.h.b16 %v1570
    %v1648 = vunpack.c.l.b16 %v1571
    %v1649 = vunpack.c.h.b16 %v1571
    %v1650 = vunpack.c.l.b16 %v1572
    %v1651 = vunpack.c.h.b16 %v1572
    %v1652 = vunpack.c.l.b16 %v1573
    %v1653 = vunpack.c.h.b16 %v1573
    %v1654 = vunpack.c.l.b16 %v1574
    %v1655 = vunpack.c.h.b16 %v1574
    %v1656 = vunpack.c.l.b16 %v1575
    %v1657 = vunpack.c.h.b16 %v1575
    %v1658 = vunpack.c.l.b16 %v1576
    %v1659 = vunpack.c.h.b16 %v1576
    %v1660 = vunpack.c.l.b16 %v1577
    %v1661 = vunpack.c.h.b16 %v1577
    %v1662 = vunpack.c.l.b16 %v1578
    %v1663 = vunpack.c.h.b16 %v1578
    %v1664 = vunpack.c.l.b16 %v1579
    %v1665 = vunpack.c.h.b16 %v1579
    %v1666 = vunpack.c.l.b16 %v1580
    %v1667 = vunpack.c.h.b16 %v1580
    %v1668 = vunpack.c.l.b16 %v1581
    %v1669 = vunpack.c.h.b16 %v1581
    %v1670 = vunpack.c.l.b16 %v1582
    %v1671 = vunpack.c.h.b16 %v1582
    %v1672 = vunpack.c.l.b16 %v1583
    %v1673 = vunpack.c.h.b16 %v1583
    %v1674 = vunpack.c.l.b16 %v1584
    %v1675 = vunpack.c.h.b16 %v1584
    %v1676 = vunpack.c.l.b16 %v1585
    %v1677 = vunpack.c.h.b16 %v1585
    %v1678 = vunpack.c.l.b16 %v1586
    %v1679 = vunpack.c.h.b16 %v1586
    %v1680 = vunpack.c.l.b16 %v1587
    %v1681 = vunpack.c.h.b16 %v1587
    %v1682 = vunpack.c.l.b16 %v1588
    %v1683 = vunpack.c.h.b16 %v1588
    %v1684 = vunpack.c.l.b16 %v1589
    %v1685 = vunpack.c.h.b16 %v1589
    %v1686 = vpack.c.b16 %v1626, %v1622
    %v1687 = vpack.c.b16 %v1627, %v1623
    %v1688 = vpack.c.b16 %v1628, %v1624
    %v1689 = vpack.c.b16 %v1629, %v1625
    %v1690 = vpack.c.b16 %v1634, %v1630
    %v1691 = vpack.c.b16 %v1635, %v1631
    %v1692 = vpack.c.b16 %v1636, %v1632
    %v1693 = vpack.c.b16 %v1637, %v1633
    %v1694 = vpack.c.b16 %v1642, %v1638
    %v1695 = vpack.c.b16 %v1643, %v1639
    %v1696 = vpack.c.b16 %v1644, %v1640
    %v1697 = vpack.c.b16 %v1645, %v1641
    %v1698 = vpack.c.b16 %v1650, %v1646
    %v1699 = vpack.c.b16 %v1651, %v1647
    %v1700 = vpack.c.b16 %v1652, %v1648
    %v1701 = vpack.c.b16 %v1653, %v1649
    %v1702 = vpack.c.b16 %v1658, %v1654
    %v1703 = vpack.c.b16 %v1659, %v1655
    %v1704 = vpack.c.b16 %v1660, %v1656
    %v1705 = vpack.c.b16 %v1661, %v1657
    %v1706 = vpack.c.b16 %v1666, %v1662
    %v1707 = vpack.c.b16 %v1667, %v1663
    %v1708 = vpack.c.b16 %v1668, %v1664
    %v1709 = vpack.c.b16 %v1669, %v1665
    %v1710 = vpack.c.b16 %v1674, %v1670
    %v1711 = vpack.c.b16 %v1675, %v1671
    %v1712 = vpack.c.b16 %v1676, %v1672
    %v1713 = vpack.c.b16 %v1677, %v1673
    %v1714 = vpack.c.b16 %v1682, %v1678
    %v1715 = vpack.c.b16 %v1683, %v1679
    %v1716 = vpack.c.b16 %v1684, %v1680
    %v1717 = vpack.c.b16 %v1685, %v1681
    %1750 = vmatprep.subr.bf16.mxu0 %v1687
    %1751 = vmatpush1.bf16.msra.mxu0 %v1686
    %1752 = vmatprep.subr.bf16.mxu0 %v1691
    %1753 = vmatpush1.bf16.msra.mxu0 %v1690
    %1754 = vmatprep.subr.bf16.mxu0 %v1695
    %1755 = vmatpush1.bf16.msra.mxu0 %v1694
    %1756 = vmatprep.subr.bf16.mxu0 %v1699
    %1757 = vmatpush1.bf16.msra.mxu0 %v1698
    %1758 = vmatprep.subr.bf16.mxu0 %v1703
    %1759 = vmatpush1.bf16.msra.mxu0 %v1702
    %1760 = vmatprep.subr.bf16.mxu0 %v1707
    %1761 = vmatpush1.bf16.msra.mxu0 %v1706
    %1762 = vmatprep.subr.bf16.mxu0 %v1711
    %1763 = vmatpush1.bf16.msra.mxu0 %v1710
    %1764 = vmatprep.subr.bf16.mxu0 %v1715
    %1765 = vmatpush1.bf16.msra.mxu0 %v1714
    %1766 = vmatprep.subr.bf16.mxu0 0
    %1767 = vmatpush1.bf16.msra.mxu0 0
    %1768 = vmatprep.subr.bf16.mxu0 0
    %1769 = vmatpush1.bf16.msra.mxu0 0
    %1770 = vmatprep.subr.bf16.mxu0 0
    %1771 = vmatpush1.bf16.msra.mxu0 0
    %1772 = vmatprep.subr.bf16.mxu0 0
    %1773 = vmatpush1.bf16.msra.mxu0 0
    %1774 = vmatprep.subr.bf16.mxu0 0
    %1775 = vmatpush1.bf16.msra.mxu0 0
    %1776 = vmatprep.subr.bf16.mxu0 0
    %1777 = vmatpush1.bf16.msra.mxu0 0
    %1778 = vmatprep.subr.bf16.mxu0 0
    %1779 = vmatpush1.bf16.msra.mxu0 0
    %1780 = vmatprep.subr.bf16.mxu0 0
    %1781 = vmatpush1.bf16.msra.mxu0 0
    %1782 = vmatprep.mubr.bf16.mxu0 0
    %1783 = vmatmul.mubr.bf16.gmra.mrb[0].mxu0 %v1548
    %v1784 = vpop.f32.mrb[0].mxu0
    %v1785 = vadd.f32 0.0, %v1784
    %v1786 = vpop.f32.mrb[0].mxu0
    %v1787 = vadd.f32 0.0, %v1786
    %v1788 = vpop.f32.mrb[0].mxu0
    %v1789 = vpop.f32.mrb[0].mxu0
    %1790 = vdwg.mxu0
    %1791 = vmatprep.subr.bf16.mxu0 %v1689
    %1792 = vmatpush1.bf16.msra.mxu0 %v1688
    %1793 = vmatprep.subr.bf16.mxu0 %v1693
    %1794 = vmatpush1.bf16.msra.mxu0 %v1692
    %1795 = vmatprep.subr.bf16.mxu0 %v1697
    %1796 = vmatpush1.bf16.msra.mxu0 %v1696
    %1797 = vmatprep.subr.bf16.mxu0 %v1701
    %1798 = vmatpush1.bf16.msra.mxu0 %v1700
    %1799 = vmatprep.subr.bf16.mxu0 %v1705
    %1800 = vmatpush1.bf16.msra.mxu0 %v1704
    %1801 = vmatprep.subr.bf16.mxu0 %v1709
    %1802 = vmatpush1.bf16.msra.mxu0 %v1708
    %1803 = vmatprep.subr.bf16.mxu0 %v1713
    %1804 = vmatpush1.bf16.msra.mxu0 %v1712
    %1805 = vmatprep.subr.bf16.mxu0 %v1717
    %1806 = vmatpush1.bf16.msra.mxu0 %v1716
    %1807 = vmatprep.subr.bf16.mxu0 0
    %1808 = vmatpush1.bf16.msra.mxu0 0
    %1809 = vmatprep.subr.bf16.mxu0 0
    %1810 = vmatpush1.bf16.msra.mxu0 0
    %1811 = vmatprep.subr.bf16.mxu0 0
    %1812 = vmatpush1.bf16.msra.mxu0 0
    %1813 = vmatprep.subr.bf16.mxu0 0
    %1814 = vmatpush1.bf16.msra.mxu0 0
    %1815 = vmatprep.subr.bf16.mxu0 0
    %1816 = vmatpush1.bf16.msra.mxu0 0
    %1817 = vmatprep.subr.bf16.mxu0 0
    %1818 = vmatpush1.bf16.msra.mxu0 0
    %1819 = vmatprep.subr.bf16.mxu0 0
    %1820 = vmatpush1.bf16.msra.mxu0 0
    %1821 = vmatprep.subr.bf16.mxu0 0
    %1822 = vmatpush1.bf16.msra.mxu0 0
    %1823 = vmatprep.mubr.bf16.mxu0 0
    %1824 = vmatmul.mubr.bf16.gmra.mrb[0].mxu0 %v1548
    %v1825 = vpop.f32.mrb[0].mxu0
    %v1826 = vadd.f32 0.0, %v1825
    %v1827 = vpop.f32.mrb[0].mxu0
    %v1828 = vadd.f32 0.0, %v1827
    %v1829 = vpop.f32.mrb[0].mxu0
    %v1830 = vpop.f32.mrb[0].mxu0
    %1831 = vdwg.mxu0
    %v1832 = vadd.f32 %v1554, %v1785
    %v1833 = vadd.f32 %v1555, %v1787
    %v1834 = vadd.f32 %v1556, %v1826
    %v1835 = vadd.f32 %v1557, %v1828
    %v1836 = vmul.f32 %v1832, 0.5
    %v1837 = vtanh.pop %v1836
    %v1838 = vadd.f32 %v1837, 1.0
    %v1839 = vmul.f32 %v1838, 0.5
    %v1840 = vmul.f32 %v1833, 0.5
    %v1841 = vtanh.pop %v1840
    %v1842 = vadd.f32 %v1841, 1.0
    %v1843 = vmul.f32 %v1842, 0.5
    %v1844 = vtanh.pop %v1834
    %v1845 = vmul.f32 %v1835, 0.5
    %v1846 = vtanh.pop %v1845
    %v1847 = vadd.f32 %v1846, 1.0
    %v1848 = vmul.f32 %v1847, 0.5
    %v1849 = vmul.f32 %v1843, %v1545
    %v1850 = vmul.f32 %v1839, %v1844
    %v1851 = vadd.f32 %v1849, %v1850
    %v1852 = vtanh.pop %v1851
    %v1853 = vmul.f32 %v1848, %v1852
    %v1854 = vpack.c.bf16 %v1853, %v1853
    %s1855 = scalar_lea.vmem [#allocation3], 12
    %1856 = vst [vmem:[%s1855] sm:$0xf] %v1854
    %s1857 = scalar_lea.vmem [#allocation2], 64
    %v1858 = vld [vmem:[%s1857] sm:$0xff]
    %v1859 = vld [vmem:[%s1857 + $0x8] sm:$0xff]
    %v1860 = vunpack.c.l.bf16 %v1858
    %v1861 = vunpack.c.h.bf16 %v1858
    %v1862 = vunpack.c.l.bf16 %v1859
    %v1863 = vunpack.c.h.bf16 %v1859
    %v1864 = vld [vmem:[#allocation6] sm:$0xff]
    %v1865 = vld [vmem:[#allocation6 + $0x8] sm:$0xff]
    %v1866 = vld [vmem:[#allocation6 + $0x10] sm:$0xff]
    %v1867 = vld [vmem:[#allocation6 + $0x18] sm:$0xff]
    %v1868 = vld [vmem:[#allocation6 + $0x20] sm:$0xff]
    %v1869 = vld [vmem:[#allocation6 + $0x28] sm:$0xff]
    %v1870 = vld [vmem:[#allocation6 + $0x30] sm:$0xff]
    %v1871 = vld [vmem:[#allocation6 + $0x38] sm:$0xff]
    %v1872 = vld [vmem:[#allocation6 + $0x40] sm:$0xff]
    %v1873 = vld [vmem:[#allocation6 + $0x48] sm:$0xff]
    %v1874 = vld [vmem:[#allocation6 + $0x50] sm:$0xff]
    %v1875 = vld [vmem:[#allocation6 + $0x58] sm:$0xff]
    %v1876 = vld [vmem:[#allocation6 + $0x60] sm:$0xff]
    %v1877 = vld [vmem:[#allocation6 + $0x68] sm:$0xff]
    %v1878 = vld [vmem:[#allocation6 + $0x70] sm:$0xff]
    %v1879 = vld [vmem:[#allocation6 + $0x78] sm:$0xff]
    %v1880 = vld [vmem:[#allocation6 + $0x80] sm:$0xff]
    %v1881 = vld [vmem:[#allocation6 + $0x88] sm:$0xff]
    %v1882 = vld [vmem:[#allocation6 + $0x90] sm:$0xff]
    %v1883 = vld [vmem:[#allocation6 + $0x98] sm:$0xff]
    %v1884 = vld [vmem:[#allocation6 + $0xa0] sm:$0xff]
    %v1885 = vld [vmem:[#allocation6 + $0xa8] sm:$0xff]
    %v1886 = vld [vmem:[#allocation6 + $0xb0] sm:$0xff]
    %v1887 = vld [vmem:[#allocation6 + $0xb8] sm:$0xff]
    %v1888 = vld [vmem:[#allocation6 + $0xc0] sm:$0xff]
    %v1889 = vld [vmem:[#allocation6 + $0xc8] sm:$0xff]
    %v1890 = vld [vmem:[#allocation6 + $0xd0] sm:$0xff]
    %v1891 = vld [vmem:[#allocation6 + $0xd8] sm:$0xff]
    %v1892 = vld [vmem:[#allocation6 + $0xe0] sm:$0xff]
    %v1893 = vld [vmem:[#allocation6 + $0xe8] sm:$0xff]
    %v1894 = vld [vmem:[#allocation6 + $0xf0] sm:$0xff]
    %v1895 = vld [vmem:[#allocation6 + $0xf8] sm:$0xff]
    %v1928 = vunpack.c.l.b16 %v1864
    %v1929 = vunpack.c.h.b16 %v1864
    %v1930 = vunpack.c.l.b16 %v1865
    %v1931 = vunpack.c.h.b16 %v1865
    %v1932 = vunpack.c.l.b16 %v1866
    %v1933 = vunpack.c.h.b16 %v1866
    %v1934 = vunpack.c.l.b16 %v1867
    %v1935 = vunpack.c.h.b16 %v1867
    %v1936 = vunpack.c.l.b16 %v1868
    %v1937 = vunpack.c.h.b16 %v1868
    %v1938 = vunpack.c.l.b16 %v1869
    %v1939 = vunpack.c.h.b16 %v1869
    %v1940 = vunpack.c.l.b16 %v1870
    %v1941 = vunpack.c.h.b16 %v1870
    %v1942 = vunpack.c.l.b16 %v1871
    %v1943 = vunpack.c.h.b16 %v1871
    %v1944 = vunpack.c.l.b16 %v1872
    %v1945 = vunpack.c.h.b16 %v1872
    %v1946 = vunpack.c.l.b16 %v1873
    %v1947 = vunpack.c.h.b16 %v1873
    %v1948 = vunpack.c.l.b16 %v1874
    %v1949 = vunpack.c.h.b16 %v1874
    %v1950 = vunpack.c.l.b16 %v1875
    %v1951 = vunpack.c.h.b16 %v1875
    %v1952 = vunpack.c.l.b16 %v1876
    %v1953 = vunpack.c.h.b16 %v1876
    %v1954 = vunpack.c.l.b16 %v1877
    %v1955 = vunpack.c.h.b16 %v1877
    %v1956 = vunpack.c.l.b16 %v1878
    %v1957 = vunpack.c.h.b16 %v1878
    %v1958 = vunpack.c.l.b16 %v1879
    %v1959 = vunpack.c.h.b16 %v1879
    %v1960 = vunpack.c.l.b16 %v1880
    %v1961 = vunpack.c.h.b16 %v1880
    %v1962 = vunpack.c.l.b16 %v1881
    %v1963 = vunpack.c.h.b16 %v1881
    %v1964 = vunpack.c.l.b16 %v1882
    %v1965 = vunpack.c.h.b16 %v1882
    %v1966 = vunpack.c.l.b16 %v1883
    %v1967 = vunpack.c.h.b16 %v1883
    %v1968 = vunpack.c.l.b16 %v1884
    %v1969 = vunpack.c.h.b16 %v1884
    %v1970 = vunpack.c.l.b16 %v1885
    %v1971 = vunpack.c.h.b16 %v1885
    %v1972 = vunpack.c.l.b16 %v1886
    %v1973 = vunpack.c.h.b16 %v1886
    %v1974 = vunpack.c.l.b16 %v1887
    %v1975 = vunpack.c.h.b16 %v1887
    %v1976 = vunpack.c.l.b16 %v1888
    %v1977 = vunpack.c.h.b16 %v1888
    %v1978 = vunpack.c.l.b16 %v1889
    %v1979 = vunpack.c.h.b16 %v1889
    %v1980 = vunpack.c.l.b16 %v1890
    %v1981 = vunpack.c.h.b16 %v1890
    %v1982 = vunpack.c.l.b16 %v1891
    %v1983 = vunpack.c.h.b16 %v1891
    %v1984 = vunpack.c.l.b16 %v1892
    %v1985 = vunpack.c.h.b16 %v1892
    %v1986 = vunpack.c.l.b16 %v1893
    %v1987 = vunpack.c.h.b16 %v1893
    %v1988 = vunpack.c.l.b16 %v1894
    %v1989 = vunpack.c.h.b16 %v1894
    %v1990 = vunpack.c.l.b16 %v1895
    %v1991 = vunpack.c.h.b16 %v1895
    %v1992 = vpack.c.b16 %v1932, %v1928
    %v1993 = vpack.c.b16 %v1933, %v1929
    %v1994 = vpack.c.b16 %v1934, %v1930
    %v1995 = vpack.c.b16 %v1935, %v1931
    %v1996 = vpack.c.b16 %v1940, %v1936
    %v1997 = vpack.c.b16 %v1941, %v1937
    %v1998 = vpack.c.b16 %v1942, %v1938
    %v1999 = vpack.c.b16 %v1943, %v1939
    %v2000 = vpack.c.b16 %v1948, %v1944
    %v2001 = vpack.c.b16 %v1949, %v1945
    %v2002 = vpack.c.b16 %v1950, %v1946
    %v2003 = vpack.c.b16 %v1951, %v1947
    %v2004 = vpack.c.b16 %v1956, %v1952
    %v2005 = vpack.c.b16 %v1957, %v1953
    %v2006 = vpack.c.b16 %v1958, %v1954
    %v2007 = vpack.c.b16 %v1959, %v1955
    %v2008 = vpack.c.b16 %v1964, %v1960
    %v2009 = vpack.c.b16 %v1965, %v1961
    %v2010 = vpack.c.b16 %v1966, %v1962
    %v2011 = vpack.c.b16 %v1967, %v1963
    %v2012 = vpack.c.b16 %v1972, %v1968
    %v2013 = vpack.c.b16 %v1973, %v1969
    %v2014 = vpack.c.b16 %v1974, %v1970
    %v2015 = vpack.c.b16 %v1975, %v1971
    %v2016 = vpack.c.b16 %v1980, %v1976
    %v2017 = vpack.c.b16 %v1981, %v1977
    %v2018 = vpack.c.b16 %v1982, %v1978
    %v2019 = vpack.c.b16 %v1983, %v1979
    %v2020 = vpack.c.b16 %v1988, %v1984
    %v2021 = vpack.c.b16 %v1989, %v1985
    %v2022 = vpack.c.b16 %v1990, %v1986
    %v2023 = vpack.c.b16 %v1991, %v1987
    %2056 = vmatprep.subr.bf16.mxu0 %v1993
    %2057 = vmatpush1.bf16.msra.mxu0 %v1992
    %2058 = vmatprep.subr.bf16.mxu0 %v1997
    %2059 = vmatpush1.bf16.msra.mxu0 %v1996
    %2060 = vmatprep.subr.bf16.mxu0 %v2001
    %2061 = vmatpush1.bf16.msra.mxu0 %v2000
    %2062 = vmatprep.subr.bf16.mxu0 %v2005
    %2063 = vmatpush1.bf16.msra.mxu0 %v2004
    %2064 = vmatprep.subr.bf16.mxu0 %v2009
    %2065 = vmatpush1.bf16.msra.mxu0 %v2008
    %2066 = vmatprep.subr.bf16.mxu0 %v2013
    %2067 = vmatpush1.bf16.msra.mxu0 %v2012
    %2068 = vmatprep.subr.bf16.mxu0 %v2017
    %2069 = vmatpush1.bf16.msra.mxu0 %v2016
    %2070 = vmatprep.subr.bf16.mxu0 %v2021
    %2071 = vmatpush1.bf16.msra.mxu0 %v2020
    %2072 = vmatprep.subr.bf16.mxu0 0
    %2073 = vmatpush1.bf16.msra.mxu0 0
    %2074 = vmatprep.subr.bf16.mxu0 0
    %2075 = vmatpush1.bf16.msra.mxu0 0
    %2076 = vmatprep.subr.bf16.mxu0 0
    %2077 = vmatpush1.bf16.msra.mxu0 0
    %2078 = vmatprep.subr.bf16.mxu0 0
    %2079 = vmatpush1.bf16.msra.mxu0 0
    %2080 = vmatprep.subr.bf16.mxu0 0
    %2081 = vmatpush1.bf16.msra.mxu0 0
    %2082 = vmatprep.subr.bf16.mxu0 0
    %2083 = vmatpush1.bf16.msra.mxu0 0
    %2084 = vmatprep.subr.bf16.mxu0 0
    %2085 = vmatpush1.bf16.msra.mxu0 0
    %2086 = vmatprep.subr.bf16.mxu0 0
    %2087 = vmatpush1.bf16.msra.mxu0 0
    %2088 = vmatprep.mubr.bf16.mxu0 0
    %2089 = vmatmul.mubr.bf16.gmra.mrb[0].mxu0 %v1854
    %v2090 = vpop.f32.mrb[0].mxu0
    %v2091 = vadd.f32 0.0, %v2090
    %v2092 = vpop.f32.mrb[0].mxu0
    %v2093 = vadd.f32 0.0, %v2092
    %v2094 = vpop.f32.mrb[0].mxu0
    %v2095 = vpop.f32.mrb[0].mxu0
    %2096 = vdwg.mxu0
    %2097 = vmatprep.subr.bf16.mxu0 %v1995
    %2098 = vmatpush1.bf16.msra.mxu0 %v1994
    %2099 = vmatprep.subr.bf16.mxu0 %v1999
    %2100 = vmatpush1.bf16.msra.mxu0 %v1998
    %2101 = vmatprep.subr.bf16.mxu0 %v2003
    %2102 = vmatpush1.bf16.msra.mxu0 %v2002
    %2103 = vmatprep.subr.bf16.mxu0 %v2007
    %2104 = vmatpush1.bf16.msra.mxu0 %v2006
    %2105 = vmatprep.subr.bf16.mxu0 %v2011
    %2106 = vmatpush1.bf16.msra.mxu0 %v2010
    %2107 = vmatprep.subr.bf16.mxu0 %v2015
    %2108 = vmatpush1.bf16.msra.mxu0 %v2014
    %2109 = vmatprep.subr.bf16.mxu0 %v2019
    %2110 = vmatpush1.bf16.msra.mxu0 %v2018
    %2111 = vmatprep.subr.bf16.mxu0 %v2023
    %2112 = vmatpush1.bf16.msra.mxu0 %v2022
    %2113 = vmatprep.subr.bf16.mxu0 0
    %2114 = vmatpush1.bf16.msra.mxu0 0
    %2115 = vmatprep.subr.bf16.mxu0 0
    %2116 = vmatpush1.bf16.msra.mxu0 0
    %2117 = vmatprep.subr.bf16.mxu0 0
    %2118 = vmatpush1.bf16.msra.mxu0 0
    %2119 = vmatprep.subr.bf16.mxu0 0
    %2120 = vmatpush1.bf16.msra.mxu0 0
    %2121 = vmatprep.subr.bf16.mxu0 0
    %2122 = vmatpush1.bf16.msra.mxu0 0
    %2123 = vmatprep.subr.bf16.mxu0 0
    %2124 = vmatpush1.bf16.msra.mxu0 0
    %2125 = vmatprep.subr.bf16.mxu0 0
    %2126 = vmatpush1.bf16.msra.mxu0 0
    %2127 = vmatprep.subr.bf16.mxu0 0
    %2128 = vmatpush1.bf16.msra.mxu0 0
    %2129 = vmatprep.mubr.bf16.mxu0 0
    %2130 = vmatmul.mubr.bf16.gmra.mrb[0].mxu0 %v1854
    %v2131 = vpop.f32.mrb[0].mxu0
    %v2132 = vadd.f32 0.0, %v2131
    %v2133 = vpop.f32.mrb[0].mxu0
    %v2134 = vadd.f32 0.0, %v2133
    %v2135 = vpop.f32.mrb[0].mxu0
    %v2136 = vpop.f32.mrb[0].mxu0
    %2137 = vdwg.mxu0
    %v2138 = vadd.f32 %v1860, %v2091
    %v2139 = vadd.f32 %v1861, %v2093
    %v2140 = vadd.f32 %v1862, %v2132
    %v2141 = vadd.f32 %v1863, %v2134
    %v2142 = vmul.f32 %v2138, 0.5
    %v2143 = vtanh.pop %v2142
    %v2144 = vadd.f32 %v2143, 1.0
    %v2145 = vmul.f32 %v2144, 0.5
    %v2146 = vmul.f32 %v2139, 0.5
    %v2147 = vtanh.pop %v2146
    %v2148 = vadd.f32 %v2147, 1.0
    %v2149 = vmul.f32 %v2148, 0.5
    %v2150 = vtanh.pop %v2140
    %v2151 = vmul.f32 %v2141, 0.5
    %v2152 = vtanh.pop %v2151
    %v2153 = vadd.f32 %v2152, 1.0
    %v2154 = vmul.f32 %v2153, 0.5
    %v2155 = vmul.f32 %v2149, %v1851
    %v2156 = vmul.f32 %v2145, %v2150
    %v2157 = vadd.f32 %v2155, %v2156
    %v2158 = vtanh.pop %v2157
    %v2159 = vmul.f32 %v2154, %v2158
    %v2160 = vpack.c.bf16 %v2159, %v2159
    %s2161 = scalar_lea.vmem [#allocation3], 16
    %2162 = vst [vmem:[%s2161] sm:$0xf] %v2160
    %s2163 = scalar_lea.vmem [#allocation2], 80
    %v2164 = vld [vmem:[%s2163] sm:$0xff]
    %v2165 = vld [vmem:[%s2163 + $0x8] sm:$0xff]
    %v2166 = vunpack.c.l.bf16 %v2164
    %v2167 = vunpack.c.h.bf16 %v2164
    %v2168 = vunpack.c.l.bf16 %v2165
    %v2169 = vunpack.c.h.bf16 %v2165
    %v2170 = vld [vmem:[#allocation6] sm:$0xff]
    %v2171 = vld [vmem:[#allocation6 + $0x8] sm:$0xff]
    %v2172 = vld [vmem:[#allocation6 + $0x10] sm:$0xff]
    %v2173 = vld [vmem:[#allocation6 + $0x18] sm:$0xff]
    %v2174 = vld [vmem:[#allocation6 + $0x20] sm:$0xff]
    %v2175 = vld [vmem:[#allocation6 + $0x28] sm:$0xff]
    %v2176 = vld [vmem:[#allocation6 + $0x30] sm:$0xff]
    %v2177 = vld [vmem:[#allocation6 + $0x38] sm:$0xff]
    %v2178 = vld [vmem:[#allocation6 + $0x40] sm:$0xff]
    %v2179 = vld [vmem:[#allocation6 + $0x48] sm:$0xff]
    %v2180 = vld [vmem:[#allocation6 + $0x50] sm:$0xff]
    %v2181 = vld [vmem:[#allocation6 + $0x58] sm:$0xff]
    %v2182 = vld [vmem:[#allocation6 + $0x60] sm:$0xff]
    %v2183 = vld [vmem:[#allocation6 + $0x68] sm:$0xff]
    %v2184 = vld [vmem:[#allocation6 + $0x70] sm:$0xff]
    %v2185 = vld [vmem:[#allocation6 + $0x78] sm:$0xff]
    %v2186 = vld [vmem:[#allocation6 + $0x80] sm:$0xff]
    %v2187 = vld [vmem:[#allocation6 + $0x88] sm:$0xff]
    %v2188 = vld [vmem:[#allocation6 + $0x90] sm:$0xff]
    %v2189 = vld [vmem:[#allocation6 + $0x98] sm:$0xff]
    %v2190 = vld [vmem:[#allocation6 + $0xa0] sm:$0xff]
    %v2191 = vld [vmem:[#allocation6 + $0xa8] sm:$0xff]
    %v2192 = vld [vmem:[#allocation6 + $0xb0] sm:$0xff]
    %v2193 = vld [vmem:[#allocation6 + $0xb8] sm:$0xff]
    %v2194 = vld [vmem:[#allocation6 + $0xc0] sm:$0xff]
    %v2195 = vld [vmem:[#allocation6 + $0xc8] sm:$0xff]
    %v2196 = vld [vmem:[#allocation6 + $0xd0] sm:$0xff]
    %v2197 = vld [vmem:[#allocation6 + $0xd8] sm:$0xff]
    %v2198 = vld [vmem:[#allocation6 + $0xe0] sm:$0xff]
    %v2199 = vld [vmem:[#allocation6 + $0xe8] sm:$0xff]
    %v2200 = vld [vmem:[#allocation6 + $0xf0] sm:$0xff]
    %v2201 = vld [vmem:[#allocation6 + $0xf8] sm:$0xff]
    %v2234 = vunpack.c.l.b16 %v2170
    %v2235 = vunpack.c.h.b16 %v2170
    %v2236 = vunpack.c.l.b16 %v2171
    %v2237 = vunpack.c.h.b16 %v2171
    %v2238 = vunpack.c.l.b16 %v2172
    %v2239 = vunpack.c.h.b16 %v2172
    %v2240 = vunpack.c.l.b16 %v2173
    %v2241 = vunpack.c.h.b16 %v2173
    %v2242 = vunpack.c.l.b16 %v2174
    %v2243 = vunpack.c.h.b16 %v2174
    %v2244 = vunpack.c.l.b16 %v2175
    %v2245 = vunpack.c.h.b16 %v2175
    %v2246 = vunpack.c.l.b16 %v2176
    %v2247 = vunpack.c.h.b16 %v2176
    %v2248 = vunpack.c.l.b16 %v2177
    %v2249 = vunpack.c.h.b16 %v2177
    %v2250 = vunpack.c.l.b16 %v2178
    %v2251 = vunpack.c.h.b16 %v2178
    %v2252 = vunpack.c.l.b16 %v2179
    %v2253 = vunpack.c.h.b16 %v2179
    %v2254 = vunpack.c.l.b16 %v2180
    %v2255 = vunpack.c.h.b16 %v2180
    %v2256 = vunpack.c.l.b16 %v2181
    %v2257 = vunpack.c.h.b16 %v2181
    %v2258 = vunpack.c.l.b16 %v2182
    %v2259 = vunpack.c.h.b16 %v2182
    %v2260 = vunpack.c.l.b16 %v2183
    %v2261 = vunpack.c.h.b16 %v2183
    %v2262 = vunpack.c.l.b16 %v2184
    %v2263 = vunpack.c.h.b16 %v2184
    %v2264 = vunpack.c.l.b16 %v2185
    %v2265 = vunpack.c.h.b16 %v2185
    %v2266 = vunpack.c.l.b16 %v2186
    %v2267 = vunpack.c.h.b16 %v2186
    %v2268 = vunpack.c.l.b16 %v2187
    %v2269 = vunpack.c.h.b16 %v2187
    %v2270 = vunpack.c.l.b16 %v2188
    %v2271 = vunpack.c.h.b16 %v2188
    %v2272 = vunpack.c.l.b16 %v2189
    %v2273 = vunpack.c.h.b16 %v2189
    %v2274 = vunpack.c.l.b16 %v2190
    %v2275 = vunpack.c.h.b16 %v2190
    %v2276 = vunpack.c.l.b16 %v2191
    %v2277 = vunpack.c.h.b16 %v2191
    %v2278 = vunpack.c.l.b16 %v2192
    %v2279 = vunpack.c.h.b16 %v2192
    %v2280 = vunpack.c.l.b16 %v2193
    %v2281 = vunpack.c.h.b16 %v2193
    %v2282 = vunpack.c.l.b16 %v2194
    %v2283 = vunpack.c.h.b16 %v2194
    %v2284 = vunpack.c.l.b16 %v2195
    %v2285 = vunpack.c.h.b16 %v2195
    %v2286 = vunpack.c.l.b16 %v2196
    %v2287 = vunpack.c.h.b16 %v2196
    %v2288 = vunpack.c.l.b16 %v2197
    %v2289 = vunpack.c.h.b16 %v2197
    %v2290 = vunpack.c.l.b16 %v2198
    %v2291 = vunpack.c.h.b16 %v2198
    %v2292 = vunpack.c.l.b16 %v2199
    %v2293 = vunpack.c.h.b16 %v2199
    %v2294 = vunpack.c.l.b16 %v2200
    %v2295 = vunpack.c.h.b16 %v2200
    %v2296 = vunpack.c.l.b16 %v2201
    %v2297 = vunpack.c.h.b16 %v2201
    %v2298 = vpack.c.b16 %v2238, %v2234
    %v2299 = vpack.c.b16 %v2239, %v2235
    %v2300 = vpack.c.b16 %v2240, %v2236
    %v2301 = vpack.c.b16 %v2241, %v2237
    %v2302 = vpack.c.b16 %v2246, %v2242
    %v2303 = vpack.c.b16 %v2247, %v2243
    %v2304 = vpack.c.b16 %v2248, %v2244
    %v2305 = vpack.c.b16 %v2249, %v2245
    %v2306 = vpack.c.b16 %v2254, %v2250
    %v2307 = vpack.c.b16 %v2255, %v2251
    %v2308 = vpack.c.b16 %v2256, %v2252
    %v2309 = vpack.c.b16 %v2257, %v2253
    %v2310 = vpack.c.b16 %v2262, %v2258
    %v2311 = vpack.c.b16 %v2263, %v2259
    %v2312 = vpack.c.b16 %v2264, %v2260
    %v2313 = vpack.c.b16 %v2265, %v2261
    %v2314 = vpack.c.b16 %v2270, %v2266
    %v2315 = vpack.c.b16 %v2271, %v2267
    %v2316 = vpack.c.b16 %v2272, %v2268
    %v2317 = vpack.c.b16 %v2273, %v2269
    %v2318 = vpack.c.b16 %v2278, %v2274
    %v2319 = vpack.c.b16 %v2279, %v2275
    %v2320 = vpack.c.b16 %v2280, %v2276
    %v2321 = vpack.c.b16 %v2281, %v2277
    %v2322 = vpack.c.b16 %v2286, %v2282
    %v2323 = vpack.c.b16 %v2287, %v2283
    %v2324 = vpack.c.b16 %v2288, %v2284
    %v2325 = vpack.c.b16 %v2289, %v2285
    %v2326 = vpack.c.b16 %v2294, %v2290
    %v2327 = vpack.c.b16 %v2295, %v2291
    %v2328 = vpack.c.b16 %v2296, %v2292
    %v2329 = vpack.c.b16 %v2297, %v2293
    %2362 = vmatprep.subr.bf16.mxu0 %v2299
    %2363 = vmatpush1.bf16.msra.mxu0 %v2298
    %2364 = vmatprep.subr.bf16.mxu0 %v2303
    %2365 = vmatpush1.bf16.msra.mxu0 %v2302
    %2366 = vmatprep.subr.bf16.mxu0 %v2307
    %2367 = vmatpush1.bf16.msra.mxu0 %v2306
    %2368 = vmatprep.subr.bf16.mxu0 %v2311
    %2369 = vmatpush1.bf16.msra.mxu0 %v2310
    %2370 = vmatprep.subr.bf16.mxu0 %v2315
    %2371 = vmatpush1.bf16.msra.mxu0 %v2314
    %2372 = vmatprep.subr.bf16.mxu0 %v2319
    %2373 = vmatpush1.bf16.msra.mxu0 %v2318
    %2374 = vmatprep.subr.bf16.mxu0 %v2323
    %2375 = vmatpush1.bf16.msra.mxu0 %v2322
    %2376 = vmatprep.subr.bf16.mxu0 %v2327
    %2377 = vmatpush1.bf16.msra.mxu0 %v2326
    %2378 = vmatprep.subr.bf16.mxu0 0
    %2379 = vmatpush1.bf16.msra.mxu0 0
    %2380 = vmatprep.subr.bf16.mxu0 0
    %2381 = vmatpush1.bf16.msra.mxu0 0
    %2382 = vmatprep.subr.bf16.mxu0 0
    %2383 = vmatpush1.bf16.msra.mxu0 0
    %2384 = vmatprep.subr.bf16.mxu0 0
    %2385 = vmatpush1.bf16.msra.mxu0 0
    %2386 = vmatprep.subr.bf16.mxu0 0
    %2387 = vmatpush1.bf16.msra.mxu0 0
    %2388 = vmatprep.subr.bf16.mxu0 0
    %2389 = vmatpush1.bf16.msra.mxu0 0
    %2390 = vmatprep.subr.bf16.mxu0 0
    %2391 = vmatpush1.bf16.msra.mxu0 0
    %2392 = vmatprep.subr.bf16.mxu0 0
    %2393 = vmatpush1.bf16.msra.mxu0 0
    %2394 = vmatprep.mubr.bf16.mxu0 0
    %2395 = vmatmul.mubr.bf16.gmra.mrb[0].mxu0 %v2160
    %v2396 = vpop.f32.mrb[0].mxu0
    %v2397 = vadd.f32 0.0, %v2396
    %v2398 = vpop.f32.mrb[0].mxu0
    %v2399 = vadd.f32 0.0, %v2398
    %v2400 = vpop.f32.mrb[0].mxu0
    %v2401 = vpop.f32.mrb[0].mxu0
    %2402 = vdwg.mxu0
    %2403 = vmatprep.subr.bf16.mxu0 %v2301
    %2404 = vmatpush1.bf16.msra.mxu0 %v2300
    %2405 = vmatprep.subr.bf16.mxu0 %v2305
    %2406 = vmatpush1.bf16.msra.mxu0 %v2304
    %2407 = vmatprep.subr.bf16.mxu0 %v2309
    %2408 = vmatpush1.bf16.msra.mxu0 %v2308
    %2409 = vmatprep.subr.bf16.mxu0 %v2313
    %2410 = vmatpush1.bf16.msra.mxu0 %v2312
    %2411 = vmatprep.subr.bf16.mxu0 %v2317
    %2412 = vmatpush1.bf16.msra.mxu0 %v2316
    %2413 = vmatprep.subr.bf16.mxu0 %v2321
    %2414 = vmatpush1.bf16.msra.mxu0 %v2320
    %2415 = vmatprep.subr.bf16.mxu0 %v2325
    %2416 = vmatpush1.bf16.msra.mxu0 %v2324
    %2417 = vmatprep.subr.bf16.mxu0 %v2329
    %2418 = vmatpush1.bf16.msra.mxu0 %v2328
    %2419 = vmatprep.subr.bf16.mxu0 0
    %2420 = vmatpush1.bf16.msra.mxu0 0
    %2421 = vmatprep.subr.bf16.mxu0 0
    %2422 = vmatpush1.bf16.msra.mxu0 0
    %2423 = vmatprep.subr.bf16.mxu0 0
    %2424 = vmatpush1.bf16.msra.mxu0 0
    %2425 = vmatprep.subr.bf16.mxu0 0
    %2426 = vmatpush1.bf16.msra.mxu0 0
    %2427 = vmatprep.subr.bf16.mxu0 0
    %2428 = vmatpush1.bf16.msra.mxu0 0
    %2429 = vmatprep.subr.bf16.mxu0 0
    %2430 = vmatpush1.bf16.msra.mxu0 0
    %2431 = vmatprep.subr.bf16.mxu0 0
    %2432 = vmatpush1.bf16.msra.mxu0 0
    %2433 = vmatprep.subr.bf16.mxu0 0
    %2434 = vmatpush1.bf16.msra.mxu0 0
    %2435 = vmatprep.mubr.bf16.mxu0 0
    %2436 = vmatmul.mubr.bf16.gmra.mrb[0].mxu0 %v2160
    %v2437 = vpop.f32.mrb[0].mxu0
    %v2438 = vadd.f32 0.0, %v2437
    %v2439 = vpop.f32.mrb[0].mxu0
    %v2440 = vadd.f32 0.0, %v2439
    %v2441 = vpop.f32.mrb[0].mxu0
    %v2442 = vpop.f32.mrb[0].mxu0
    %2443 = vdwg.mxu0
    %v2444 = vadd.f32 %v2166, %v2397
    %v2445 = vadd.f32 %v2167, %v2399
    %v2446 = vadd.f32 %v2168, %v2438
    %v2447 = vadd.f32 %v2169, %v2440
    %v2448 = vmul.f32 %v2444, 0.5
    %v2449 = vtanh.pop %v2448
    %v2450 = vadd.f32 %v2449, 1.0
    %v2451 = vmul.f32 %v2450, 0.5
    %v2452 = vmul.f32 %v2445, 0.5
    %v2453 = vtanh.pop %v2452
    %v2454 = vadd.f32 %v2453, 1.0
    %v2455 = vmul.f32 %v2454, 0.5
    %v2456 = vtanh.pop %v2446
    %v2457 = vmul.f32 %v2447, 0.5
    %v2458 = vtanh.pop %v2457
    %v2459 = vadd.f32 %v2458, 1.0
    %v2460 = vmul.f32 %v2459, 0.5
    %v2461 = vmul.f32 %v2455, %v2157
    %v2462 = vmul.f32 %v2451, %v2456
    %v2463 = vadd.f32 %v2461, %v2462
    %v2464 = vtanh.pop %v2463
    %v2465 = vmul.f32 %v2460, %v2464
    %v2466 = vpack.c.bf16 %v2465, %v2465
    %s2467 = scalar_lea.vmem [#allocation3], 20
    %2468 = vst [vmem:[%s2467] sm:$0xf] %v2466
    %s2469 = scalar_lea.vmem [#allocation2], 96
    %v2470 = vld [vmem:[%s2469] sm:$0xff]
    %v2471 = vld [vmem:[%s2469 + $0x8] sm:$0xff]
    %v2472 = vunpack.c.l.bf16 %v2470
    %v2473 = vunpack.c.h.bf16 %v2470
    %v2474 = vunpack.c.l.bf16 %v2471
    %v2475 = vunpack.c.h.bf16 %v2471
    %v2476 = vld [vmem:[#allocation6] sm:$0xff]
    %v2477 = vld [vmem:[#allocation6 + $0x8] sm:$0xff]
    %v2478 = vld [vmem:[#allocation6 + $0x10] sm:$0xff]
    %v2479 = vld [vmem:[#allocation6 + $0x18] sm:$0xff]
    %v2480 = vld [vmem:[#allocation6 + $0x20] sm:$0xff]
    %v2481 = vld [vmem:[#allocation6 + $0x28] sm:$0xff]
    %v2482 = vld [vmem:[#allocation6 + $0x30] sm:$0xff]
    %v2483 = vld [vmem:[#allocation6 + $0x38] sm:$0xff]
    %v2484 = vld [vmem:[#allocation6 + $0x40] sm:$0xff]
    %v2485 = vld [vmem:[#allocation6 + $0x48] sm:$0xff]
    %v2486 = vld [vmem:[#allocation6 + $0x50] sm:$0xff]
    %v2487 = vld [vmem:[#allocation6 + $0x58] sm:$0xff]
    %v2488 = vld [vmem:[#allocation6 + $0x60] sm:$0xff]
    %v2489 = vld [vmem:[#allocation6 + $0x68] sm:$0xff]
    %v2490 = vld [vmem:[#allocation6 + $0x70] sm:$0xff]
    %v2491 = vld [vmem:[#allocation6 + $0x78] sm:$0xff]
    %v2492 = vld [vmem:[#allocation6 + $0x80] sm:$0xff]
    %v2493 = vld [vmem:[#allocation6 + $0x88] sm:$0xff]
    %v2494 = vld [vmem:[#allocation6 + $0x90] sm:$0xff]
    %v2495 = vld [vmem:[#allocation6 + $0x98] sm:$0xff]
    %v2496 = vld [vmem:[#allocation6 + $0xa0] sm:$0xff]
    %v2497 = vld [vmem:[#allocation6 + $0xa8] sm:$0xff]
    %v2498 = vld [vmem:[#allocation6 + $0xb0] sm:$0xff]
    %v2499 = vld [vmem:[#allocation6 + $0xb8] sm:$0xff]
    %v2500 = vld [vmem:[#allocation6 + $0xc0] sm:$0xff]
    %v2501 = vld [vmem:[#allocation6 + $0xc8] sm:$0xff]
    %v2502 = vld [vmem:[#allocation6 + $0xd0] sm:$0xff]
    %v2503 = vld [vmem:[#allocation6 + $0xd8] sm:$0xff]
    %v2504 = vld [vmem:[#allocation6 + $0xe0] sm:$0xff]
    %v2505 = vld [vmem:[#allocation6 + $0xe8] sm:$0xff]
    %v2506 = vld [vmem:[#allocation6 + $0xf0] sm:$0xff]
    %v2507 = vld [vmem:[#allocation6 + $0xf8] sm:$0xff]
    %v2540 = vunpack.c.l.b16 %v2476
    %v2541 = vunpack.c.h.b16 %v2476
    %v2542 = vunpack.c.l.b16 %v2477
    %v2543 = vunpack.c.h.b16 %v2477
    %v2544 = vunpack.c.l.b16 %v2478
    %v2545 = vunpack.c.h.b16 %v2478
    %v2546 = vunpack.c.l.b16 %v2479
    %v2547 = vunpack.c.h.b16 %v2479
    %v2548 = vunpack.c.l.b16 %v2480
    %v2549 = vunpack.c.h.b16 %v2480
    %v2550 = vunpack.c.l.b16 %v2481
    %v2551 = vunpack.c.h.b16 %v2481
    %v2552 = vunpack.c.l.b16 %v2482
    %v2553 = vunpack.c.h.b16 %v2482
    %v2554 = vunpack.c.l.b16 %v2483
    %v2555 = vunpack.c.h.b16 %v2483
    %v2556 = vunpack.c.l.b16 %v2484
    %v2557 = vunpack.c.h.b16 %v2484
    %v2558 = vunpack.c.l.b16 %v2485
    %v2559 = vunpack.c.h.b16 %v2485
    %v2560 = vunpack.c.l.b16 %v2486
    %v2561 = vunpack.c.h.b16 %v2486
    %v2562 = vunpack.c.l.b16 %v2487
    %v2563 = vunpack.c.h.b16 %v2487
    %v2564 = vunpack.c.l.b16 %v2488
    %v2565 = vunpack.c.h.b16 %v2488
    %v2566 = vunpack.c.l.b16 %v2489
    %v2567 = vunpack.c.h.b16 %v2489
    %v2568 = vunpack.c.l.b16 %v2490
    %v2569 = vunpack.c.h.b16 %v2490
    %v2570 = vunpack.c.l.b16 %v2491
    %v2571 = vunpack.c.h.b16 %v2491
    %v2572 = vunpack.c.l.b16 %v2492
    %v2573 = vunpack.c.h.b16 %v2492
    %v2574 = vunpack.c.l.b16 %v2493
    %v2575 = vunpack.c.h.b16 %v2493
    %v2576 = vunpack.c.l.b16 %v2494
    %v2577 = vunpack.c.h.b16 %v2494
    %v2578 = vunpack.c.l.b16 %v2495
    %v2579 = vunpack.c.h.b16 %v2495
    %v2580 = vunpack.c.l.b16 %v2496
    %v2581 = vunpack.c.h.b16 %v2496
    %v2582 = vunpack.c.l.b16 %v2497
    %v2583 = vunpack.c.h.b16 %v2497
    %v2584 = vunpack.c.l.b16 %v2498
    %v2585 = vunpack.c.h.b16 %v2498
    %v2586 = vunpack.c.l.b16 %v2499
    %v2587 = vunpack.c.h.b16 %v2499
    %v2588 = vunpack.c.l.b16 %v2500
    %v2589 = vunpack.c.h.b16 %v2500
    %v2590 = vunpack.c.l.b16 %v2501
    %v2591 = vunpack.c.h.b16 %v2501
    %v2592 = vunpack.c.l.b16 %v2502
    %v2593 = vunpack.c.h.b16 %v2502
    %v2594 = vunpack.c.l.b16 %v2503
    %v2595 = vunpack.c.h.b16 %v2503
    %v2596 = vunpack.c.l.b16 %v2504
    %v2597 = vunpack.c.h.b16 %v2504
    %v2598 = vunpack.c.l.b16 %v2505
    %v2599 = vunpack.c.h.b16 %v2505
    %v2600 = vunpack.c.l.b16 %v2506
    %v2601 = vunpack.c.h.b16 %v2506
    %v2602 = vunpack.c.l.b16 %v2507
    %v2603 = vunpack.c.h.b16 %v2507
    %v2604 = vpack.c.b16 %v2544, %v2540
    %v2605 = vpack.c.b16 %v2545, %v2541
    %v2606 = vpack.c.b16 %v2546, %v2542
    %v2607 = vpack.c.b16 %v2547, %v2543
    %v2608 = vpack.c.b16 %v2552, %v2548
    %v2609 = vpack.c.b16 %v2553, %v2549
    %v2610 = vpack.c.b16 %v2554, %v2550
    %v2611 = vpack.c.b16 %v2555, %v2551
    %v2612 = vpack.c.b16 %v2560, %v2556
    %v2613 = vpack.c.b16 %v2561, %v2557
    %v2614 = vpack.c.b16 %v2562, %v2558
    %v2615 = vpack.c.b16 %v2563, %v2559
    %v2616 = vpack.c.b16 %v2568, %v2564
    %v2617 = vpack.c.b16 %v2569, %v2565
    %v2618 = vpack.c.b16 %v2570, %v2566
    %v2619 = vpack.c.b16 %v2571, %v2567
    %v2620 = vpack.c.b16 %v2576, %v2572
    %v2621 = vpack.c.b16 %v2577, %v2573
    %v2622 = vpack.c.b16 %v2578, %v2574
    %v2623 = vpack.c.b16 %v2579, %v2575
    %v2624 = vpack.c.b16 %v2584, %v2580
    %v2625 = vpack.c.b16 %v2585, %v2581
    %v2626 = vpack.c.b16 %v2586, %v2582
    %v2627 = vpack.c.b16 %v2587, %v2583
    %v2628 = vpack.c.b16 %v2592, %v2588
    %v2629 = vpack.c.b16 %v2593, %v2589
    %v2630 = vpack.c.b16 %v2594, %v2590
    %v2631 = vpack.c.b16 %v2595, %v2591
    %v2632 = vpack.c.b16 %v2600, %v2596
    %v2633 = vpack.c.b16 %v2601, %v2597
    %v2634 = vpack.c.b16 %v2602, %v2598
    %v2635 = vpack.c.b16 %v2603, %v2599
    %2668 = vmatprep.subr.bf16.mxu0 %v2605
    %2669 = vmatpush1.bf16.msra.mxu0 %v2604
    %2670 = vmatprep.subr.bf16.mxu0 %v2609
    %2671 = vmatpush1.bf16.msra.mxu0 %v2608
    %2672 = vmatprep.subr.bf16.mxu0 %v2613
    %2673 = vmatpush1.bf16.msra.mxu0 %v2612
    %2674 = vmatprep.subr.bf16.mxu0 %v2617
    %2675 = vmatpush1.bf16.msra.mxu0 %v2616
    %2676 = vmatprep.subr.bf16.mxu0 %v2621
    %2677 = vmatpush1.bf16.msra.mxu0 %v2620
    %2678 = vmatprep.subr.bf16.mxu0 %v2625
    %2679 = vmatpush1.bf16.msra.mxu0 %v2624
    %2680 = vmatprep.subr.bf16.mxu0 %v2629
    %2681 = vmatpush1.bf16.msra.mxu0 %v2628
    %2682 = vmatprep.subr.bf16.mxu0 %v2633
    %2683 = vmatpush1.bf16.msra.mxu0 %v2632
    %2684 = vmatprep.subr.bf16.mxu0 0
    %2685 = vmatpush1.bf16.msra.mxu0 0
    %2686 = vmatprep.subr.bf16.mxu0 0
    %2687 = vmatpush1.bf16.msra.mxu0 0
    %2688 = vmatprep.subr.bf16.mxu0 0
    %2689 = vmatpush1.bf16.msra.mxu0 0
    %2690 = vmatprep.subr.bf16.mxu0 0
    %2691 = vmatpush1.bf16.msra.mxu0 0
    %2692 = vmatprep.subr.bf16.mxu0 0
    %2693 = vmatpush1.bf16.msra.mxu0 0
    %2694 = vmatprep.subr.bf16.mxu0 0
    %2695 = vmatpush1.bf16.msra.mxu0 0
    %2696 = vmatprep.subr.bf16.mxu0 0
    %2697 = vmatpush1.bf16.msra.mxu0 0
    %2698 = vmatprep.subr.bf16.mxu0 0
    %2699 = vmatpush1.bf16.msra.mxu0 0
    %2700 = vmatprep.mubr.bf16.mxu0 0
    %2701 = vmatmul.mubr.bf16.gmra.mrb[0].mxu0 %v2466
    %v2702 = vpop.f32.mrb[0].mxu0
    %v2703 = vadd.f32 0.0, %v2702
    %v2704 = vpop.f32.mrb[0].mxu0
    %v2705 = vadd.f32 0.0, %v2704
    %v2706 = vpop.f32.mrb[0].mxu0
    %v2707 = vpop.f32.mrb[0].mxu0
    %2708 = vdwg.mxu0
    %2709 = vmatprep.subr.bf16.mxu0 %v2607
    %2710 = vmatpush1.bf16.msra.mxu0 %v2606
    %2711 = vmatprep.subr.bf16.mxu0 %v2611
    %2712 = vmatpush1.bf16.msra.mxu0 %v2610
    %2713 = vmatprep.subr.bf16.mxu0 %v2615
    %2714 = vmatpush1.bf16.msra.mxu0 %v2614
    %2715 = vmatprep.subr.bf16.mxu0 %v2619
    %2716 = vmatpush1.bf16.msra.mxu0 %v2618
    %2717 = vmatprep.subr.bf16.mxu0 %v2623
    %2718 = vmatpush1.bf16.msra.mxu0 %v2622
    %2719 = vmatprep.subr.bf16.mxu0 %v2627
    %2720 = vmatpush1.bf16.msra.mxu0 %v2626
    %2721 = vmatprep.subr.bf16.mxu0 %v2631
    %2722 = vmatpush1.bf16.msra.mxu0 %v2630
    %2723 = vmatprep.subr.bf16.mxu0 %v2635
    %2724 = vmatpush1.bf16.msra.mxu0 %v2634
    %2725 = vmatprep.subr.bf16.mxu0 0
    %2726 = vmatpush1.bf16.msra.mxu0 0
    %2727 = vmatprep.subr.bf16.mxu0 0
    %2728 = vmatpush1.bf16.msra.mxu0 0
    %2729 = vmatprep.subr.bf16.mxu0 0
    %2730 = vmatpush1.bf16.msra.mxu0 0
    %2731 = vmatprep.subr.bf16.mxu0 0
    %2732 = vmatpush1.bf16.msra.mxu0 0
    %2733 = vmatprep.subr.bf16.mxu0 0
    %2734 = vmatpush1.bf16.msra.mxu0 0
    %2735 = vmatprep.subr.bf16.mxu0 0
    %2736 = vmatpush1.bf16.msra.mxu0 0
    %2737 = vmatprep.subr.bf16.mxu0 0
    %2738 = vmatpush1.bf16.msra.mxu0 0
    %2739 = vmatprep.subr.bf16.mxu0 0
    %2740 = vmatpush1.bf16.msra.mxu0 0
    %2741 = vmatprep.mubr.bf16.mxu0 0
    %2742 = vmatmul.mubr.bf16.gmra.mrb[0].mxu0 %v2466
    %v2743 = vpop.f32.mrb[0].mxu0
    %v2744 = vadd.f32 0.0, %v2743
    %v2745 = vpop.f32.mrb[0].mxu0
    %v2746 = vadd.f32 0.0, %v2745
    %v2747 = vpop.f32.mrb[0].mxu0
    %v2748 = vpop.f32.mrb[0].mxu0
    %2749 = vdwg.mxu0
    %v2750 = vadd.f32 %v2472, %v2703
    %v2751 = vadd.f32 %v2473, %v2705
    %v2752 = vadd.f32 %v2474, %v2744
    %v2753 = vadd.f32 %v2475, %v2746
    %v2754 = vmul.f32 %v2750, 0.5
    %v2755 = vtanh.pop %v2754
    %v2756 = vadd.f32 %v2755, 1.0
    %v2757 = vmul.f32 %v2756, 0.5
    %v2758 = vmul.f32 %v2751, 0.5
    %v2759 = vtanh.pop %v2758
    %v2760 = vadd.f32 %v2759, 1.0
    %v2761 = vmul.f32 %v2760, 0.5
    %v2762 = vtanh.pop %v2752
    %v2763 = vmul.f32 %v2753, 0.5
    %v2764 = vtanh.pop %v2763
    %v2765 = vadd.f32 %v2764, 1.0
    %v2766 = vmul.f32 %v2765, 0.5
    %v2767 = vmul.f32 %v2761, %v2463
    %v2768 = vmul.f32 %v2757, %v2762
    %v2769 = vadd.f32 %v2767, %v2768
    %v2770 = vtanh.pop %v2769
    %v2771 = vmul.f32 %v2766, %v2770
    %v2772 = vpack.c.bf16 %v2771, %v2771
    %s2773 = scalar_lea.vmem [#allocation3], 24
    %2774 = vst [vmem:[%s2773] sm:$0xf] %v2772
    %s2775 = scalar_lea.vmem [#allocation2], 112
    %v2776 = vld [vmem:[%s2775] sm:$0xff]
    %v2777 = vld [vmem:[%s2775 + $0x8] sm:$0xff]
    %v2778 = vunpack.c.l.bf16 %v2776
    %v2779 = vunpack.c.h.bf16 %v2776
    %v2780 = vunpack.c.l.bf16 %v2777
    %v2781 = vunpack.c.h.bf16 %v2777
    %v2782 = vld [vmem:[#allocation6] sm:$0xff]
    %v2783 = vld [vmem:[#allocation6 + $0x8] sm:$0xff]
    %v2784 = vld [vmem:[#allocation6 + $0x10] sm:$0xff]
    %v2785 = vld [vmem:[#allocation6 + $0x18] sm:$0xff]
    %v2786 = vld [vmem:[#allocation6 + $0x20] sm:$0xff]
    %v2787 = vld [vmem:[#allocation6 + $0x28] sm:$0xff]
    %v2788 = vld [vmem:[#allocation6 + $0x30] sm:$0xff]
    %v2789 = vld [vmem:[#allocation6 + $0x38] sm:$0xff]
    %v2790 = vld [vmem:[#allocation6 + $0x40] sm:$0xff]
    %v2791 = vld [vmem:[#allocation6 + $0x48] sm:$0xff]
    %v2792 = vld [vmem:[#allocation6 + $0x50] sm:$0xff]
    %v2793 = vld [vmem:[#allocation6 + $0x58] sm:$0xff]
    %v2794 = vld [vmem:[#allocation6 + $0x60] sm:$0xff]
    %v2795 = vld [vmem:[#allocation6 + $0x68] sm:$0xff]
    %v2796 = vld [vmem:[#allocation6 + $0x70] sm:$0xff]
    %v2797 = vld [vmem:[#allocation6 + $0x78] sm:$0xff]
    %v2798 = vld [vmem:[#allocation6 + $0x80] sm:$0xff]
    %v2799 = vld [vmem:[#allocation6 + $0x88] sm:$0xff]
    %v2800 = vld [vmem:[#allocation6 + $0x90] sm:$0xff]
    %v2801 = vld [vmem:[#allocation6 + $0x98] sm:$0xff]
    %v2802 = vld [vmem:[#allocation6 + $0xa0] sm:$0xff]
    %v2803 = vld [vmem:[#allocation6 + $0xa8] sm:$0xff]
    %v2804 = vld [vmem:[#allocation6 + $0xb0] sm:$0xff]
    %v2805 = vld [vmem:[#allocation6 + $0xb8] sm:$0xff]
    %v2806 = vld [vmem:[#allocation6 + $0xc0] sm:$0xff]
    %v2807 = vld [vmem:[#allocation6 + $0xc8] sm:$0xff]
    %v2808 = vld [vmem:[#allocation6 + $0xd0] sm:$0xff]
    %v2809 = vld [vmem:[#allocation6 + $0xd8] sm:$0xff]
    %v2810 = vld [vmem:[#allocation6 + $0xe0] sm:$0xff]
    %v2811 = vld [vmem:[#allocation6 + $0xe8] sm:$0xff]
    %v2812 = vld [vmem:[#allocation6 + $0xf0] sm:$0xff]
    %v2813 = vld [vmem:[#allocation6 + $0xf8] sm:$0xff]
    %v2846 = vunpack.c.l.b16 %v2782
    %v2847 = vunpack.c.h.b16 %v2782
    %v2848 = vunpack.c.l.b16 %v2783
    %v2849 = vunpack.c.h.b16 %v2783
    %v2850 = vunpack.c.l.b16 %v2784
    %v2851 = vunpack.c.h.b16 %v2784
    %v2852 = vunpack.c.l.b16 %v2785
    %v2853 = vunpack.c.h.b16 %v2785
    %v2854 = vunpack.c.l.b16 %v2786
    %v2855 = vunpack.c.h.b16 %v2786
    %v2856 = vunpack.c.l.b16 %v2787
    %v2857 = vunpack.c.h.b16 %v2787
    %v2858 = vunpack.c.l.b16 %v2788
    %v2859 = vunpack.c.h.b16 %v2788
    %v2860 = vunpack.c.l.b16 %v2789
    %v2861 = vunpack.c.h.b16 %v2789
    %v2862 = vunpack.c.l.b16 %v2790
    %v2863 = vunpack.c.h.b16 %v2790
    %v2864 = vunpack.c.l.b16 %v2791
    %v2865 = vunpack.c.h.b16 %v2791
    %v2866 = vunpack.c.l.b16 %v2792
    %v2867 = vunpack.c.h.b16 %v2792
    %v2868 = vunpack.c.l.b16 %v2793
    %v2869 = vunpack.c.h.b16 %v2793
    %v2870 = vunpack.c.l.b16 %v2794
    %v2871 = vunpack.c.h.b16 %v2794
    %v2872 = vunpack.c.l.b16 %v2795
    %v2873 = vunpack.c.h.b16 %v2795
    %v2874 = vunpack.c.l.b16 %v2796
    %v2875 = vunpack.c.h.b16 %v2796
    %v2876 = vunpack.c.l.b16 %v2797
    %v2877 = vunpack.c.h.b16 %v2797
    %v2878 = vunpack.c.l.b16 %v2798
    %v2879 = vunpack.c.h.b16 %v2798
    %v2880 = vunpack.c.l.b16 %v2799
    %v2881 = vunpack.c.h.b16 %v2799
    %v2882 = vunpack.c.l.b16 %v2800
    %v2883 = vunpack.c.h.b16 %v2800
    %v2884 = vunpack.c.l.b16 %v2801
    %v2885 = vunpack.c.h.b16 %v2801
    %v2886 = vunpack.c.l.b16 %v2802
    %v2887 = vunpack.c.h.b16 %v2802
    %v2888 = vunpack.c.l.b16 %v2803
    %v2889 = vunpack.c.h.b16 %v2803
    %v2890 = vunpack.c.l.b16 %v2804
    %v2891 = vunpack.c.h.b16 %v2804
    %v2892 = vunpack.c.l.b16 %v2805
    %v2893 = vunpack.c.h.b16 %v2805
    %v2894 = vunpack.c.l.b16 %v2806
    %v2895 = vunpack.c.h.b16 %v2806
    %v2896 = vunpack.c.l.b16 %v2807
    %v2897 = vunpack.c.h.b16 %v2807
    %v2898 = vunpack.c.l.b16 %v2808
    %v2899 = vunpack.c.h.b16 %v2808
    %v2900 = vunpack.c.l.b16 %v2809
    %v2901 = vunpack.c.h.b16 %v2809
    %v2902 = vunpack.c.l.b16 %v2810
    %v2903 = vunpack.c.h.b16 %v2810
    %v2904 = vunpack.c.l.b16 %v2811
    %v2905 = vunpack.c.h.b16 %v2811
    %v2906 = vunpack.c.l.b16 %v2812
    %v2907 = vunpack.c.h.b16 %v2812
    %v2908 = vunpack.c.l.b16 %v2813
    %v2909 = vunpack.c.h.b16 %v2813
    %v2910 = vpack.c.b16 %v2850, %v2846
    %v2911 = vpack.c.b16 %v2851, %v2847
    %v2912 = vpack.c.b16 %v2852, %v2848
    %v2913 = vpack.c.b16 %v2853, %v2849
    %v2914 = vpack.c.b16 %v2858, %v2854
    %v2915 = vpack.c.b16 %v2859, %v2855
    %v2916 = vpack.c.b16 %v2860, %v2856
    %v2917 = vpack.c.b16 %v2861, %v2857
    %v2918 = vpack.c.b16 %v2866, %v2862
    %v2919 = vpack.c.b16 %v2867, %v2863
    %v2920 = vpack.c.b16 %v2868, %v2864
    %v2921 = vpack.c.b16 %v2869, %v2865
    %v2922 = vpack.c.b16 %v2874, %v2870
    %v2923 = vpack.c.b16 %v2875, %v2871
    %v2924 = vpack.c.b16 %v2876, %v2872
    %v2925 = vpack.c.b16 %v2877, %v2873
    %v2926 = vpack.c.b16 %v2882, %v2878
    %v2927 = vpack.c.b16 %v2883, %v2879
    %v2928 = vpack.c.b16 %v2884, %v2880
    %v2929 = vpack.c.b16 %v2885, %v2881
    %v2930 = vpack.c.b16 %v2890, %v2886
    %v2931 = vpack.c.b16 %v2891, %v2887
    %v2932 = vpack.c.b16 %v2892, %v2888
    %v2933 = vpack.c.b16 %v2893, %v2889
    %v2934 = vpack.c.b16 %v2898, %v2894
    %v2935 = vpack.c.b16 %v2899, %v2895
    %v2936 = vpack.c.b16 %v2900, %v2896
    %v2937 = vpack.c.b16 %v2901, %v2897
    %v2938 = vpack.c.b16 %v2906, %v2902
    %v2939 = vpack.c.b16 %v2907, %v2903
    %v2940 = vpack.c.b16 %v2908, %v2904
    %v2941 = vpack.c.b16 %v2909, %v2905
    %2974 = vmatprep.subr.bf16.mxu0 %v2911
    %2975 = vmatpush1.bf16.msra.mxu0 %v2910
    %2976 = vmatprep.subr.bf16.mxu0 %v2915
    %2977 = vmatpush1.bf16.msra.mxu0 %v2914
    %2978 = vmatprep.subr.bf16.mxu0 %v2919
    %2979 = vmatpush1.bf16.msra.mxu0 %v2918
    %2980 = vmatprep.subr.bf16.mxu0 %v2923
    %2981 = vmatpush1.bf16.msra.mxu0 %v2922
    %2982 = vmatprep.subr.bf16.mxu0 %v2927
    %2983 = vmatpush1.bf16.msra.mxu0 %v2926
    %2984 = vmatprep.subr.bf16.mxu0 %v2931
    %2985 = vmatpush1.bf16.msra.mxu0 %v2930
    %2986 = vmatprep.subr.bf16.mxu0 %v2935
    %2987 = vmatpush1.bf16.msra.mxu0 %v2934
    %2988 = vmatprep.subr.bf16.mxu0 %v2939
    %2989 = vmatpush1.bf16.msra.mxu0 %v2938
    %2990 = vmatprep.subr.bf16.mxu0 0
    %2991 = vmatpush1.bf16.msra.mxu0 0
    %2992 = vmatprep.subr.bf16.mxu0 0
    %2993 = vmatpush1.bf16.msra.mxu0 0
    %2994 = vmatprep.subr.bf16.mxu0 0
    %2995 = vmatpush1.bf16.msra.mxu0 0
    %2996 = vmatprep.subr.bf16.mxu0 0
    %2997 = vmatpush1.bf16.msra.mxu0 0
    %2998 = vmatprep.subr.bf16.mxu0 0
    %2999 = vmatpush1.bf16.msra.mxu0 0
    %3000 = vmatprep.subr.bf16.mxu0 0
    %3001 = vmatpush1.bf16.msra.mxu0 0
    %3002 = vmatprep.subr.bf16.mxu0 0
    %3003 = vmatpush1.bf16.msra.mxu0 0
    %3004 = vmatprep.subr.bf16.mxu0 0
    %3005 = vmatpush1.bf16.msra.mxu0 0
    %3006 = vmatprep.mubr.bf16.mxu0 0
    %3007 = vmatmul.mubr.bf16.gmra.mrb[0].mxu0 %v2772
    %v3008 = vpop.f32.mrb[0].mxu0
    %v3009 = vadd.f32 0.0, %v3008
    %v3010 = vpop.f32.mrb[0].mxu0
    %v3011 = vadd.f32 0.0, %v3010
    %v3012 = vpop.f32.mrb[0].mxu0
    %v3013 = vpop.f32.mrb[0].mxu0
    %3014 = vdwg.mxu0
    %3015 = vmatprep.subr.bf16.mxu0 %v2913
    %3016 = vmatpush1.bf16.msra.mxu0 %v2912
    %3017 = vmatprep.subr.bf16.mxu0 %v2917
    %3018 = vmatpush1.bf16.msra.mxu0 %v2916
    %3019 = vmatprep.subr.bf16.mxu0 %v2921
    %3020 = vmatpush1.bf16.msra.mxu0 %v2920
    %3021 = vmatprep.subr.bf16.mxu0 %v2925
    %3022 = vmatpush1.bf16.msra.mxu0 %v2924
    %3023 = vmatprep.subr.bf16.mxu0 %v2929
    %3024 = vmatpush1.bf16.msra.mxu0 %v2928
    %3025 = vmatprep.subr.bf16.mxu0 %v2933
    %3026 = vmatpush1.bf16.msra.mxu0 %v2932
    %3027 = vmatprep.subr.bf16.mxu0 %v2937
    %3028 = vmatpush1.bf16.msra.mxu0 %v2936
    %3029 = vmatprep.subr.bf16.mxu0 %v2941
    %3030 = vmatpush1.bf16.msra.mxu0 %v2940
    %3031 = vmatprep.subr.bf16.mxu0 0
    %3032 = vmatpush1.bf16.msra.mxu0 0
    %3033 = vmatprep.subr.bf16.mxu0 0
    %3034 = vmatpush1.bf16.msra.mxu0 0
    %3035 = vmatprep.subr.bf16.mxu0 0
    %3036 = vmatpush1.bf16.msra.mxu0 0
    %3037 = vmatprep.subr.bf16.mxu0 0
    %3038 = vmatpush1.bf16.msra.mxu0 0
    %3039 = vmatprep.subr.bf16.mxu0 0
    %3040 = vmatpush1.bf16.msra.mxu0 0
    %3041 = vmatprep.subr.bf16.mxu0 0
    %3042 = vmatpush1.bf16.msra.mxu0 0
    %3043 = vmatprep.subr.bf16.mxu0 0
    %3044 = vmatpush1.bf16.msra.mxu0 0
    %3045 = vmatprep.subr.bf16.mxu0 0
    %3046 = vmatpush1.bf16.msra.mxu0 0
    %3047 = vmatprep.mubr.bf16.mxu0 0
    %3048 = vmatmul.mubr.bf16.gmra.mrb[0].mxu0 %v2772
    %v3049 = vpop.f32.mrb[0].mxu0
    %v3050 = vadd.f32 0.0, %v3049
    %v3051 = vpop.f32.mrb[0].mxu0
    %v3052 = vadd.f32 0.0, %v3051
    %v3053 = vpop.f32.mrb[0].mxu0
    %v3054 = vpop.f32.mrb[0].mxu0
    %3055 = vdwg.mxu0
    %v3056 = vadd.f32 %v2778, %v3009
    %v3057 = vadd.f32 %v2779, %v3011
    %v3058 = vadd.f32 %v2780, %v3050
    %v3059 = vadd.f32 %v2781, %v3052
    %v3060 = vmul.f32 %v3056, 0.5
    %v3061 = vtanh.pop %v3060
    %v3062 = vadd.f32 %v3061, 1.0
    %v3063 = vmul.f32 %v3062, 0.5
    %v3064 = vmul.f32 %v3057, 0.5
    %v3065 = vtanh.pop %v3064
    %v3066 = vadd.f32 %v3065, 1.0
    %v3067 = vmul.f32 %v3066, 0.5
    %v3068 = vtanh.pop %v3058
    %v3069 = vmul.f32 %v3059, 0.5
    %v3070 = vtanh.pop %v3069
    %v3071 = vadd.f32 %v3070, 1.0
    %v3072 = vmul.f32 %v3071, 0.5
    %v3073 = vmul.f32 %v3067, %v2769
    %v3074 = vmul.f32 %v3063, %v3068
    %v3075 = vadd.f32 %v3073, %v3074
    %v3076 = vtanh.pop %v3075
    %v3077 = vmul.f32 %v3072, %v3076
    %v3078 = vpack.c.bf16 %v3077, %v3077
    %s3079 = scalar_lea.vmem [#allocation3], 28
    %3080 = vst [vmem:[%s3079] sm:$0xf] %v3078
    %v3081 = vld [vmem:[#allocation3] sm:$0xf]
    %v3082 = vld [vmem:[#allocation3 + $0x4] sm:$0xf]
    %v3083 = vld [vmem:[#allocation3 + $0x8] sm:$0xf]
    %v3084 = vld [vmem:[#allocation3 + $0xc] sm:$0xf]
    %v3085 = vld [vmem:[#allocation3 + $0x10] sm:$0xf]
    %v3086 = vld [vmem:[#allocation3 + $0x14] sm:$0xf]
    %v3087 = vld [vmem:[#allocation3 + $0x18] sm:$0xf]
    %v3088 = vld [vmem:[#allocation3 + $0x1c] sm:$0xf]
    %v3089 = vld [vmem:[#allocation8] sm:$0xff]
    %v3090 = vld [vmem:[#allocation8 + $0x8] sm:$0xff]
    %v3091 = vld [vmem:[#allocation8 + $0x10] sm:$0xff]
    %v3092 = vld [vmem:[#allocation8 + $0x18] sm:$0xff]
    %v3093 = vld [vmem:[#allocation8 + $0x20] sm:$0xff]
    %v3094 = vld [vmem:[#allocation8 + $0x28] sm:$0xff]
    %v3095 = vld [vmem:[#allocation8 + $0x30] sm:$0xff]
    %v3096 = vld [vmem:[#allocation8 + $0x38] sm:$0xff]
    %v3097 = vld [vmem:[#allocation8 + $0x40] sm:$0xff]
    %v3098 = vld [vmem:[#allocation8 + $0x48] sm:$0xff]
    %v3099 = vld [vmem:[#allocation8 + $0x50] sm:$0xff]
    %v3100 = vld [vmem:[#allocation8 + $0x58] sm:$0xff]
    %v3101 = vld [vmem:[#allocation8 + $0x60] sm:$0xff]
    %v3102 = vld [vmem:[#allocation8 + $0x68] sm:$0xff]
    %v3103 = vld [vmem:[#allocation8 + $0x70] sm:$0xff]
    %v3104 = vld [vmem:[#allocation8 + $0x78] sm:$0xff]
    %v3105 = vld [vmem:[#allocation8 + $0x80] sm:$0xff]
    %v3106 = vld [vmem:[#allocation8 + $0x88] sm:$0xff]
    %v3107 = vld [vmem:[#allocation8 + $0x90] sm:$0xff]
    %v3108 = vld [vmem:[#allocation8 + $0x98] sm:$0xff]
    %v3109 = vld [vmem:[#allocation8 + $0xa0] sm:$0xff]
    %v3110 = vld [vmem:[#allocation8 + $0xa8] sm:$0xff]
    %v3111 = vld [vmem:[#allocation8 + $0xb0] sm:$0xff]
    %v3112 = vld [vmem:[#allocation8 + $0xb8] sm:$0xff]
    %v3113 = vld [vmem:[#allocation8 + $0xc0] sm:$0xff]
    %v3114 = vld [vmem:[#allocation8 + $0xc8] sm:$0xff]
    %v3115 = vld [vmem:[#allocation8 + $0xd0] sm:$0xff]
    %v3116 = vld [vmem:[#allocation8 + $0xd8] sm:$0xff]
    %v3117 = vld [vmem:[#allocation8 + $0xe0] sm:$0xff]
    %v3118 = vld [vmem:[#allocation8 + $0xe8] sm:$0xff]
    %v3119 = vld [vmem:[#allocation8 + $0xf0] sm:$0xff]
    %v3120 = vld [vmem:[#allocation8 + $0xf8] sm:$0xff]
    %v3121 = vld [vmem:[%s6] sm:$0xf]
    %v3123 = vlaneseq
    %v3124 = vshrl.u32 %v3123, 7
    %v3125 = vsub.s32 0, %v3124
    %v3126 = vrot.slane %v3121, %v3125
    %v3127 = vlaneseq
    %v3128 = vshrl.u32 %v3127, 7
    %v3129 = vsub.s32 1, %v3128
    %v3130 = vrot.slane %v3121, %v3129
    %v3131 = vlaneseq
    %v3132 = vshrl.u32 %v3131, 7
    %v3133 = vsub.s32 2, %v3132
    %v3134 = vrot.slane %v3121, %v3133
    %v3135 = vlaneseq
    %v3136 = vshrl.u32 %v3135, 7
    %v3137 = vsub.s32 3, %v3136
    %v3138 = vrot.slane %v3121, %v3137
    %v3151 = vunpack.c.l.b16 %v3081
    %v3152 = vunpack.c.l.b16 %v3082
    %v3153 = vunpack.c.l.b16 %v3083
    %v3154 = vunpack.c.l.b16 %v3084
    %v3155 = vunpack.c.l.b16 %v3085
    %v3156 = vunpack.c.l.b16 %v3086
    %v3157 = vunpack.c.l.b16 %v3087
    %v3158 = vunpack.c.l.b16 %v3088
    %v3159 = vpack.c.b16 %v3152, %v3151
    %v3160 = vpack.c.b16 %v3154, %v3153
    %v3161 = vpack.c.b16 %v3156, %v3155
    %v3162 = vpack.c.b16 %v3158, %v3157
    %v3199 = vunpack.c.l.b16 %v3089
    %v3200 = vunpack.c.h.b16 %v3089
    %v3201 = vunpack.c.l.b16 %v3090
    %v3202 = vunpack.c.h.b16 %v3090
    %v3203 = vunpack.c.l.b16 %v3091
    %v3204 = vunpack.c.h.b16 %v3091
    %v3205 = vunpack.c.l.b16 %v3092
    %v3206 = vunpack.c.h.b16 %v3092
    %v3207 = vunpack.c.l.b16 %v3093
    %v3208 = vunpack.c.h.b16 %v3093
    %v3209 = vunpack.c.l.b16 %v3094
    %v3210 = vunpack.c.h.b16 %v3094
    %v3211 = vunpack.c.l.b16 %v3095
    %v3212 = vunpack.c.h.b16 %v3095
    %v3213 = vunpack.c.l.b16 %v3096
    %v3214 = vunpack.c.h.b16 %v3096
    %v3215 = vunpack.c.l.b16 %v3097
    %v3216 = vunpack.c.h.b16 %v3097
    %v3217 = vunpack.c.l.b16 %v3098
    %v3218 = vunpack.c.h.b16 %v3098
    %v3219 = vunpack.c.l.b16 %v3099
    %v3220 = vunpack.c.h.b16 %v3099
    %v3221 = vunpack.c.l.b16 %v3100
    %v3222 = vunpack.c.h.b16 %v3100
    %v3223 = vunpack.c.l.b16 %v3101
    %v3224 = vunpack.c.h.b16 %v3101
    %v3225 = vunpack.c.l.b16 %v3102
    %v3226 = vunpack.c.h.b16 %v3102
    %v3227 = vunpack.c.l.b16 %v3103
    %v3228 = vunpack.c.h.b16 %v3103
    %v3229 = vunpack.c.l.b16 %v3104
    %v3230 = vunpack.c.h.b16 %v3104
    %v3231 = vunpack.c.l.b16 %v3105
    %v3232 = vunpack.c.h.b16 %v3105
    %v3233 = vunpack.c.l.b16 %v3106
    %v3234 = vunpack.c.h.b16 %v3106
    %v3235 = vunpack.c.l.b16 %v3107
    %v3236 = vunpack.c.h.b16 %v3107
    %v3237 = vunpack.c.l.b16 %v3108
    %v3238 = vunpack.c.h.b16 %v3108
    %v3239 = vunpack.c.l.b16 %v3109
    %v3240 = vunpack.c.h.b16 %v3109
    %v3241 = vunpack.c.l.b16 %v3110
    %v3242 = vunpack.c.h.b16 %v3110
    %v3243 = vunpack.c.l.b16 %v3111
    %v3244 = vunpack.c.h.b16 %v3111
    %v3245 = vunpack.c.l.b16 %v3112
    %v3246 = vunpack.c.h.b16 %v3112
    %v3247 = vunpack.c.l.b16 %v3113
    %v3248 = vunpack.c.h.b16 %v3113
    %v3249 = vunpack.c.l.b16 %v3114
    %v3250 = vunpack.c.h.b16 %v3114
    %v3251 = vunpack.c.l.b16 %v3115
    %v3252 = vunpack.c.h.b16 %v3115
    %v3253 = vunpack.c.l.b16 %v3116
    %v3254 = vunpack.c.h.b16 %v3116
    %v3255 = vunpack.c.l.b16 %v3117
    %v3256 = vunpack.c.h.b16 %v3117
    %v3257 = vunpack.c.l.b16 %v3118
    %v3258 = vunpack.c.h.b16 %v3118
    %v3259 = vunpack.c.l.b16 %v3119
    %v3260 = vunpack.c.h.b16 %v3119
    %v3261 = vunpack.c.l.b16 %v3120
    %v3262 = vunpack.c.h.b16 %v3120
    %v3263 = vpack.c.b16 %v3203, %v3199
    %v3264 = vpack.c.b16 %v3204, %v3200
    %v3265 = vpack.c.b16 %v3205, %v3201
    %v3266 = vpack.c.b16 %v3206, %v3202
    %v3267 = vpack.c.b16 %v3211, %v3207
    %v3268 = vpack.c.b16 %v3212, %v3208
    %v3269 = vpack.c.b16 %v3213, %v3209
    %v3270 = vpack.c.b16 %v3214, %v3210
    %v3271 = vpack.c.b16 %v3219, %v3215
    %v3272 = vpack.c.b16 %v3220, %v3216
    %v3273 = vpack.c.b16 %v3221, %v3217
    %v3274 = vpack.c.b16 %v3222, %v3218
    %v3275 = vpack.c.b16 %v3227, %v3223
    %v3276 = vpack.c.b16 %v3228, %v3224
    %v3277 = vpack.c.b16 %v3229, %v3225
    %v3278 = vpack.c.b16 %v3230, %v3226
    %v3279 = vpack.c.b16 %v3235, %v3231
    %v3280 = vpack.c.b16 %v3236, %v3232
    %v3281 = vpack.c.b16 %v3237, %v3233
    %v3282 = vpack.c.b16 %v3238, %v3234
    %v3283 = vpack.c.b16 %v3243, %v3239
    %v3284 = vpack.c.b16 %v3244, %v3240
    %v3285 = vpack.c.b16 %v3245, %v3241
    %v3286 = vpack.c.b16 %v3246, %v3242
    %v3287 = vpack.c.b16 %v3251, %v3247
    %v3288 = vpack.c.b16 %v3252, %v3248
    %v3289 = vpack.c.b16 %v3253, %v3249
    %v3290 = vpack.c.b16 %v3254, %v3250
    %v3291 = vpack.c.b16 %v3259, %v3255
    %v3292 = vpack.c.b16 %v3260, %v3256
    %v3293 = vpack.c.b16 %v3261, %v3257
    %v3294 = vpack.c.b16 %v3262, %v3258
    %3327 = vmatprep.subr.bf16.mxu0 %v3264
    %3328 = vmatpush1.bf16.msra.mxu0 %v3263
    %3329 = vmatprep.subr.bf16.mxu0 %v3268
    %3330 = vmatpush1.bf16.msra.mxu0 %v3267
    %3331 = vmatprep.subr.bf16.mxu0 %v3272
    %3332 = vmatpush1.bf16.msra.mxu0 %v3271
    %3333 = vmatprep.subr.bf16.mxu0 %v3276
    %3334 = vmatpush1.bf16.msra.mxu0 %v3275
    %3335 = vmatprep.subr.bf16.mxu0 %v3280
    %3336 = vmatpush1.bf16.msra.mxu0 %v3279
    %3337 = vmatprep.subr.bf16.mxu0 %v3284
    %3338 = vmatpush1.bf16.msra.mxu0 %v3283
    %3339 = vmatprep.subr.bf16.mxu0 %v3288
    %3340 = vmatpush1.bf16.msra.mxu0 %v3287
    %3341 = vmatprep.subr.bf16.mxu0 %v3292
    %3342 = vmatpush1.bf16.msra.mxu0 %v3291
    %3343 = vmatprep.subr.bf16.mxu0 0
    %3344 = vmatpush1.bf16.msra.mxu0 0
    %3345 = vmatprep.subr.bf16.mxu0 0
    %3346 = vmatpush1.bf16.msra.mxu0 0
    %3347 = vmatprep.subr.bf16.mxu0 0
    %3348 = vmatpush1.bf16.msra.mxu0 0
    %3349 = vmatprep.subr.bf16.mxu0 0
    %3350 = vmatpush1.bf16.msra.mxu0 0
    %3351 = vmatprep.subr.bf16.mxu0 0
    %3352 = vmatpush1.bf16.msra.mxu0 0
    %3353 = vmatprep.subr.bf16.mxu0 0
    %3354 = vmatpush1.bf16.msra.mxu0 0
    %3355 = vmatprep.subr.bf16.mxu0 0
    %3356 = vmatpush1.bf16.msra.mxu0 0
    %3357 = vmatprep.subr.bf16.mxu0 0
    %3358 = vmatpush1.bf16.msra.mxu0 0
    %3359 = vmatprep.mubr.bf16.mxu0 0
    %3360 = vmatmul.mubr.bf16.gmra.mrb[0].mxu0 %v3159
    %v3361 = vpop.f32.mrb[0].mxu0
    %v3362 = vadd.f32 %v3126, %v3361
    %v3363 = vpop.f32.mrb[0].mxu0
    %v3364 = vadd.f32 %v3130, %v3363
    %v3365 = vpop.f32.mrb[0].mxu0
    %v3366 = vadd.f32 %v3126, %v3365
    %v3367 = vpop.f32.mrb[0].mxu0
    %v3368 = vadd.f32 %v3130, %v3367
    %3369 = vmatprep.mubr.bf16.mxu0 0
    %3370 = vmatmul.mubr.bf16.gmra.mrb[0].mxu0 %v3160
    %v3371 = vpop.f32.mrb[0].mxu0
    %v3372 = vadd.f32 %v3126, %v3371
    %v3373 = vpop.f32.mrb[0].mxu0
    %v3374 = vadd.f32 %v3130, %v3373
    %v3375 = vpop.f32.mrb[0].mxu0
    %v3376 = vadd.f32 %v3126, %v3375
    %v3377 = vpop.f32.mrb[0].mxu0
    %v3378 = vadd.f32 %v3130, %v3377
    %3379 = vmatprep.mubr.bf16.mxu0 0
    %3380 = vmatmul.mubr.bf16.gmra.mrb[0].mxu0 %v3161
    %v3381 = vpop.f32.mrb[0].mxu0
    %v3382 = vadd.f32 %v3126, %v3381
    %v3383 = vpop.f32.mrb[0].mxu0
    %v3384 = vadd.f32 %v3130, %v3383
    %v3385 = vpop.f32.mrb[0].mxu0
    %v3386 = vadd.f32 %v3126, %v3385
    %v3387 = vpop.f32.mrb[0].mxu0
    %v3388 = vadd.f32 %v3130, %v3387
    %3389 = vmatprep.mubr.bf16.mxu0 0
    %3390 = vmatmul.mubr.bf16.gmra.mrb[0].mxu0 %v3162
    %v3391 = vpop.f32.mrb[0].mxu0
    %v3392 = vadd.f32 %v3126, %v3391
    %v3393 = vpop.f32.mrb[0].mxu0
    %v3394 = vadd.f32 %v3130, %v3393
    %v3395 = vpop.f32.mrb[0].mxu0
    %v3396 = vadd.f32 %v3126, %v3395
    %v3397 = vpop.f32.mrb[0].mxu0
    %v3398 = vadd.f32 %v3130, %v3397
    %3399 = vdwg.mxu0
    %3400 = vmatprep.subr.bf16.mxu0 %v3266
    %3401 = vmatpush1.bf16.msra.mxu0 %v3265
    %3402 = vmatprep.subr.bf16.mxu0 %v3270
    %3403 = vmatpush1.bf16.msra.mxu0 %v3269
    %3404 = vmatprep.subr.bf16.mxu0 %v3274
    %3405 = vmatpush1.bf16.msra.mxu0 %v3273
    %3406 = vmatprep.subr.bf16.mxu0 %v3278
    %3407 = vmatpush1.bf16.msra.mxu0 %v3277
    %3408 = vmatprep.subr.bf16.mxu0 %v3282
    %3409 = vmatpush1.bf16.msra.mxu0 %v3281
    %3410 = vmatprep.subr.bf16.mxu0 %v3286
    %3411 = vmatpush1.bf16.msra.mxu0 %v3285
    %3412 = vmatprep.subr.bf16.mxu0 %v3290
    %3413 = vmatpush1.bf16.msra.mxu0 %v3289
    %3414 = vmatprep.subr.bf16.mxu0 %v3294
    %3415 = vmatpush1.bf16.msra.mxu0 %v3293
    %3416 = vmatprep.subr.bf16.mxu0 0
    %3417 = vmatpush1.bf16.msra.mxu0 0
    %3418 = vmatprep.subr.bf16.mxu0 0
    %3419 = vmatpush1.bf16.msra.mxu0 0
    %3420 = vmatprep.subr.bf16.mxu0 0
    %3421 = vmatpush1.bf16.msra.mxu0 0
    %3422 = vmatprep.subr.bf16.mxu0 0
    %3423 = vmatpush1.bf16.msra.mxu0 0
    %3424 = vmatprep.subr.bf16.mxu0 0
    %3425 = vmatpush1.bf16.msra.mxu0 0
    %3426 = vmatprep.subr.bf16.mxu0 0
    %3427 = vmatpush1.bf16.msra.mxu0 0
    %3428 = vmatprep.subr.bf16.mxu0 0
    %3429 = vmatpush1.bf16.msra.mxu0 0
    %3430 = vmatprep.subr.bf16.mxu0 0
    %3431 = vmatpush1.bf16.msra.mxu0 0
    %3432 = vmatprep.mubr.bf16.mxu0 0
    %3433 = vmatmul.mubr.bf16.gmra.mrb[0].mxu0 %v3159
    %v3434 = vpop.f32.mrb[0].mxu0
    %v3435 = vadd.f32 %v3134, %v3434
    %v3436 = vpop.f32.mrb[0].mxu0
    %v3437 = vadd.f32 %v3138, %v3436
    %v3438 = vpop.f32.mrb[0].mxu0
    %v3439 = vadd.f32 %v3134, %v3438
    %v3440 = vpop.f32.mrb[0].mxu0
    %v3441 = vadd.f32 %v3138, %v3440
    %3442 = vmatprep.mubr.bf16.mxu0 0
    %3443 = vmatmul.mubr.bf16.gmra.mrb[0].mxu0 %v3160
    %v3444 = vpop.f32.mrb[0].mxu0
    %v3445 = vadd.f32 %v3134, %v3444
    %v3446 = vpop.f32.mrb[0].mxu0
    %v3447 = vadd.f32 %v3138, %v3446
    %v3448 = vpop.f32.mrb[0].mxu0
    %v3449 = vadd.f32 %v3134, %v3448
    %v3450 = vpop.f32.mrb[0].mxu0
    %v3451 = vadd.f32 %v3138, %v3450
    %3452 = vmatprep.mubr.bf16.mxu0 0
    %3453 = vmatmul.mubr.bf16.gmra.mrb[0].mxu0 %v3161
    %v3454 = vpop.f32.mrb[0].mxu0
    %v3455 = vadd.f32 %v3134, %v3454
    %v3456 = vpop.f32.mrb[0].mxu0
    %v3457 = vadd.f32 %v3138, %v3456
    %v3458 = vpop.f32.mrb[0].mxu0
    %v3459 = vadd.f32 %v3134, %v3458
    %v3460 = vpop.f32.mrb[0].mxu0
    %v3461 = vadd.f32 %v3138, %v3460
    %3462 = vmatprep.mubr.bf16.mxu0 0
    %3463 = vmatmul.mubr.bf16.gmra.mrb[0].mxu0 %v3162
    %v3464 = vpop.f32.mrb[0].mxu0
    %v3465 = vadd.f32 %v3134, %v3464
    %v3466 = vpop.f32.mrb[0].mxu0
    %v3467 = vadd.f32 %v3138, %v3466
    %v3468 = vpop.f32.mrb[0].mxu0
    %v3469 = vadd.f32 %v3134, %v3468
    %v3470 = vpop.f32.mrb[0].mxu0
    %v3471 = vadd.f32 %v3138, %v3470
    %3472 = vdwg.mxu0
    %v3473 = vpack.c.bf16 %v3362, %v3362
    %v3474 = vpack.c.bf16 %v3364, %v3364
    %v3475 = vpack.c.bf16 %v3435, %v3435
    %v3476 = vpack.c.bf16 %v3437, %v3437
    %v3477 = vpack.c.bf16 %v3366, %v3366
    %v3478 = vpack.c.bf16 %v3368, %v3368
    %v3479 = vpack.c.bf16 %v3439, %v3439
    %v3480 = vpack.c.bf16 %v3441, %v3441
    %v3481 = vpack.c.bf16 %v3372, %v3372
    %v3482 = vpack.c.bf16 %v3374, %v3374
    %v3483 = vpack.c.bf16 %v3445, %v3445
    %v3484 = vpack.c.bf16 %v3447, %v3447
    %v3485 = vpack.c.bf16 %v3376, %v3376
    %v3486 = vpack.c.bf16 %v3378, %v3378
    %v3487 = vpack.c.bf16 %v3449, %v3449
    %v3488 = vpack.c.bf16 %v3451, %v3451
    %v3489 = vpack.c.bf16 %v3382, %v3382
    %v3490 = vpack.c.bf16 %v3384, %v3384
    %v3491 = vpack.c.bf16 %v3455, %v3455
    %v3492 = vpack.c.bf16 %v3457, %v3457
    %v3493 = vpack.c.bf16 %v3386, %v3386
    %v3494 = vpack.c.bf16 %v3388, %v3388
    %v3495 = vpack.c.bf16 %v3459, %v3459
    %v3496 = vpack.c.bf16 %v3461, %v3461
    %v3497 = vpack.c.bf16 %v3392, %v3392
    %v3498 = vpack.c.bf16 %v3394, %v3394
    %v3499 = vpack.c.bf16 %v3465, %v3465
    %v3500 = vpack.c.bf16 %v3467, %v3467
    %v3501 = vpack.c.bf16 %v3396, %v3396
    %v3502 = vpack.c.bf16 %v3398, %v3398
    %v3503 = vpack.c.bf16 %v3469, %v3469
    %v3504 = vpack.c.bf16 %v3471, %v3471
    %v3537 = vunpack.c.l.b16 %v3473
    %v3538 = vunpack.c.l.b16 %v3474
    %v3539 = vunpack.c.l.b16 %v3475
    %v3540 = vunpack.c.l.b16 %v3476
    %v3541 = vunpack.c.l.b16 %v3477
    %v3542 = vunpack.c.l.b16 %v3478
    %v3543 = vunpack.c.l.b16 %v3479
    %v3544 = vunpack.c.l.b16 %v3480
    %v3545 = vunpack.c.l.b16 %v3481
    %v3546 = vunpack.c.l.b16 %v3482
    %v3547 = vunpack.c.l.b16 %v3483
    %v3548 = vunpack.c.l.b16 %v3484
    %v3549 = vunpack.c.l.b16 %v3485
    %v3550 = vunpack.c.l.b16 %v3486
    %v3551 = vunpack.c.l.b16 %v3487
    %v3552 = vunpack.c.l.b16 %v3488
    %v3553 = vunpack.c.l.b16 %v3489
    %v3554 = vunpack.c.l.b16 %v3490
    %v3555 = vunpack.c.l.b16 %v3491
    %v3556 = vunpack.c.l.b16 %v3492
    %v3557 = vunpack.c.l.b16 %v3493
    %v3558 = vunpack.c.l.b16 %v3494
    %v3559 = vunpack.c.l.b16 %v3495
    %v3560 = vunpack.c.l.b16 %v3496
    %v3561 = vunpack.c.l.b16 %v3497
    %v3562 = vunpack.c.l.b16 %v3498
    %v3563 = vunpack.c.l.b16 %v3499
    %v3564 = vunpack.c.l.b16 %v3500
    %v3565 = vunpack.c.l.b16 %v3501
    %v3566 = vunpack.c.l.b16 %v3502
    %v3567 = vunpack.c.l.b16 %v3503
    %v3568 = vunpack.c.l.b16 %v3504
    %v3569 = vpack.c.b16 %v3538, %v3537
    %v3570 = vpack.c.b16 %v3540, %v3539
    %v3571 = vpack.c.b16 %v3542, %v3541
    %v3572 = vpack.c.b16 %v3544, %v3543
    %v3573 = vpack.c.b16 %v3546, %v3545
    %v3574 = vpack.c.b16 %v3548, %v3547
    %v3575 = vpack.c.b16 %v3550, %v3549
    %v3576 = vpack.c.b16 %v3552, %v3551
    %v3577 = vpack.c.b16 %v3554, %v3553
    %v3578 = vpack.c.b16 %v3556, %v3555
    %v3579 = vpack.c.b16 %v3558, %v3557
    %v3580 = vpack.c.b16 %v3560, %v3559
    %v3581 = vpack.c.b16 %v3562, %v3561
    %v3582 = vpack.c.b16 %v3564, %v3563
    %v3583 = vpack.c.b16 %v3566, %v3565
    %v3584 = vpack.c.b16 %v3568, %v3567
    %3601 = vst [vmem:[#allocation2] sm:$0xff] %v3569
    %3602 = vst [vmem:[#allocation2 + $0x8] sm:$0xff] %v3570
    %3603 = vst [vmem:[#allocation2 + $0x10] sm:$0xff] %v3571
    %3604 = vst [vmem:[#allocation2 + $0x18] sm:$0xff] %v3572
    %3605 = vst [vmem:[#allocation2 + $0x20] sm:$0xff] %v3573
    %3606 = vst [vmem:[#allocation2 + $0x28] sm:$0xff] %v3574
    %3607 = vst [vmem:[#allocation2 + $0x30] sm:$0xff] %v3575
    %3608 = vst [vmem:[#allocation2 + $0x38] sm:$0xff] %v3576
    %3609 = vst [vmem:[#allocation2 + $0x40] sm:$0xff] %v3577
    %3610 = vst [vmem:[#allocation2 + $0x48] sm:$0xff] %v3578
    %3611 = vst [vmem:[#allocation2 + $0x50] sm:$0xff] %v3579
    %3612 = vst [vmem:[#allocation2 + $0x58] sm:$0xff] %v3580
    %3613 = vst [vmem:[#allocation2 + $0x60] sm:$0xff] %v3581
    %3614 = vst [vmem:[#allocation2 + $0x68] sm:$0xff] %v3582
    %3615 = vst [vmem:[#allocation2 + $0x70] sm:$0xff] %v3583
    %3616 = vst [vmem:[#allocation2 + $0x78] sm:$0xff] %v3584
    %v3617 = vld [vmem:[#allocation2] sm:$0xff]
    %v3618 = vld [vmem:[#allocation2 + $0x8] sm:$0xff]
    %v3619 = vunpack.c.l.bf16 %v3617
    %v3620 = vunpack.c.h.bf16 %v3617
    %v3621 = vunpack.c.l.bf16 %v3618
    %v3622 = vunpack.c.h.bf16 %v3618
    %v3623 = vld [vmem:[#allocation9] sm:$0xff]
    %v3624 = vld [vmem:[#allocation9 + $0x8] sm:$0xff]
    %v3625 = vld [vmem:[#allocation9 + $0x10] sm:$0xff]
    %v3626 = vld [vmem:[#allocation9 + $0x18] sm:$0xff]
    %v3627 = vld [vmem:[#allocation9 + $0x20] sm:$0xff]
    %v3628 = vld [vmem:[#allocation9 + $0x28] sm:$0xff]
    %v3629 = vld [vmem:[#allocation9 + $0x30] sm:$0xff]
    %v3630 = vld [vmem:[#allocation9 + $0x38] sm:$0xff]
    %v3631 = vld [vmem:[#allocation9 + $0x40] sm:$0xff]
    %v3632 = vld [vmem:[#allocation9 + $0x48] sm:$0xff]
    %v3633 = vld [vmem:[#allocation9 + $0x50] sm:$0xff]
    %v3634 = vld [vmem:[#allocation9 + $0x58] sm:$0xff]
    %v3635 = vld [vmem:[#allocation9 + $0x60] sm:$0xff]
    %v3636 = vld [vmem:[#allocation9 + $0x68] sm:$0xff]
    %v3637 = vld [vmem:[#allocation9 + $0x70] sm:$0xff]
    %v3638 = vld [vmem:[#allocation9 + $0x78] sm:$0xff]
    %v3639 = vld [vmem:[#allocation9 + $0x80] sm:$0xff]
    %v3640 = vld [vmem:[#allocation9 + $0x88] sm:$0xff]
    %v3641 = vld [vmem:[#allocation9 + $0x90] sm:$0xff]
    %v3642 = vld [vmem:[#allocation9 + $0x98] sm:$0xff]
    %v3643 = vld [vmem:[#allocation9 + $0xa0] sm:$0xff]
    %v3644 = vld [vmem:[#allocation9 + $0xa8] sm:$0xff]
    %v3645 = vld [vmem:[#allocation9 + $0xb0] sm:$0xff]
    %v3646 = vld [vmem:[#allocation9 + $0xb8] sm:$0xff]
    %v3647 = vld [vmem:[#allocation9 + $0xc0] sm:$0xff]
    %v3648 = vld [vmem:[#allocation9 + $0xc8] sm:$0xff]
    %v3649 = vld [vmem:[#allocation9 + $0xd0] sm:$0xff]
    %v3650 = vld [vmem:[#allocation9 + $0xd8] sm:$0xff]
    %v3651 = vld [vmem:[#allocation9 + $0xe0] sm:$0xff]
    %v3652 = vld [vmem:[#allocation9 + $0xe8] sm:$0xff]
    %v3653 = vld [vmem:[#allocation9 + $0xf0] sm:$0xff]
    %v3654 = vld [vmem:[#allocation9 + $0xf8] sm:$0xff]
    %v3687 = vunpack.c.l.b16 %v3623
    %v3688 = vunpack.c.h.b16 %v3623
    %v3689 = vunpack.c.l.b16 %v3624
    %v3690 = vunpack.c.h.b16 %v3624
    %v3691 = vunpack.c.l.b16 %v3625
    %v3692 = vunpack.c.h.b16 %v3625
    %v3693 = vunpack.c.l.b16 %v3626
    %v3694 = vunpack.c.h.b16 %v3626
    %v3695 = vunpack.c.l.b16 %v3627
    %v3696 = vunpack.c.h.b16 %v3627
    %v3697 = vunpack.c.l.b16 %v3628
    %v3698 = vunpack.c.h.b16 %v3628
    %v3699 = vunpack.c.l.b16 %v3629
    %v3700 = vunpack.c.h.b16 %v3629
    %v3701 = vunpack.c.l.b16 %v3630
    %v3702 = vunpack.c.h.b16 %v3630
    %v3703 = vunpack.c.l.b16 %v3631
    %v3704 = vunpack.c.h.b16 %v3631
    %v3705 = vunpack.c.l.b16 %v3632
    %v3706 = vunpack.c.h.b16 %v3632
    %v3707 = vunpack.c.l.b16 %v3633
    %v3708 = vunpack.c.h.b16 %v3633
    %v3709 = vunpack.c.l.b16 %v3634
    %v3710 = vunpack.c.h.b16 %v3634
    %v3711 = vunpack.c.l.b16 %v3635
    %v3712 = vunpack.c.h.b16 %v3635
    %v3713 = vunpack.c.l.b16 %v3636
    %v3714 = vunpack.c.h.b16 %v3636
    %v3715 = vunpack.c.l.b16 %v3637
    %v3716 = vunpack.c.h.b16 %v3637
    %v3717 = vunpack.c.l.b16 %v3638
    %v3718 = vunpack.c.h.b16 %v3638
    %v3719 = vunpack.c.l.b16 %v3639
    %v3720 = vunpack.c.h.b16 %v3639
    %v3721 = vunpack.c.l.b16 %v3640
    %v3722 = vunpack.c.h.b16 %v3640
    %v3723 = vunpack.c.l.b16 %v3641
    %v3724 = vunpack.c.h.b16 %v3641
    %v3725 = vunpack.c.l.b16 %v3642
    %v3726 = vunpack.c.h.b16 %v3642
    %v3727 = vunpack.c.l.b16 %v3643
    %v3728 = vunpack.c.h.b16 %v3643
    %v3729 = vunpack.c.l.b16 %v3644
    %v3730 = vunpack.c.h.b16 %v3644
    %v3731 = vunpack.c.l.b16 %v3645
    %v3732 = vunpack.c.h.b16 %v3645
    %v3733 = vunpack.c.l.b16 %v3646
    %v3734 = vunpack.c.h.b16 %v3646
    %v3735 = vunpack.c.l.b16 %v3647
    %v3736 = vunpack.c.h.b16 %v3647
    %v3737 = vunpack.c.l.b16 %v3648
    %v3738 = vunpack.c.h.b16 %v3648
    %v3739 = vunpack.c.l.b16 %v3649
    %v3740 = vunpack.c.h.b16 %v3649
    %v3741 = vunpack.c.l.b16 %v3650
    %v3742 = vunpack.c.h.b16 %v3650
    %v3743 = vunpack.c.l.b16 %v3651
    %v3744 = vunpack.c.h.b16 %v3651
    %v3745 = vunpack.c.l.b16 %v3652
    %v3746 = vunpack.c.h.b16 %v3652
    %v3747 = vunpack.c.l.b16 %v3653
    %v3748 = vunpack.c.h.b16 %v3653
    %v3749 = vunpack.c.l.b16 %v3654
    %v3750 = vunpack.c.h.b16 %v3654
    %v3751 = vpack.c.b16 %v3691, %v3687
    %v3752 = vpack.c.b16 %v3692, %v3688
    %v3753 = vpack.c.b16 %v3693, %v3689
    %v3754 = vpack.c.b16 %v3694, %v3690
    %v3755 = vpack.c.b16 %v3699, %v3695
    %v3756 = vpack.c.b16 %v3700, %v3696
    %v3757 = vpack.c.b16 %v3701, %v3697
    %v3758 = vpack.c.b16 %v3702, %v3698
    %v3759 = vpack.c.b16 %v3707, %v3703
    %v3760 = vpack.c.b16 %v3708, %v3704
    %v3761 = vpack.c.b16 %v3709, %v3705
    %v3762 = vpack.c.b16 %v3710, %v3706
    %v3763 = vpack.c.b16 %v3715, %v3711
    %v3764 = vpack.c.b16 %v3716, %v3712
    %v3765 = vpack.c.b16 %v3717, %v3713
    %v3766 = vpack.c.b16 %v3718, %v3714
    %v3767 = vpack.c.b16 %v3723, %v3719
    %v3768 = vpack.c.b16 %v3724, %v3720
    %v3769 = vpack.c.b16 %v3725, %v3721
    %v3770 = vpack.c.b16 %v3726, %v3722
    %v3771 = vpack.c.b16 %v3731, %v3727
    %v3772 = vpack.c.b16 %v3732, %v3728
    %v3773 = vpack.c.b16 %v3733, %v3729
    %v3774 = vpack.c.b16 %v3734, %v3730
    %v3775 = vpack.c.b16 %v3739, %v3735
    %v3776 = vpack.c.b16 %v3740, %v3736
    %v3777 = vpack.c.b16 %v3741, %v3737
    %v3778 = vpack.c.b16 %v3742, %v3738
    %v3779 = vpack.c.b16 %v3747, %v3743
    %v3780 = vpack.c.b16 %v3748, %v3744
    %v3781 = vpack.c.b16 %v3749, %v3745
    %v3782 = vpack.c.b16 %v3750, %v3746
    %3815 = vmatprep.subr.bf16.mxu0 %v3752
    %3816 = vmatpush1.bf16.msra.mxu0 %v3751
    %3817 = vmatprep.subr.bf16.mxu0 %v3756
    %3818 = vmatpush1.bf16.msra.mxu0 %v3755
    %3819 = vmatprep.subr.bf16.mxu0 %v3760
    %3820 = vmatpush1.bf16.msra.mxu0 %v3759
    %3821 = vmatprep.subr.bf16.mxu0 %v3764
    %3822 = vmatpush1.bf16.msra.mxu0 %v3763
    %3823 = vmatprep.subr.bf16.mxu0 %v3768
    %3824 = vmatpush1.bf16.msra.mxu0 %v3767
    %3825 = vmatprep.subr.bf16.mxu0 %v3772
    %3826 = vmatpush1.bf16.msra.mxu0 %v3771
    %3827 = vmatprep.subr.bf16.mxu0 %v3776
    %3828 = vmatpush1.bf16.msra.mxu0 %v3775
    %3829 = vmatprep.subr.bf16.mxu0 %v3780
    %3830 = vmatpush1.bf16.msra.mxu0 %v3779
    %3831 = vmatprep.subr.bf16.mxu0 0
    %3832 = vmatpush1.bf16.msra.mxu0 0
    %3833 = vmatprep.subr.bf16.mxu0 0
    %3834 = vmatpush1.bf16.msra.mxu0 0
    %3835 = vmatprep.subr.bf16.mxu0 0
    %3836 = vmatpush1.bf16.msra.mxu0 0
    %3837 = vmatprep.subr.bf16.mxu0 0
    %3838 = vmatpush1.bf16.msra.mxu0 0
    %3839 = vmatprep.subr.bf16.mxu0 0
    %3840 = vmatpush1.bf16.msra.mxu0 0
    %3841 = vmatprep.subr.bf16.mxu0 0
    %3842 = vmatpush1.bf16.msra.mxu0 0
    %3843 = vmatprep.subr.bf16.mxu0 0
    %3844 = vmatpush1.bf16.msra.mxu0 0
    %3845 = vmatprep.subr.bf16.mxu0 0
    %3846 = vmatpush1.bf16.msra.mxu0 0
    %3847 = vmatprep.mubr.bf16.mxu0 0
    %3848 = vmatmul.mubr.bf16.gmra.mrb[0].mxu0 0
    %v3849 = vpop.f32.mrb[0].mxu0
    %v3850 = vadd.f32 0.0, %v3849
    %v3851 = vpop.f32.mrb[0].mxu0
    %v3852 = vadd.f32 0.0, %v3851
    %v3853 = vpop.f32.mrb[0].mxu0
    %v3854 = vpop.f32.mrb[0].mxu0
    %3855 = vdwg.mxu0
    %3856 = vmatprep.subr.bf16.mxu0 %v3754
    %3857 = vmatpush1.bf16.msra.mxu0 %v3753
    %3858 = vmatprep.subr.bf16.mxu0 %v3758
    %3859 = vmatpush1.bf16.msra.mxu0 %v3757
    %3860 = vmatprep.subr.bf16.mxu0 %v3762
    %3861 = vmatpush1.bf16.msra.mxu0 %v3761
    %3862 = vmatprep.subr.bf16.mxu0 %v3766
    %3863 = vmatpush1.bf16.msra.mxu0 %v3765
    %3864 = vmatprep.subr.bf16.mxu0 %v3770
    %3865 = vmatpush1.bf16.msra.mxu0 %v3769
    %3866 = vmatprep.subr.bf16.mxu0 %v3774
    %3867 = vmatpush1.bf16.msra.mxu0 %v3773
    %3868 = vmatprep.subr.bf16.mxu0 %v3778
    %3869 = vmatpush1.bf16.msra.mxu0 %v3777
    %3870 = vmatprep.subr.bf16.mxu0 %v3782
    %3871 = vmatpush1.bf16.msra.mxu0 %v3781
    %3872 = vmatprep.subr.bf16.mxu0 0
    %3873 = vmatpush1.bf16.msra.mxu0 0
    %3874 = vmatprep.subr.bf16.mxu0 0
    %3875 = vmatpush1.bf16.msra.mxu0 0
    %3876 = vmatprep.subr.bf16.mxu0 0
    %3877 = vmatpush1.bf16.msra.mxu0 0
    %3878 = vmatprep.subr.bf16.mxu0 0
    %3879 = vmatpush1.bf16.msra.mxu0 0
    %3880 = vmatprep.subr.bf16.mxu0 0
    %3881 = vmatpush1.bf16.msra.mxu0 0
    %3882 = vmatprep.subr.bf16.mxu0 0
    %3883 = vmatpush1.bf16.msra.mxu0 0
    %3884 = vmatprep.subr.bf16.mxu0 0
    %3885 = vmatpush1.bf16.msra.mxu0 0
    %3886 = vmatprep.subr.bf16.mxu0 0
    %3887 = vmatpush1.bf16.msra.mxu0 0
    %3888 = vmatprep.mubr.bf16.mxu0 0
    %3889 = vmatmul.mubr.bf16.gmra.mrb[0].mxu0 0
    %v3890 = vpop.f32.mrb[0].mxu0
    %v3891 = vadd.f32 0.0, %v3890
    %v3892 = vpop.f32.mrb[0].mxu0
    %v3893 = vadd.f32 0.0, %v3892
    %v3894 = vpop.f32.mrb[0].mxu0
    %v3895 = vpop.f32.mrb[0].mxu0
    %3896 = vdwg.mxu0
    %v3897 = vadd.f32 %v3619, %v3850
    %v3898 = vadd.f32 %v3620, %v3852
    %v3899 = vadd.f32 %v3621, %v3891
    %v3900 = vadd.f32 %v3622, %v3893
    %v3901 = vmul.f32 %v3897, 0.5
    %v3902 = vtanh.pop %v3901
    %v3903 = vadd.f32 %v3902, 1.0
    %v3904 = vmul.f32 %v3903, 0.5
    %v3905 = vmul.f32 %v3898, 0.5
    %v3906 = vtanh.pop %v3905
    %v3907 = vadd.f32 %v3906, 1.0
    %v3908 = vmul.f32 %v3907, 0.5
    %v3909 = vtanh.pop %v3899
    %v3910 = vmul.f32 %v3900, 0.5
    %v3911 = vtanh.pop %v3910
    %v3912 = vadd.f32 %v3911, 1.0
    %v3913 = vmul.f32 %v3912, 0.5
    %v3914 = vmul.f32 %v3908, 0.0
    %v3915 = vmul.f32 %v3904, %v3909
    %v3916 = vadd.f32 %v3914, %v3915
    %v3917 = vtanh.pop %v3916
    %v3918 = vmul.f32 %v3913, %v3917
    %v3919 = vld [vmem:[%s939] sm:$0xff]
    %v3920 = vld [vmem:[%s939 + $0x8] sm:$0xff]
    %v3921 = vunpack.c.l.bf16 %v3919
    %v3922 = vunpack.c.h.bf16 %v3919
    %v3923 = vunpack.c.l.bf16 %v3920
    %v3924 = vunpack.c.h.bf16 %v3920
    %v3925 = vpack.c.bf16 %v3918, %v3918
    %3926 = vmatprep.subr.bf16.mxu0 %v3752
    %3927 = vmatpush1.bf16.msra.mxu0 %v3751
    %3928 = vmatprep.subr.bf16.mxu0 %v3756
    %3929 = vmatpush1.bf16.msra.mxu0 %v3755
    %3930 = vmatprep.subr.bf16.mxu0 %v3760
    %3931 = vmatpush1.bf16.msra.mxu0 %v3759
    %3932 = vmatprep.subr.bf16.mxu0 %v3764
    %3933 = vmatpush1.bf16.msra.mxu0 %v3763
    %3934 = vmatprep.subr.bf16.mxu0 %v3768
    %3935 = vmatpush1.bf16.msra.mxu0 %v3767
    %3936 = vmatprep.subr.bf16.mxu0 %v3772
    %3937 = vmatpush1.bf16.msra.mxu0 %v3771
    %3938 = vmatprep.subr.bf16.mxu0 %v3776
    %3939 = vmatpush1.bf16.msra.mxu0 %v3775
    %3940 = vmatprep.subr.bf16.mxu0 %v3780
    %3941 = vmatpush1.bf16.msra.mxu0 %v3779
    %3942 = vmatprep.subr.bf16.mxu0 0
    %3943 = vmatpush1.bf16.msra.mxu0 0
    %3944 = vmatprep.subr.bf16.mxu0 0
    %3945 = vmatpush1.bf16.msra.mxu0 0
    %3946 = vmatprep.subr.bf16.mxu0 0
    %3947 = vmatpush1.bf16.msra.mxu0 0
    %3948 = vmatprep.subr.bf16.mxu0 0
    %3949 = vmatpush1.bf16.msra.mxu0 0
    %3950 = vmatprep.subr.bf16.mxu0 0
    %3951 = vmatpush1.bf16.msra.mxu0 0
    %3952 = vmatprep.subr.bf16.mxu0 0
    %3953 = vmatpush1.bf16.msra.mxu0 0
    %3954 = vmatprep.subr.bf16.mxu0 0
    %3955 = vmatpush1.bf16.msra.mxu0 0
    %3956 = vmatprep.subr.bf16.mxu0 0
    %3957 = vmatpush1.bf16.msra.mxu0 0
    %3958 = vmatprep.mubr.bf16.mxu0 0
    %3959 = vmatmul.mubr.bf16.gmra.mrb[0].mxu0 %v3925
    %v3960 = vpop.f32.mrb[0].mxu0
    %v3961 = vadd.f32 0.0, %v3960
    %v3962 = vpop.f32.mrb[0].mxu0
    %v3963 = vadd.f32 0.0, %v3962
    %v3964 = vpop.f32.mrb[0].mxu0
    %v3965 = vpop.f32.mrb[0].mxu0
    %3966 = vdwg.mxu0
    %3967 = vmatprep.subr.bf16.mxu0 %v3754
    %3968 = vmatpush1.bf16.msra.mxu0 %v3753
    %3969 = vmatprep.subr.bf16.mxu0 %v3758
    %3970 = vmatpush1.bf16.msra.mxu0 %v3757
    %3971 = vmatprep.subr.bf16.mxu0 %v3762
    %3972 = vmatpush1.bf16.msra.mxu0 %v3761
    %3973 = vmatprep.subr.bf16.mxu0 %v3766
    %3974 = vmatpush1.bf16.msra.mxu0 %v3765
    %3975 = vmatprep.subr.bf16.mxu0 %v3770
    %3976 = vmatpush1.bf16.msra.mxu0 %v3769
    %3977 = vmatprep.subr.bf16.mxu0 %v3774
    %3978 = vmatpush1.bf16.msra.mxu0 %v3773
    %3979 = vmatprep.subr.bf16.mxu0 %v3778
    %3980 = vmatpush1.bf16.msra.mxu0 %v3777
    %3981 = vmatprep.subr.bf16.mxu0 %v3782
    %3982 = vmatpush1.bf16.msra.mxu0 %v3781
    %3983 = vmatprep.subr.bf16.mxu0 0
    %3984 = vmatpush1.bf16.msra.mxu0 0
    %3985 = vmatprep.subr.bf16.mxu0 0
    %3986 = vmatpush1.bf16.msra.mxu0 0
    %3987 = vmatprep.subr.bf16.mxu0 0
    %3988 = vmatpush1.bf16.msra.mxu0 0
    %3989 = vmatprep.subr.bf16.mxu0 0
    %3990 = vmatpush1.bf16.msra.mxu0 0
    %3991 = vmatprep.subr.bf16.mxu0 0
    %3992 = vmatpush1.bf16.msra.mxu0 0
    %3993 = vmatprep.subr.bf16.mxu0 0
    %3994 = vmatpush1.bf16.msra.mxu0 0
    %3995 = vmatprep.subr.bf16.mxu0 0
    %3996 = vmatpush1.bf16.msra.mxu0 0
    %3997 = vmatprep.subr.bf16.mxu0 0
    %3998 = vmatpush1.bf16.msra.mxu0 0
    %3999 = vmatprep.mubr.bf16.mxu0 0
    %4000 = vmatmul.mubr.bf16.gmra.mrb[0].mxu0 %v3925
    %v4001 = vpop.f32.mrb[0].mxu0
    %v4002 = vadd.f32 0.0, %v4001
    %v4003 = vpop.f32.mrb[0].mxu0
    %v4004 = vadd.f32 0.0, %v4003
    %v4005 = vpop.f32.mrb[0].mxu0
    %v4006 = vpop.f32.mrb[0].mxu0
    %4007 = vdwg.mxu0
    %v4008 = vadd.f32 %v3921, %v3961
    %v4009 = vadd.f32 %v3922, %v3963
    %v4010 = vadd.f32 %v3923, %v4002
    %v4011 = vadd.f32 %v3924, %v4004
    %v4012 = vmul.f32 %v4008, 0.5
    %v4013 = vtanh.pop %v4012
    %v4014 = vadd.f32 %v4013, 1.0
    %v4015 = vmul.f32 %v4014, 0.5
    %v4016 = vmul.f32 %v4009, 0.5
    %v4017 = vtanh.pop %v4016
    %v4018 = vadd.f32 %v4017, 1.0
    %v4019 = vmul.f32 %v4018, 0.5
    %v4020 = vtanh.pop %v4010
    %v4021 = vmul.f32 %v4011, 0.5
    %v4022 = vtanh.pop %v4021
    %v4023 = vadd.f32 %v4022, 1.0
    %v4024 = vmul.f32 %v4023, 0.5
    %v4025 = vmul.f32 %v4019, %v3916
    %v4026 = vmul.f32 %v4015, %v4020
    %v4027 = vadd.f32 %v4025, %v4026
    %v4028 = vtanh.pop %v4027
    %v4029 = vmul.f32 %v4024, %v4028
    %v4030 = vld [vmem:[%s1245] sm:$0xff]
    %v4031 = vld [vmem:[%s1245 + $0x8] sm:$0xff]
    %v4032 = vunpack.c.l.bf16 %v4030
    %v4033 = vunpack.c.h.bf16 %v4030
    %v4034 = vunpack.c.l.bf16 %v4031
    %v4035 = vunpack.c.h.bf16 %v4031
    %v4036 = vpack.c.bf16 %v4029, %v4029
    %4037 = vmatprep.subr.bf16.mxu0 %v3752
    %4038 = vmatpush1.bf16.msra.mxu0 %v3751
    %4039 = vmatprep.subr.bf16.mxu0 %v3756
    %4040 = vmatpush1.bf16.msra.mxu0 %v3755
    %4041 = vmatprep.subr.bf16.mxu0 %v3760
    %4042 = vmatpush1.bf16.msra.mxu0 %v3759
    %4043 = vmatprep.subr.bf16.mxu0 %v3764
    %4044 = vmatpush1.bf16.msra.mxu0 %v3763
    %4045 = vmatprep.subr.bf16.mxu0 %v3768
    %4046 = vmatpush1.bf16.msra.mxu0 %v3767
    %4047 = vmatprep.subr.bf16.mxu0 %v3772
    %4048 = vmatpush1.bf16.msra.mxu0 %v3771
    %4049 = vmatprep.subr.bf16.mxu0 %v3776
    %4050 = vmatpush1.bf16.msra.mxu0 %v3775
    %4051 = vmatprep.subr.bf16.mxu0 %v3780
    %4052 = vmatpush1.bf16.msra.mxu0 %v3779
    %4053 = vmatprep.subr.bf16.mxu0 0
    %4054 = vmatpush1.bf16.msra.mxu0 0
    %4055 = vmatprep.subr.bf16.mxu0 0
    %4056 = vmatpush1.bf16.msra.mxu0 0
    %4057 = vmatprep.subr.bf16.mxu0 0
    %4058 = vmatpush1.bf16.msra.mxu0 0
    %4059 = vmatprep.subr.bf16.mxu0 0
    %4060 = vmatpush1.bf16.msra.mxu0 0
    %4061 = vmatprep.subr.bf16.mxu0 0
    %4062 = vmatpush1.bf16.msra.mxu0 0
    %4063 = vmatprep.subr.bf16.mxu0 0
    %4064 = vmatpush1.bf16.msra.mxu0 0
    %4065 = vmatprep.subr.bf16.mxu0 0
    %4066 = vmatpush1.bf16.msra.mxu0 0
    %4067 = vmatprep.subr.bf16.mxu0 0
    %4068 = vmatpush1.bf16.msra.mxu0 0
    %4069 = vmatprep.mubr.bf16.mxu0 0
    %4070 = vmatmul.mubr.bf16.gmra.mrb[0].mxu0 %v4036
    %v4071 = vpop.f32.mrb[0].mxu0
    %v4072 = vadd.f32 0.0, %v4071
    %v4073 = vpop.f32.mrb[0].mxu0
    %v4074 = vadd.f32 0.0, %v4073
    %v4075 = vpop.f32.mrb[0].mxu0
    %v4076 = vpop.f32.mrb[0].mxu0
    %4077 = vdwg.mxu0
    %4078 = vmatprep.subr.bf16.mxu0 %v3754
    %4079 = vmatpush1.bf16.msra.mxu0 %v3753
    %4080 = vmatprep.subr.bf16.mxu0 %v3758
    %4081 = vmatpush1.bf16.msra.mxu0 %v3757
    %4082 = vmatprep.subr.bf16.mxu0 %v3762
    %4083 = vmatpush1.bf16.msra.mxu0 %v3761
    %4084 = vmatprep.subr.bf16.mxu0 %v3766
    %4085 = vmatpush1.bf16.msra.mxu0 %v3765
    %4086 = vmatprep.subr.bf16.mxu0 %v3770
    %4087 = vmatpush1.bf16.msra.mxu0 %v3769
    %4088 = vmatprep.subr.bf16.mxu0 %v3774
    %4089 = vmatpush1.bf16.msra.mxu0 %v3773
    %4090 = vmatprep.subr.bf16.mxu0 %v3778
    %4091 = vmatpush1.bf16.msra.mxu0 %v3777
    %4092 = vmatprep.subr.bf16.mxu0 %v3782
    %4093 = vmatpush1.bf16.msra.mxu0 %v3781
    %4094 = vmatprep.subr.bf16.mxu0 0
    %4095 = vmatpush1.bf16.msra.mxu0 0
    %4096 = vmatprep.subr.bf16.mxu0 0
    %4097 = vmatpush1.bf16.msra.mxu0 0
    %4098 = vmatprep.subr.bf16.mxu0 0
    %4099 = vmatpush1.bf16.msra.mxu0 0
    %4100 = vmatprep.subr.bf16.mxu0 0
    %4101 = vmatpush1.bf16.msra.mxu0 0
    %4102 = vmatprep.subr.bf16.mxu0 0
    %4103 = vmatpush1.bf16.msra.mxu0 0
    %4104 = vmatprep.subr.bf16.mxu0 0
    %4105 = vmatpush1.bf16.msra.mxu0 0
    %4106 = vmatprep.subr.bf16.mxu0 0
    %4107 = vmatpush1.bf16.msra.mxu0 0
    %4108 = vmatprep.subr.bf16.mxu0 0
    %4109 = vmatpush1.bf16.msra.mxu0 0
    %4110 = vmatprep.mubr.bf16.mxu0 0
    %4111 = vmatmul.mubr.bf16.gmra.mrb[0].mxu0 %v4036
    %v4112 = vpop.f32.mrb[0].mxu0
    %v4113 = vadd.f32 0.0, %v4112
    %v4114 = vpop.f32.mrb[0].mxu0
    %v4115 = vadd.f32 0.0, %v4114
    %v4116 = vpop.f32.mrb[0].mxu0
    %v4117 = vpop.f32.mrb[0].mxu0
    %4118 = vdwg.mxu0
    %v4119 = vadd.f32 %v4032, %v4072
    %v4120 = vadd.f32 %v4033, %v4074
    %v4121 = vadd.f32 %v4034, %v4113
    %v4122 = vadd.f32 %v4035, %v4115
    %v4123 = vmul.f32 %v4119, 0.5
    %v4124 = vtanh.pop %v4123
    %v4125 = vadd.f32 %v4124, 1.0
    %v4126 = vmul.f32 %v4125, 0.5
    %v4127 = vmul.f32 %v4120, 0.5
    %v4128 = vtanh.pop %v4127
    %v4129 = vadd.f32 %v4128, 1.0
    %v4130 = vmul.f32 %v4129, 0.5
    %v4131 = vtanh.pop %v4121
    %v4132 = vmul.f32 %v4122, 0.5
    %v4133 = vtanh.pop %v4132
    %v4134 = vadd.f32 %v4133, 1.0
    %v4135 = vmul.f32 %v4134, 0.5
    %v4136 = vmul.f32 %v4130, %v4027
    %v4137 = vmul.f32 %v4126, %v4131
    %v4138 = vadd.f32 %v4136, %v4137
    %v4139 = vtanh.pop %v4138
    %v4140 = vmul.f32 %v4135, %v4139
    %v4141 = vld [vmem:[%s1551] sm:$0xff]
    %v4142 = vld [vmem:[%s1551 + $0x8] sm:$0xff]
    %v4143 = vunpack.c.l.bf16 %v4141
    %v4144 = vunpack.c.h.bf16 %v4141
    %v4145 = vunpack.c.l.bf16 %v4142
    %v4146 = vunpack.c.h.bf16 %v4142
    %v4147 = vpack.c.bf16 %v4140, %v4140
    %4148 = vmatprep.subr.bf16.mxu0 %v3752
    %4149 = vmatpush1.bf16.msra.mxu0 %v3751
    %4150 = vmatprep.subr.bf16.mxu0 %v3756
    %4151 = vmatpush1.bf16.msra.mxu0 %v3755
    %4152 = vmatprep.subr.bf16.mxu0 %v3760
    %4153 = vmatpush1.bf16.msra.mxu0 %v3759
    %4154 = vmatprep.subr.bf16.mxu0 %v3764
    %4155 = vmatpush1.bf16.msra.mxu0 %v3763
    %4156 = vmatprep.subr.bf16.mxu0 %v3768
    %4157 = vmatpush1.bf16.msra.mxu0 %v3767
    %4158 = vmatprep.subr.bf16.mxu0 %v3772
    %4159 = vmatpush1.bf16.msra.mxu0 %v3771
    %4160 = vmatprep.subr.bf16.mxu0 %v3776
    %4161 = vmatpush1.bf16.msra.mxu0 %v3775
    %4162 = vmatprep.subr.bf16.mxu0 %v3780
    %4163 = vmatpush1.bf16.msra.mxu0 %v3779
    %4164 = vmatprep.subr.bf16.mxu0 0
    %4165 = vmatpush1.bf16.msra.mxu0 0
    %4166 = vmatprep.subr.bf16.mxu0 0
    %4167 = vmatpush1.bf16.msra.mxu0 0
    %4168 = vmatprep.subr.bf16.mxu0 0
    %4169 = vmatpush1.bf16.msra.mxu0 0
    %4170 = vmatprep.subr.bf16.mxu0 0
    %4171 = vmatpush1.bf16.msra.mxu0 0
    %4172 = vmatprep.subr.bf16.mxu0 0
    %4173 = vmatpush1.bf16.msra.mxu0 0
    %4174 = vmatprep.subr.bf16.mxu0 0
    %4175 = vmatpush1.bf16.msra.mxu0 0
    %4176 = vmatprep.subr.bf16.mxu0 0
    %4177 = vmatpush1.bf16.msra.mxu0 0
    %4178 = vmatprep.subr.bf16.mxu0 0
    %4179 = vmatpush1.bf16.msra.mxu0 0
    %4180 = vmatprep.mubr.bf16.mxu0 0
    %4181 = vmatmul.mubr.bf16.gmra.mrb[0].mxu0 %v4147
    %v4182 = vpop.f32.mrb[0].mxu0
    %v4183 = vadd.f32 0.0, %v4182
    %v4184 = vpop.f32.mrb[0].mxu0
    %v4185 = vadd.f32 0.0, %v4184
    %v4186 = vpop.f32.mrb[0].mxu0
    %v4187 = vpop.f32.mrb[0].mxu0
    %4188 = vdwg.mxu0
    %4189 = vmatprep.subr.bf16.mxu0 %v3754
    %4190 = vmatpush1.bf16.msra.mxu0 %v3753
    %4191 = vmatprep.subr.bf16.mxu0 %v3758
    %4192 = vmatpush1.bf16.msra.mxu0 %v3757
    %4193 = vmatprep.subr.bf16.mxu0 %v3762
    %4194 = vmatpush1.bf16.msra.mxu0 %v3761
    %4195 = vmatprep.subr.bf16.mxu0 %v3766
    %4196 = vmatpush1.bf16.msra.mxu0 %v3765
    %4197 = vmatprep.subr.bf16.mxu0 %v3770
    %4198 = vmatpush1.bf16.msra.mxu0 %v3769
    %4199 = vmatprep.subr.bf16.mxu0 %v3774
    %4200 = vmatpush1.bf16.msra.mxu0 %v3773
    %4201 = vmatprep.subr.bf16.mxu0 %v3778
    %4202 = vmatpush1.bf16.msra.mxu0 %v3777
    %4203 = vmatprep.subr.bf16.mxu0 %v3782
    %4204 = vmatpush1.bf16.msra.mxu0 %v3781
    %4205 = vmatprep.subr.bf16.mxu0 0
    %4206 = vmatpush1.bf16.msra.mxu0 0
    %4207 = vmatprep.subr.bf16.mxu0 0
    %4208 = vmatpush1.bf16.msra.mxu0 0
    %4209 = vmatprep.subr.bf16.mxu0 0
    %4210 = vmatpush1.bf16.msra.mxu0 0
    %4211 = vmatprep.subr.bf16.mxu0 0
    %4212 = vmatpush1.bf16.msra.mxu0 0
    %4213 = vmatprep.subr.bf16.mxu0 0
    %4214 = vmatpush1.bf16.msra.mxu0 0
    %4215 = vmatprep.subr.bf16.mxu0 0
    %4216 = vmatpush1.bf16.msra.mxu0 0
    %4217 = vmatprep.subr.bf16.mxu0 0
    %4218 = vmatpush1.bf16.msra.mxu0 0
    %4219 = vmatprep.subr.bf16.mxu0 0
    %4220 = vmatpush1.bf16.msra.mxu0 0
    %4221 = vmatprep.mubr.bf16.mxu0 0
    %4222 = vmatmul.mubr.bf16.gmra.mrb[0].mxu0 %v4147
    %v4223 = vpop.f32.mrb[0].mxu0
    %v4224 = vadd.f32 0.0, %v4223
    %v4225 = vpop.f32.mrb[0].mxu0
    %v4226 = vadd.f32 0.0, %v4225
    %v4227 = vpop.f32.mrb[0].mxu0
    %v4228 = vpop.f32.mrb[0].mxu0
    %4229 = vdwg.mxu0
    %v4230 = vadd.f32 %v4143, %v4183
    %v4231 = vadd.f32 %v4144, %v4185
    %v4232 = vadd.f32 %v4145, %v4224
    %v4233 = vadd.f32 %v4146, %v4226
    %v4234 = vmul.f32 %v4230, 0.5
    %v4235 = vtanh.pop %v4234
    %v4236 = vadd.f32 %v4235, 1.0
    %v4237 = vmul.f32 %v4236, 0.5
    %v4238 = vmul.f32 %v4231, 0.5
    %v4239 = vtanh.pop %v4238
    %v4240 = vadd.f32 %v4239, 1.0
    %v4241 = vmul.f32 %v4240, 0.5
    %v4242 = vtanh.pop %v4232
    %v4243 = vmul.f32 %v4233, 0.5
    %v4244 = vtanh.pop %v4243
    %v4245 = vadd.f32 %v4244, 1.0
    %v4246 = vmul.f32 %v4245, 0.5
    %v4247 = vmul.f32 %v4241, %v4138
    %v4248 = vmul.f32 %v4237, %v4242
    %v4249 = vadd.f32 %v4247, %v4248
    %v4250 = vtanh.pop %v4249
    %v4251 = vmul.f32 %v4246, %v4250
    %v4252 = vld [vmem:[%s1857] sm:$0xff]
    %v4253 = vld [vmem:[%s1857 + $0x8] sm:$0xff]
    %v4254 = vunpack.c.l.bf16 %v4252
    %v4255 = vunpack.c.h.bf16 %v4252
    %v4256 = vunpack.c.l.bf16 %v4253
    %v4257 = vunpack.c.h.bf16 %v4253
    %v4258 = vpack.c.bf16 %v4251, %v4251
    %4259 = vmatprep.subr.bf16.mxu0 %v3752
    %4260 = vmatpush1.bf16.msra.mxu0 %v3751
    %4261 = vmatprep.subr.bf16.mxu0 %v3756
    %4262 = vmatpush1.bf16.msra.mxu0 %v3755
    %4263 = vmatprep.subr.bf16.mxu0 %v3760
    %4264 = vmatpush1.bf16.msra.mxu0 %v3759
    %4265 = vmatprep.subr.bf16.mxu0 %v3764
    %4266 = vmatpush1.bf16.msra.mxu0 %v3763
    %4267 = vmatprep.subr.bf16.mxu0 %v3768
    %4268 = vmatpush1.bf16.msra.mxu0 %v3767
    %4269 = vmatprep.subr.bf16.mxu0 %v3772
    %4270 = vmatpush1.bf16.msra.mxu0 %v3771
    %4271 = vmatprep.subr.bf16.mxu0 %v3776
    %4272 = vmatpush1.bf16.msra.mxu0 %v3775
    %4273 = vmatprep.subr.bf16.mxu0 %v3780
    %4274 = vmatpush1.bf16.msra.mxu0 %v3779
    %4275 = vmatprep.subr.bf16.mxu0 0
    %4276 = vmatpush1.bf16.msra.mxu0 0
    %4277 = vmatprep.subr.bf16.mxu0 0
    %4278 = vmatpush1.bf16.msra.mxu0 0
    %4279 = vmatprep.subr.bf16.mxu0 0
    %4280 = vmatpush1.bf16.msra.mxu0 0
    %4281 = vmatprep.subr.bf16.mxu0 0
    %4282 = vmatpush1.bf16.msra.mxu0 0
    %4283 = vmatprep.subr.bf16.mxu0 0
    %4284 = vmatpush1.bf16.msra.mxu0 0
    %4285 = vmatprep.subr.bf16.mxu0 0
    %4286 = vmatpush1.bf16.msra.mxu0 0
    %4287 = vmatprep.subr.bf16.mxu0 0
    %4288 = vmatpush1.bf16.msra.mxu0 0
    %4289 = vmatprep.subr.bf16.mxu0 0
    %4290 = vmatpush1.bf16.msra.mxu0 0
    %4291 = vmatprep.mubr.bf16.mxu0 0
    %4292 = vmatmul.mubr.bf16.gmra.mrb[0].mxu0 %v4258
    %v4293 = vpop.f32.mrb[0].mxu0
    %v4294 = vadd.f32 0.0, %v4293
    %v4295 = vpop.f32.mrb[0].mxu0
    %v4296 = vadd.f32 0.0, %v4295
    %v4297 = vpop.f32.mrb[0].mxu0
    %v4298 = vpop.f32.mrb[0].mxu0
    %4299 = vdwg.mxu0
    %4300 = vmatprep.subr.bf16.mxu0 %v3754
    %4301 = vmatpush1.bf16.msra.mxu0 %v3753
    %4302 = vmatprep.subr.bf16.mxu0 %v3758
    %4303 = vmatpush1.bf16.msra.mxu0 %v3757
    %4304 = vmatprep.subr.bf16.mxu0 %v3762
    %4305 = vmatpush1.bf16.msra.mxu0 %v3761
    %4306 = vmatprep.subr.bf16.mxu0 %v3766
    %4307 = vmatpush1.bf16.msra.mxu0 %v3765
    %4308 = vmatprep.subr.bf16.mxu0 %v3770
    %4309 = vmatpush1.bf16.msra.mxu0 %v3769
    %4310 = vmatprep.subr.bf16.mxu0 %v3774
    %4311 = vmatpush1.bf16.msra.mxu0 %v3773
    %4312 = vmatprep.subr.bf16.mxu0 %v3778
    %4313 = vmatpush1.bf16.msra.mxu0 %v3777
    %4314 = vmatprep.subr.bf16.mxu0 %v3782
    %4315 = vmatpush1.bf16.msra.mxu0 %v3781
    %4316 = vmatprep.subr.bf16.mxu0 0
    %4317 = vmatpush1.bf16.msra.mxu0 0
    %4318 = vmatprep.subr.bf16.mxu0 0
    %4319 = vmatpush1.bf16.msra.mxu0 0
    %4320 = vmatprep.subr.bf16.mxu0 0
    %4321 = vmatpush1.bf16.msra.mxu0 0
    %4322 = vmatprep.subr.bf16.mxu0 0
    %4323 = vmatpush1.bf16.msra.mxu0 0
    %4324 = vmatprep.subr.bf16.mxu0 0
    %4325 = vmatpush1.bf16.msra.mxu0 0
    %4326 = vmatprep.subr.bf16.mxu0 0
    %4327 = vmatpush1.bf16.msra.mxu0 0
    %4328 = vmatprep.subr.bf16.mxu0 0
    %4329 = vmatpush1.bf16.msra.mxu0 0
    %4330 = vmatprep.subr.bf16.mxu0 0
    %4331 = vmatpush1.bf16.msra.mxu0 0
    %4332 = vmatprep.mubr.bf16.mxu0 0
    %4333 = vmatmul.mubr.bf16.gmra.mrb[0].mxu0 %v4258
    %v4334 = vpop.f32.mrb[0].mxu0
    %v4335 = vadd.f32 0.0, %v4334
    %v4336 = vpop.f32.mrb[0].mxu0
    %v4337 = vadd.f32 0.0, %v4336
    %v4338 = vpop.f32.mrb[0].mxu0
    %v4339 = vpop.f32.mrb[0].mxu0
    %4340 = vdwg.mxu0
    %v4341 = vadd.f32 %v4254, %v4294
    %v4342 = vadd.f32 %v4255, %v4296
    %v4343 = vadd.f32 %v4256, %v4335
    %v4344 = vadd.f32 %v4257, %v4337
    %v4345 = vmul.f32 %v4341, 0.5
    %v4346 = vtanh.pop %v4345
    %v4347 = vadd.f32 %v4346, 1.0
    %v4348 = vmul.f32 %v4347, 0.5
    %v4349 = vmul.f32 %v4342, 0.5
    %v4350 = vtanh.pop %v4349
    %v4351 = vadd.f32 %v4350, 1.0
    %v4352 = vmul.f32 %v4351, 0.5
    %v4353 = vtanh.pop %v4343
    %v4354 = vmul.f32 %v4344, 0.5
    %v4355 = vtanh.pop %v4354
    %v4356 = vadd.f32 %v4355, 1.0
    %v4357 = vmul.f32 %v4356, 0.5
    %v4358 = vmul.f32 %v4352, %v4249
    %v4359 = vmul.f32 %v4348, %v4353
    %v4360 = vadd.f32 %v4358, %v4359
    %v4361 = vtanh.pop %v4360
    %v4362 = vmul.f32 %v4357, %v4361
    %v4363 = vld [vmem:[%s2163] sm:$0xff]
    %v4364 = vld [vmem:[%s2163 + $0x8] sm:$0xff]
    %v4365 = vunpack.c.l.bf16 %v4363
    %v4366 = vunpack.c.h.bf16 %v4363
    %v4367 = vunpack.c.l.bf16 %v4364
    %v4368 = vunpack.c.h.bf16 %v4364
    %v4369 = vpack.c.bf16 %v4362, %v4362
    %4370 = vmatprep.subr.bf16.mxu0 %v3752
    %4371 = vmatpush1.bf16.msra.mxu0 %v3751
    %4372 = vmatprep.subr.bf16.mxu0 %v3756
    %4373 = vmatpush1.bf16.msra.mxu0 %v3755
    %4374 = vmatprep.subr.bf16.mxu0 %v3760
    %4375 = vmatpush1.bf16.msra.mxu0 %v3759
    %4376 = vmatprep.subr.bf16.mxu0 %v3764
    %4377 = vmatpush1.bf16.msra.mxu0 %v3763
    %4378 = vmatprep.subr.bf16.mxu0 %v3768
    %4379 = vmatpush1.bf16.msra.mxu0 %v3767
    %4380 = vmatprep.subr.bf16.mxu0 %v3772
    %4381 = vmatpush1.bf16.msra.mxu0 %v3771
    %4382 = vmatprep.subr.bf16.mxu0 %v3776
    %4383 = vmatpush1.bf16.msra.mxu0 %v3775
    %4384 = vmatprep.subr.bf16.mxu0 %v3780
    %4385 = vmatpush1.bf16.msra.mxu0 %v3779
    %4386 = vmatprep.subr.bf16.mxu0 0
    %4387 = vmatpush1.bf16.msra.mxu0 0
    %4388 = vmatprep.subr.bf16.mxu0 0
    %4389 = vmatpush1.bf16.msra.mxu0 0
    %4390 = vmatprep.subr.bf16.mxu0 0
    %4391 = vmatpush1.bf16.msra.mxu0 0
    %4392 = vmatprep.subr.bf16.mxu0 0
    %4393 = vmatpush1.bf16.msra.mxu0 0
    %4394 = vmatprep.subr.bf16.mxu0 0
    %4395 = vmatpush1.bf16.msra.mxu0 0
    %4396 = vmatprep.subr.bf16.mxu0 0
    %4397 = vmatpush1.bf16.msra.mxu0 0
    %4398 = vmatprep.subr.bf16.mxu0 0
    %4399 = vmatpush1.bf16.msra.mxu0 0
    %4400 = vmatprep.subr.bf16.mxu0 0
    %4401 = vmatpush1.bf16.msra.mxu0 0
    %4402 = vmatprep.mubr.bf16.mxu0 0
    %4403 = vmatmul.mubr.bf16.gmra.mrb[0].mxu0 %v4369
    %v4404 = vpop.f32.mrb[0].mxu0
    %v4405 = vadd.f32 0.0, %v4404
    %v4406 = vpop.f32.mrb[0].mxu0
    %v4407 = vadd.f32 0.0, %v4406
    %v4408 = vpop.f32.mrb[0].mxu0
    %v4409 = vpop.f32.mrb[0].mxu0
    %4410 = vdwg.mxu0
    %4411 = vmatprep.subr.bf16.mxu0 %v3754
    %4412 = vmatpush1.bf16.msra.mxu0 %v3753
    %4413 = vmatprep.subr.bf16.mxu0 %v3758
    %4414 = vmatpush1.bf16.msra.mxu0 %v3757
    %4415 = vmatprep.subr.bf16.mxu0 %v3762
    %4416 = vmatpush1.bf16.msra.mxu0 %v3761
    %4417 = vmatprep.subr.bf16.mxu0 %v3766
    %4418 = vmatpush1.bf16.msra.mxu0 %v3765
    %4419 = vmatprep.subr.bf16.mxu0 %v3770
    %4420 = vmatpush1.bf16.msra.mxu0 %v3769
    %4421 = vmatprep.subr.bf16.mxu0 %v3774
    %4422 = vmatpush1.bf16.msra.mxu0 %v3773
    %4423 = vmatprep.subr.bf16.mxu0 %v3778
    %4424 = vmatpush1.bf16.msra.mxu0 %v3777
    %4425 = vmatprep.subr.bf16.mxu0 %v3782
    %4426 = vmatpush1.bf16.msra.mxu0 %v3781
    %4427 = vmatprep.subr.bf16.mxu0 0
    %4428 = vmatpush1.bf16.msra.mxu0 0
    %4429 = vmatprep.subr.bf16.mxu0 0
    %4430 = vmatpush1.bf16.msra.mxu0 0
    %4431 = vmatprep.subr.bf16.mxu0 0
    %4432 = vmatpush1.bf16.msra.mxu0 0
    %4433 = vmatprep.subr.bf16.mxu0 0
    %4434 = vmatpush1.bf16.msra.mxu0 0
    %4435 = vmatprep.subr.bf16.mxu0 0
    %4436 = vmatpush1.bf16.msra.mxu0 0
    %4437 = vmatprep.subr.bf16.mxu0 0
    %4438 = vmatpush1.bf16.msra.mxu0 0
    %4439 = vmatprep.subr.bf16.mxu0 0
    %4440 = vmatpush1.bf16.msra.mxu0 0
    %4441 = vmatprep.subr.bf16.mxu0 0
    %4442 = vmatpush1.bf16.msra.mxu0 0
    %4443 = vmatprep.mubr.bf16.mxu0 0
    %4444 = vmatmul.mubr.bf16.gmra.mrb[0].mxu0 %v4369
    %v4445 = vpop.f32.mrb[0].mxu0
    %v4446 = vadd.f32 0.0, %v4445
    %v4447 = vpop.f32.mrb[0].mxu0
    %v4448 = vadd.f32 0.0, %v4447
    %v4449 = vpop.f32.mrb[0].mxu0
    %v4450 = vpop.f32.mrb[0].mxu0
    %4451 = vdwg.mxu0
    %v4452 = vadd.f32 %v4365, %v4405
    %v4453 = vadd.f32 %v4366, %v4407
    %v4454 = vadd.f32 %v4367, %v4446
    %v4455 = vadd.f32 %v4368, %v4448
    %v4456 = vmul.f32 %v4452, 0.5
    %v4457 = vtanh.pop %v4456
    %v4458 = vadd.f32 %v4457, 1.0
    %v4459 = vmul.f32 %v4458, 0.5
    %v4460 = vmul.f32 %v4453, 0.5
    %v4461 = vtanh.pop %v4460
    %v4462 = vadd.f32 %v4461, 1.0
    %v4463 = vmul.f32 %v4462, 0.5
    %v4464 = vtanh.pop %v4454
    %v4465 = vmul.f32 %v4455, 0.5
    %v4466 = vtanh.pop %v4465
    %v4467 = vadd.f32 %v4466, 1.0
    %v4468 = vmul.f32 %v4467, 0.5
    %v4469 = vmul.f32 %v4463, %v4360
    %v4470 = vmul.f32 %v4459, %v4464
    %v4471 = vadd.f32 %v4469, %v4470
    %v4472 = vtanh.pop %v4471
    %v4473 = vmul.f32 %v4468, %v4472
    %v4474 = vld [vmem:[%s2469] sm:$0xff]
    %v4475 = vld [vmem:[%s2469 + $0x8] sm:$0xff]
    %v4476 = vunpack.c.l.bf16 %v4474
    %v4477 = vunpack.c.h.bf16 %v4474
    %v4478 = vunpack.c.l.bf16 %v4475
    %v4479 = vunpack.c.h.bf16 %v4475
    %v4480 = vpack.c.bf16 %v4473, %v4473
    %4481 = vmatprep.subr.bf16.mxu0 %v3752
    %4482 = vmatpush1.bf16.msra.mxu0 %v3751
    %4483 = vmatprep.subr.bf16.mxu0 %v3756
    %4484 = vmatpush1.bf16.msra.mxu0 %v3755
    %4485 = vmatprep.subr.bf16.mxu0 %v3760
    %4486 = vmatpush1.bf16.msra.mxu0 %v3759
    %4487 = vmatprep.subr.bf16.mxu0 %v3764
    %4488 = vmatpush1.bf16.msra.mxu0 %v3763
    %4489 = vmatprep.subr.bf16.mxu0 %v3768
    %4490 = vmatpush1.bf16.msra.mxu0 %v3767
    %4491 = vmatprep.subr.bf16.mxu0 %v3772
    %4492 = vmatpush1.bf16.msra.mxu0 %v3771
    %4493 = vmatprep.subr.bf16.mxu0 %v3776
    %4494 = vmatpush1.bf16.msra.mxu0 %v3775
    %4495 = vmatprep.subr.bf16.mxu0 %v3780
    %4496 = vmatpush1.bf16.msra.mxu0 %v3779
    %4497 = vmatprep.subr.bf16.mxu0 0
    %4498 = vmatpush1.bf16.msra.mxu0 0
    %4499 = vmatprep.subr.bf16.mxu0 0
    %4500 = vmatpush1.bf16.msra.mxu0 0
    %4501 = vmatprep.subr.bf16.mxu0 0
    %4502 = vmatpush1.bf16.msra.mxu0 0
    %4503 = vmatprep.subr.bf16.mxu0 0
    %4504 = vmatpush1.bf16.msra.mxu0 0
    %4505 = vmatprep.subr.bf16.mxu0 0
    %4506 = vmatpush1.bf16.msra.mxu0 0
    %4507 = vmatprep.subr.bf16.mxu0 0
    %4508 = vmatpush1.bf16.msra.mxu0 0
    %4509 = vmatprep.subr.bf16.mxu0 0
    %4510 = vmatpush1.bf16.msra.mxu0 0
    %4511 = vmatprep.subr.bf16.mxu0 0
    %4512 = vmatpush1.bf16.msra.mxu0 0
    %4513 = vmatprep.mubr.bf16.mxu0 0
    %4514 = vmatmul.mubr.bf16.gmra.mrb[0].mxu0 %v4480
    %v4515 = vpop.f32.mrb[0].mxu0
    %v4516 = vadd.f32 0.0, %v4515
    %v4517 = vpop.f32.mrb[0].mxu0
    %v4518 = vadd.f32 0.0, %v4517
    %v4519 = vpop.f32.mrb[0].mxu0
    %v4520 = vpop.f32.mrb[0].mxu0
    %4521 = vdwg.mxu0
    %4522 = vmatprep.subr.bf16.mxu0 %v3754
    %4523 = vmatpush1.bf16.msra.mxu0 %v3753
    %4524 = vmatprep.subr.bf16.mxu0 %v3758
    %4525 = vmatpush1.bf16.msra.mxu0 %v3757
    %4526 = vmatprep.subr.bf16.mxu0 %v3762
    %4527 = vmatpush1.bf16.msra.mxu0 %v3761
    %4528 = vmatprep.subr.bf16.mxu0 %v3766
    %4529 = vmatpush1.bf16.msra.mxu0 %v3765
    %4530 = vmatprep.subr.bf16.mxu0 %v3770
    %4531 = vmatpush1.bf16.msra.mxu0 %v3769
    %4532 = vmatprep.subr.bf16.mxu0 %v3774
    %4533 = vmatpush1.bf16.msra.mxu0 %v3773
    %4534 = vmatprep.subr.bf16.mxu0 %v3778
    %4535 = vmatpush1.bf16.msra.mxu0 %v3777
    %4536 = vmatprep.subr.bf16.mxu0 %v3782
    %4537 = vmatpush1.bf16.msra.mxu0 %v3781
    %4538 = vmatprep.subr.bf16.mxu0 0
    %4539 = vmatpush1.bf16.msra.mxu0 0
    %4540 = vmatprep.subr.bf16.mxu0 0
    %4541 = vmatpush1.bf16.msra.mxu0 0
    %4542 = vmatprep.subr.bf16.mxu0 0
    %4543 = vmatpush1.bf16.msra.mxu0 0
    %4544 = vmatprep.subr.bf16.mxu0 0
    %4545 = vmatpush1.bf16.msra.mxu0 0
    %4546 = vmatprep.subr.bf16.mxu0 0
    %4547 = vmatpush1.bf16.msra.mxu0 0
    %4548 = vmatprep.subr.bf16.mxu0 0
    %4549 = vmatpush1.bf16.msra.mxu0 0
    %4550 = vmatprep.subr.bf16.mxu0 0
    %4551 = vmatpush1.bf16.msra.mxu0 0
    %4552 = vmatprep.subr.bf16.mxu0 0
    %4553 = vmatpush1.bf16.msra.mxu0 0
    %4554 = vmatprep.mubr.bf16.mxu0 0
    %4555 = vmatmul.mubr.bf16.gmra.mrb[0].mxu0 %v4480
    %v4556 = vpop.f32.mrb[0].mxu0
    %v4557 = vadd.f32 0.0, %v4556
    %v4558 = vpop.f32.mrb[0].mxu0
    %v4559 = vadd.f32 0.0, %v4558
    %v4560 = vpop.f32.mrb[0].mxu0
    %v4561 = vpop.f32.mrb[0].mxu0
    %4562 = vdwg.mxu0
    %v4563 = vadd.f32 %v4476, %v4516
    %v4564 = vadd.f32 %v4477, %v4518
    %v4565 = vadd.f32 %v4478, %v4557
    %v4566 = vadd.f32 %v4479, %v4559
    %v4567 = vmul.f32 %v4563, 0.5
    %v4568 = vtanh.pop %v4567
    %v4569 = vadd.f32 %v4568, 1.0
    %v4570 = vmul.f32 %v4569, 0.5
    %v4571 = vmul.f32 %v4564, 0.5
    %v4572 = vtanh.pop %v4571
    %v4573 = vadd.f32 %v4572, 1.0
    %v4574 = vmul.f32 %v4573, 0.5
    %v4575 = vtanh.pop %v4565
    %v4576 = vmul.f32 %v4566, 0.5
    %v4577 = vtanh.pop %v4576
    %v4578 = vadd.f32 %v4577, 1.0
    %v4579 = vmul.f32 %v4578, 0.5
    %v4580 = vmul.f32 %v4574, %v4471
    %v4581 = vmul.f32 %v4570, %v4575
    %v4582 = vadd.f32 %v4580, %v4581
    %v4583 = vtanh.pop %v4582
    %v4584 = vmul.f32 %v4579, %v4583
    %v4585 = vld [vmem:[%s2775] sm:$0xff]
    %v4586 = vld [vmem:[%s2775 + $0x8] sm:$0xff]
    %v4587 = vunpack.c.l.bf16 %v4585
    %v4588 = vunpack.c.h.bf16 %v4585
    %v4589 = vunpack.c.l.bf16 %v4586
    %v4590 = vunpack.c.h.bf16 %v4586
    %v4591 = vpack.c.bf16 %v4584, %v4584
    %4592 = vmatprep.subr.bf16.mxu0 %v3752
    %4593 = vmatpush1.bf16.msra.mxu0 %v3751
    %4594 = vmatprep.subr.bf16.mxu0 %v3756
    %4595 = vmatpush1.bf16.msra.mxu0 %v3755
    %4596 = vmatprep.subr.bf16.mxu0 %v3760
    %4597 = vmatpush1.bf16.msra.mxu0 %v3759
    %4598 = vmatprep.subr.bf16.mxu0 %v3764
    %4599 = vmatpush1.bf16.msra.mxu0 %v3763
    %4600 = vmatprep.subr.bf16.mxu0 %v3768
    %4601 = vmatpush1.bf16.msra.mxu0 %v3767
    %4602 = vmatprep.subr.bf16.mxu0 %v3772
    %4603 = vmatpush1.bf16.msra.mxu0 %v3771
    %4604 = vmatprep.subr.bf16.mxu0 %v3776
    %4605 = vmatpush1.bf16.msra.mxu0 %v3775
    %4606 = vmatprep.subr.bf16.mxu0 %v3780
    %4607 = vmatpush1.bf16.msra.mxu0 %v3779
    %4608 = vmatprep.subr.bf16.mxu0 0
    %4609 = vmatpush1.bf16.msra.mxu0 0
    %4610 = vmatprep.subr.bf16.mxu0 0
    %4611 = vmatpush1.bf16.msra.mxu0 0
    %4612 = vmatprep.subr.bf16.mxu0 0
    %4613 = vmatpush1.bf16.msra.mxu0 0
    %4614 = vmatprep.subr.bf16.mxu0 0
    %4615 = vmatpush1.bf16.msra.mxu0 0
    %4616 = vmatprep.subr.bf16.mxu0 0
    %4617 = vmatpush1.bf16.msra.mxu0 0
    %4618 = vmatprep.subr.bf16.mxu0 0
    %4619 = vmatpush1.bf16.msra.mxu0 0
    %4620 = vmatprep.subr.bf16.mxu0 0
    %4621 = vmatpush1.bf16.msra.mxu0 0
    %4622 = vmatprep.subr.bf16.mxu0 0
    %4623 = vmatpush1.bf16.msra.mxu0 0
    %4624 = vmatprep.mubr.bf16.mxu0 0
    %4625 = vmatmul.mubr.bf16.gmra.mrb[0].mxu0 %v4591
    %v4626 = vpop.f32.mrb[0].mxu0
    %v4627 = vadd.f32 0.0, %v4626
    %v4628 = vpop.f32.mrb[0].mxu0
    %v4629 = vadd.f32 0.0, %v4628
    %v4630 = vpop.f32.mrb[0].mxu0
    %v4631 = vpop.f32.mrb[0].mxu0
    %4632 = vdwg.mxu0
    %4633 = vmatprep.subr.bf16.mxu0 %v3754
    %4634 = vmatpush1.bf16.msra.mxu0 %v3753
    %4635 = vmatprep.subr.bf16.mxu0 %v3758
    %4636 = vmatpush1.bf16.msra.mxu0 %v3757
    %4637 = vmatprep.subr.bf16.mxu0 %v3762
    %4638 = vmatpush1.bf16.msra.mxu0 %v3761
    %4639 = vmatprep.subr.bf16.mxu0 %v3766
    %4640 = vmatpush1.bf16.msra.mxu0 %v3765
    %4641 = vmatprep.subr.bf16.mxu0 %v3770
    %4642 = vmatpush1.bf16.msra.mxu0 %v3769
    %4643 = vmatprep.subr.bf16.mxu0 %v3774
    %4644 = vmatpush1.bf16.msra.mxu0 %v3773
    %4645 = vmatprep.subr.bf16.mxu0 %v3778
    %4646 = vmatpush1.bf16.msra.mxu0 %v3777
    %4647 = vmatprep.subr.bf16.mxu0 %v3782
    %4648 = vmatpush1.bf16.msra.mxu0 %v3781
    %4649 = vmatprep.subr.bf16.mxu0 0
    %4650 = vmatpush1.bf16.msra.mxu0 0
    %4651 = vmatprep.subr.bf16.mxu0 0
    %4652 = vmatpush1.bf16.msra.mxu0 0
    %4653 = vmatprep.subr.bf16.mxu0 0
    %4654 = vmatpush1.bf16.msra.mxu0 0
    %4655 = vmatprep.subr.bf16.mxu0 0
    %4656 = vmatpush1.bf16.msra.mxu0 0
    %4657 = vmatprep.subr.bf16.mxu0 0
    %4658 = vmatpush1.bf16.msra.mxu0 0
    %4659 = vmatprep.subr.bf16.mxu0 0
    %4660 = vmatpush1.bf16.msra.mxu0 0
    %4661 = vmatprep.subr.bf16.mxu0 0
    %4662 = vmatpush1.bf16.msra.mxu0 0
    %4663 = vmatprep.subr.bf16.mxu0 0
    %4664 = vmatpush1.bf16.msra.mxu0 0
    %4665 = vmatprep.mubr.bf16.mxu0 0
    %4666 = vmatmul.mubr.bf16.gmra.mrb[0].mxu0 %v4591
    %v4667 = vpop.f32.mrb[0].mxu0
    %v4668 = vadd.f32 0.0, %v4667
    %v4669 = vpop.f32.mrb[0].mxu0
    %v4670 = vadd.f32 0.0, %v4669
    %v4671 = vpop.f32.mrb[0].mxu0
    %v4672 = vpop.f32.mrb[0].mxu0
    %4673 = vdwg.mxu0
    %v4674 = vadd.f32 %v4587, %v4627
    %v4675 = vadd.f32 %v4588, %v4629
    %v4676 = vadd.f32 %v4589, %v4668
    %v4677 = vadd.f32 %v4590, %v4670
    %v4678 = vmul.f32 %v4674, 0.5
    %v4679 = vtanh.pop %v4678
    %v4680 = vadd.f32 %v4679, 1.0
    %v4681 = vmul.f32 %v4680, 0.5
    %v4682 = vmul.f32 %v4675, 0.5
    %v4683 = vtanh.pop %v4682
    %v4684 = vadd.f32 %v4683, 1.0
    %v4685 = vmul.f32 %v4684, 0.5
    %v4686 = vtanh.pop %v4676
    %v4687 = vmul.f32 %v4677, 0.5
    %v4688 = vtanh.pop %v4687
    %v4689 = vadd.f32 %v4688, 1.0
    %v4690 = vmul.f32 %v4689, 0.5
    %v4691 = vmul.f32 %v4685, %v4582
    %v4692 = vmul.f32 %v4681, %v4686
    %v4693 = vadd.f32 %v4691, %v4692
    %v4694 = vtanh.pop %v4693
    %v4695 = vmul.f32 %v4690, %v4694
    %v4696 = vpack.c.bf16 %v4695, %v4695
    %v4697 = vld [vmem:[%s7] sm:$0xf]
    %v4698 = vld [vmem:[%s7 + $0x4] sm:$0xf]
    %v4699 = vld [vmem:[%s7 + $0x8] sm:$0xf]
    %v4700 = vld [vmem:[%s7 + $0xc] sm:$0xf]
    %v4701 = vld [vmem:[%s7 + $0x10] sm:$0xf]
    %v4702 = vld [vmem:[%s7 + $0x14] sm:$0xf]
    %v4703 = vld [vmem:[%s7 + $0x18] sm:$0xf]
    %v4704 = vld [vmem:[%s7 + $0x1c] sm:$0xf]
    %v4705 = vld [vmem:[%s7 + $0x20] sm:$0xf]
    %v4706 = vld [vmem:[%s7 + $0x24] sm:$0xf]
    %v4707 = vld [vmem:[%s7 + $0x28] sm:$0xf]
    %v4708 = vld [vmem:[%s7 + $0x2c] sm:$0xf]
    %v4709 = vld [vmem:[%s7 + $0x30] sm:$0xf]
    %v4710 = vld [vmem:[%s7 + $0x34] sm:$0xf]
    %v4711 = vld [vmem:[%s7 + $0x38] sm:$0xf]
    %v4712 = vld [vmem:[%s7 + $0x3c] sm:$0xf]
    %v4713 = vld [vmem:[#allocation11] sm:$0x1]
    %v4715 = vlaneseq
    %v4716 = vshrl.u32 %v4715, 7
    %v4717 = vsub.s32 0, %v4716
    %v4718 = vrot.slane %v4713, %v4717
    %v4736 = vunpack.c.l.b16 %v4697
    %v4737 = vunpack.c.l.b16 %v4698
    %v4738 = vunpack.c.l.b16 %v4699
    %v4739 = vunpack.c.l.b16 %v4700
    %v4740 = vunpack.c.l.b16 %v4701
    %v4741 = vunpack.c.l.b16 %v4702
    %v4742 = vunpack.c.l.b16 %v4703
    %v4743 = vunpack.c.l.b16 %v4704
    %v4744 = vunpack.c.l.b16 %v4705
    %v4745 = vunpack.c.l.b16 %v4706
    %v4746 = vunpack.c.l.b16 %v4707
    %v4747 = vunpack.c.l.b16 %v4708
    %v4748 = vunpack.c.l.b16 %v4709
    %v4749 = vunpack.c.l.b16 %v4710
    %v4750 = vunpack.c.l.b16 %v4711
    %v4751 = vunpack.c.l.b16 %v4712
    %v4752 = vpack.c.b16 %v4737, %v4736
    %v4753 = vpack.c.b16 %v4739, %v4738
    %v4754 = vpack.c.b16 %v4741, %v4740
    %v4755 = vpack.c.b16 %v4743, %v4742
    %v4756 = vpack.c.b16 %v4745, %v4744
    %v4757 = vpack.c.b16 %v4747, %v4746
    %v4758 = vpack.c.b16 %v4749, %v4748
    %v4759 = vpack.c.b16 %v4751, %v4750
    %4768 = vmatprep.subr.bf16.mxu0 0
    %4769 = vmatpush1.bf16.msra.mxu0 %v4752
    %4770 = vmatprep.subr.bf16.mxu0 0
    %4771 = vmatpush1.bf16.msra.mxu0 %v4753
    %4772 = vmatprep.subr.bf16.mxu0 0
    %4773 = vmatpush1.bf16.msra.mxu0 %v4754
    %4774 = vmatprep.subr.bf16.mxu0 0
    %4775 = vmatpush1.bf16.msra.mxu0 %v4755
    %4776 = vmatprep.subr.bf16.mxu0 0
    %4777 = vmatpush1.bf16.msra.mxu0 %v4756
    %4778 = vmatprep.subr.bf16.mxu0 0
    %4779 = vmatpush1.bf16.msra.mxu0 %v4757
    %4780 = vmatprep.subr.bf16.mxu0 0
    %4781 = vmatpush1.bf16.msra.mxu0 %v4758
    %4782 = vmatprep.subr.bf16.mxu0 0
    %4783 = vmatpush1.bf16.msra.mxu0 %v4759
    %4784 = vmatprep.subr.bf16.mxu0 0
    %4785 = vmatpush1.bf16.msra.mxu0 0
    %4786 = vmatprep.subr.bf16.mxu0 0
    %4787 = vmatpush1.bf16.msra.mxu0 0
    %4788 = vmatprep.subr.bf16.mxu0 0
    %4789 = vmatpush1.bf16.msra.mxu0 0
    %4790 = vmatprep.subr.bf16.mxu0 0
    %4791 = vmatpush1.bf16.msra.mxu0 0
    %4792 = vmatprep.subr.bf16.mxu0 0
    %4793 = vmatpush1.bf16.msra.mxu0 0
    %4794 = vmatprep.subr.bf16.mxu0 0
    %4795 = vmatpush1.bf16.msra.mxu0 0
    %4796 = vmatprep.subr.bf16.mxu0 0
    %4797 = vmatpush1.bf16.msra.mxu0 0
    %4798 = vmatprep.subr.bf16.mxu0 0
    %4799 = vmatpush1.bf16.msra.mxu0 0
    %4800 = vmatprep.mubr.bf16.mxu0 0
    %4801 = vmatmul.mubr.bf16.gmra.mrb[0].mxu0 %v4696
    %v4802 = vpop.f32.mrb[0].mxu0
    %v4803 = vadd.f32 %v4718, %v4802
    %v4804 = vpop.f32.mrb[0].mxu0
    %v4805 = vpop.f32.mrb[0].mxu0
    %v4806 = vpop.f32.mrb[0].mxu0
    %4807 = vdwg.mxu0
    %v4808 = vmax.f32 %v4803, 0.0
    %4809 = vst [vmem:[%s9] sm:$0xff] %v4808
    // Predicated region
    $region58: #{lstm_forward.1} parent=1 // pred_check
      _
    $region59: #{lstm_forward.1} parent=1 // pred_check_branch
      %4811 = sbr.rel (0) target = $region61
    $region60: #{lstm_forward.1} parent=1 // pred_region
      _
    $region61: #{lstm_forward.1} parent=1 // pred_fallthru
      _
    // Predicated region
    $region62: #{lstm_forward.1} parent=1 // pred_check
      _
    $region63: #{lstm_forward.1} parent=1 // pred_check_branch
      %4813 = sbr.rel (0) target = $region65
    $region64: #{lstm_forward.1} parent=1 // pred_region
      _
    $region65: #{lstm_forward.1} parent=1 // pred_fallthru
      _
    %4814 = vsyncpa [#allocation5], 1
    %4815 = vsyncpa [#allocation7], 1
    %4816 = vsyncpa [#allocation10], 1

</llo_original>
